<compile_context>
chip_gen: v7x
topology: tpu7x:2x2x1
jax: 0.10.0
libtpu: 0.0.40
codegen_flags: <defaults>
</compile_context>

<pallas_src>
import functools

import jax
import jax.numpy as jnp
from jax import lax
from jax.experimental import pallas as pl
from jax.experimental.pallas import tpu as pltpu


def _round_up(x, m):
    return (x + m - 1) // m * m


def _vmem_limit_bytes():
    # v5e/v6e: 128 MiB physical -> 64 MiB scoped limit is safe.
    # v7x: 64 MiB physical -> leave headroom for compiler scratch / pipeline.
    cap = 128 * 1024 * 1024
    try:
        info_fn = getattr(pltpu, "get_tpu_info", None)
        if info_fn is not None:
            cap = int(getattr(info_fn(), "vmem_capacity_bytes", cap))
    except Exception:
        pass
    return min(64 * 1024 * 1024, cap * 7 // 10)


def _layer_norm(x, gamma, beta, eps):
    mu = jnp.mean(x, axis=-1, keepdims=True)
    var = jnp.mean((x - mu) ** 2, axis=-1, keepdims=True)
    return (x - mu) * lax.rsqrt(var + eps) * gamma + beta


def _encoder_kernel(x_ref, wq_ref, bq_ref, wk_ref, bk_ref, wv_ref, bv_ref,
                    wo_ref, bo_ref, w1_ref, b1_ref, w2_ref, b2_ref,
                    g1_ref, be1_ref, g2_ref, be2_ref,
                    out_ref, *rest,
                    nhead, head_dim, eps, tq, s_real, need_weights,
                    activation, f_chunk, approx_recip):
    if need_weights:
        attn_ref, kt_scr, v_scr, acc_scr, src1_scr = rest
    else:
        attn_ref = None
        kt_scr, v_scr, acc_scr, src1_scr = rest

    t = pl.program_id(1)
    s_pad = x_ref.shape[1]
    pad_keys = s_pad != s_real

    # ---- K / V projection for the whole (padded) sequence, once per batch ----
    # Query-tile axis is "arbitrary"; scratch persists across its steps.
    @pl.when(t == 0)
    def _():
        x_full = x_ref[0].astype(jnp.bfloat16)                      # (S, D)
        k = jnp.dot(x_full, wk_ref[...],
                    preferred_element_type=jnp.float32) + bk_ref[...]
        # One XLU transpose per batch element; removes per-head, per-tile
        # transposes in the QK^T below.
        kt_scr[...] = k.T.astype(jnp.bfloat16)                      # (D, S)
        v = jnp.dot(x_full, wv_ref[...],
                    preferred_element_type=jnp.float32) + bv_ref[...]
        v_scr[...] = v.astype(jnp.bfloat16)                         # (S, D)

    # ---- query tile ----
    q_start = pl.multiple_of(t * tq, tq)
    x_tile = x_ref[0, pl.ds(q_start, tq), :]                        # (TQ, D) f32
    # 1/sqrt(head_dim) is already folded into wq / bq (wrapper).
    q = (jnp.dot(x_tile.astype(jnp.bfloat16), wq_ref[...],
                 preferred_element_type=jnp.float32)
         + bq_ref[...]).astype(jnp.bfloat16)                        # (TQ, D)

    # ---- multi-head attention, context folded into the output projection ----
    acc_scr[...] = jnp.zeros_like(acc_scr)                          # (TQ, D) f32
    if need_weights:
        attn_ref[...] = jnp.zeros_like(attn_ref)

    if pad_keys:
        key_mask = lax.broadcasted_iota(jnp.int32, (tq, s_pad), 1) < s_real

    for h in range(nhead):
        lo = h * head_dim
        qh = q[:, lo:lo + head_dim]                                 # (TQ, hd) bf16
        kth = kt_scr[lo:lo + head_dim, :]                           # (hd, S) bf16
        s = jnp.dot(qh, kth, preferred_element_type=jnp.float32)    # (TQ, S)
        if pad_keys:
            s = jnp.where(key_mask, s, -1e30)
        s = s - jnp.max(s, axis=-1, keepdims=True)
        p = jnp.exp(s)
        denom = jnp.sum(p, axis=-1, keepdims=True)
        if approx_recip:
            p = p * pl.reciprocal(denom, approx=True)               # EUP
        else:
            p = p / denom
        if need_weights:
            attn_ref[0] = attn_ref[0] + p
        vh = v_scr[:, lo:lo + head_dim]                             # (S, hd) bf16
        ctx = jnp.dot(p.astype(jnp.bfloat16), vh,
                      preferred_element_type=jnp.float32)           # (TQ, hd)
        # Fold head context directly into the output projection.
        acc_scr[...] += jnp.dot(ctx.astype(jnp.bfloat16),
                                wo_ref[lo:lo + head_dim, :],
                                preferred_element_type=jnp.float32)

    if need_weights:
        attn_ref[...] = attn_ref[...] * (1.0 / nhead)               # head average

    attn_out = acc_scr[...] + bo_ref[...]
    # residual + norm1 (dropout1 = identity)
    src1_scr[...] = _layer_norm(x_tile + attn_out, g1_ref[...], be1_ref[...], eps)

    # ---- feed forward, chunked over the hidden dim F ----
    f_total = w1_ref.shape[1]
    acc_scr[...] = jnp.zeros_like(acc_scr)
    for c in range(f_total // f_chunk):
        lo = c * f_chunk
        hid = (jnp.dot(src1_scr[...].astype(jnp.bfloat16),
                       w1_ref[:, lo:lo + f_chunk],
                       preferred_element_type=jnp.float32)
               + b1_ref[:, lo:lo + f_chunk])
        if activation == "relu":
            hid = jnp.maximum(hid, 0.0)
        else:  # gelu (exact, matching torch.nn.functional.gelu default)
            hid = jax.nn.gelu(hid, approximate=False)
        acc_scr[...] += jnp.dot(hid.astype(jnp.bfloat16),
                                w2_ref[lo:lo + f_chunk, :],
                                preferred_element_type=jnp.float32)

    ff = acc_scr[...] + b2_ref[...]
    # residual + norm2 (dropout2, dropout = identity)
    out_ref[0] = _layer_norm(src1_scr[...] + ff, g2_ref[...], be2_ref[...], eps)


def transformer_encoder_layer(src, params, *, nhead, eps=1e-5, activation="relu",
                              need_weights=True, q_tile=256, approx_recip=True):
    """src: (S, B, D) float32.  Returns (out (S, B, D), attn (B, S, S) or None)."""
    S, B, D = src.shape
    assert D % nhead == 0
    head_dim = D // nhead
    scale = 1.0 / float(head_dim) ** 0.5
    F = params['linear1_weight'].shape[0]

    # (S, B, D) -> (B, S, D).
    x = jnp.transpose(src, (1, 0, 2)).astype(jnp.float32)

    # Query tile / padded sequence length (pad rows are key-masked in-kernel).
    tq = q_tile if S >= q_tile else _round_up(S, 8)
    s_pad = _round_up(S, tq)
    if s_pad != S:
        x = jnp.pad(x, ((0, 0), (0, s_pad - S), (0, 0)))
    n_qt = s_pad // tq

    # FFN chunk over F: bounds the (TQ, F) intermediate and the per-call weight slab.
    f_chunk = F
    if F > 1024:
        for c in (1024, 512, 256, 128):
            if F % c == 0:
                f_chunk = c
                break

    # Weight prep (glue, not hot path): transpose for x @ W, split Q/K/V, fold
    # the softmax scale into the Q projection, cast matmul weights to bf16.
    w_in = params['in_proj_weight'].astype(jnp.float32)              # (3D, D)
    b_in = params['in_proj_bias'].astype(jnp.float32)                # (3D,)
    wq = (w_in[:D].T * scale).astype(jnp.bfloat16)                   # (D, D)
    bq = (b_in[:D] * scale)[None, :]                                 # (1, D) f32
    wk = w_in[D:2 * D].T.astype(jnp.bfloat16)
    bk = b_in[D:2 * D][None, :]
    wv = w_in[2 * D:].T.astype(jnp.bfloat16)
    bv = b_in[2 * D:][None, :]
    wo = params['out_proj_weight'].T.astype(jnp.bfloat16)            # (D, D)
    bo = params['out_proj_bias'][None, :].astype(jnp.float32)
    w1 = params['linear1_weight'].T.astype(jnp.bfloat16)             # (D, F)
    b1 = params['linear1_bias'][None, :].astype(jnp.float32)
    w2 = params['linear2_weight'].T.astype(jnp.bfloat16)             # (F, D)
    b2 = params['linear2_bias'][None, :].astype(jnp.float32)
    g1 = params['norm1_weight'][None, :].astype(jnp.float32)
    be1 = params['norm1_bias'][None, :].astype(jnp.float32)
    g2 = params['norm2_weight'][None, :].astype(jnp.float32)
    be2 = params['norm2_bias'][None, :].astype(jnp.float32)

    kernel = functools.partial(
        _encoder_kernel, nhead=nhead, head_dim=head_dim, eps=eps, tq=tq,
        s_real=S, need_weights=need_weights, activation=activation,
        f_chunk=f_chunk, approx_recip=approx_recip)

    # Grid-invariant weights/biases: untiled, single VMEM-resident copy
    # (avoids default 2-deep double buffering of constant-index inputs).
    wspec = pl.BlockSpec(memory_space=pltpu.MemorySpace.VMEM)
    in_specs = [pl.BlockSpec((1, s_pad, D), lambda b, t: (b, 0, 0))] + [wspec] * 16

    out_spec = pl.BlockSpec((1, tq, D), lambda b, t: (b, t, 0))
    if need_weights:
        out_shape = (jax.ShapeDtypeStruct((B, s_pad, D), jnp.float32),
                     jax.ShapeDtypeStruct((B, s_pad, s_pad), jnp.float32))
        out_specs = (out_spec,
                     pl.BlockSpec((1, tq, s_pad), lambda b, t: (b, t, 0)))
    else:
        out_shape = jax.ShapeDtypeStruct((B, s_pad, D), jnp.float32)
        out_specs = out_spec

    scratch = [pltpu.VMEM((D, s_pad), jnp.bfloat16),   # K^T (full sequence)
               pltpu.VMEM((s_pad, D), jnp.bfloat16),   # V   (full sequence)
               pltpu.VMEM((tq, D), jnp.float32),       # attn-out / FFN accumulator
               pltpu.VMEM((tq, D), jnp.float32)]       # src1 (post-norm1)

    flops = 2 * B * s_pad * D * (4 * D + 2 * F) + 4 * B * s_pad * s_pad * D
    bytes_accessed = (8 * B * s_pad * D
                      + (4 * B * s_pad * s_pad if need_weights else 0)
                      + 2 * (4 * D * D + 2 * D * F)
                      + 4 * (8 * D + F))
    cost = pl.CostEstimate(flops=int(flops),
                           transcendentals=int(B * nhead * s_pad * s_pad),
                           bytes_accessed=int(bytes_accessed))

    res = pl.pallas_call(
        kernel,
        out_shape=out_shape,
        grid_spec=pltpu.PrefetchScalarGridSpec(
            num_scalar_prefetch=0,
            grid=(B, n_qt),
            in_specs=in_specs,
            out_specs=out_specs,
            scratch_shapes=scratch),
        compiler_params=pltpu.CompilerParams(
            dimension_semantics=("parallel", "arbitrary"),
            vmem_limit_bytes=_vmem_limit_bytes()),
        cost_estimate=cost,
    )(x, wq, bq, wk, bk, wv, bv, wo, bo, w1, b1, w2, b2, g1, be1, g2, be2)

    if need_weights:
        out, attn = res
        out = out[:, :S, :]
        attn = attn[:, :S, :S]
        return jnp.transpose(out, (1, 0, 2)), attn
    out = res[:, :S, :]
    return jnp.transpose(out, (1, 0, 2)), None


def _reference(src, params, nhead, eps=1e-5):
    """Pure-JAX f32 reference matching torch semantics (eval mode)."""
    S, B, D = src.shape
    dh = D // nhead
    qkv = src @ params['in_proj_weight'].T + params['in_proj_bias']
    q, k, v = qkv[..., :D], qkv[..., D:2 * D], qkv[..., 2 * D:]

    def split(t):
        return t.reshape(S, B * nhead, dh).transpose(1, 0, 2)

    qh, kh, vh = split(q), split(k), split(v)
    scores = (qh * (dh ** -0.5)) @ kh.transpose(0, 2, 1)
    p = jax.nn.softmax(scores, axis=-1)
    ctx = (p @ vh).transpose(1, 0, 2).reshape(S, B, D)
    attn_out = ctx @ params['out_proj_weight'].T + params['out_proj_bias']
    attn_w = p.reshape(B, nhead, S, S).mean(axis=1)

    def ln(t, g, b):
        mu = t.mean(-1, keepdims=True)
        var = ((t - mu) ** 2).mean(-1, keepdims=True)
        return (t - mu) / jnp.sqrt(var + eps) * g + b

    src1 = ln(src + attn_out, params['norm1_weight'], params['norm1_bias'])
    hid = jnp.maximum(src1 @ params['linear1_weight'].T + params['linear1_bias'], 0.0)
    ff = hid @ params['linear2_weight'].T + params['linear2_bias']
    src2 = ln(src1 + ff, params['norm2_weight'], params['norm2_bias'])
    return src2, attn_w


if __name__ == "__main__":
    S, B, D, H, FF = 8, 2, 128, 4, 256
    key = jax.random.PRNGKey(0)
    ks = jax.random.split(key, 16)

    def rnd(k, shape, s=0.05):
        return jax.random.normal(k, shape, jnp.float32) * s

    params = {
        'in_proj_weight':  rnd(ks[0], (3 * D, D)),
        'in_proj_bias':    rnd(ks[1], (3 * D,)),
        'out_proj_weight': rnd(ks[2], (D, D)),
        'out_proj_bias':   rnd(ks[3], (D,)),
        'linear1_weight':  rnd(ks[4], (FF, D)),
        'linear1_bias':    rnd(ks[5], (FF,)),
        'linear2_weight':  rnd(ks[6], (D, FF)),
        'linear2_bias':    rnd(ks[7], (D,)),
        'norm1_weight':    1.0 + rnd(ks[9], (D,), 0.1),
        'norm1_bias':      rnd(ks[10], (D,), 0.05),
        'norm2_weight':    1.0 + rnd(ks[11], (D,), 0.1),
        'norm2_bias':      rnd(ks[12], (D,), 0.05),
    }

    src = jax.random.normal(ks[8], (S, B, D), jnp.float32)

    out, attn = transformer_encoder_layer(src, params, nhead=H, need_weights=True)
    out = jax.block_until_ready(out)
    attn = jax.block_until_ready(attn)

    ref_out, ref_attn = _reference(src, params, H)
    # bf16 matmuls + approx reciprocal -> loosened tolerances vs pure-f32 reference.
    assert jnp.allclose(out, ref_out, atol=2e-2, rtol=2e-2), "output mismatch"
    assert jnp.allclose(attn, ref_attn, atol=2e-2, rtol=2e-2), "attn mismatch"

    # need_weights=False path skips the (B, S, S) attention-weights writeback.
    out2, _ = transformer_encoder_layer(src, params, nhead=H, need_weights=False)
    out2 = jax.block_until_ready(out2)
    assert jnp.allclose(out2, ref_out, atol=2e-2, rtol=2e-2), "no-weights output mismatch"

    # Ragged S -> padded sequence + in-kernel key masking path.
    S2 = 12
    src2 = jax.random.normal(ks[13], (S2, B, D), jnp.float32)
    out3, attn3 = transformer_encoder_layer(src2, params, nhead=H, need_weights=True)
    out3 = jax.block_until_ready(out3)
    attn3 = jax.block_until_ready(attn3)
    ref_out3, ref_attn3 = _reference(src2, params, H)
    assert jnp.allclose(out3, ref_out3, atol=2e-2, rtol=2e-2), "padded output mismatch"
    assert jnp.allclose(attn3, ref_attn3, atol=2e-2, rtol=2e-2), "padded attn mismatch"

    print("KERNEL_OK")
</pallas_src>

<mosaic_0001>
module attributes {stable_mosaic.version = 11 : i64} {
  func.func @_encoder_kernel(%arg0: i32, %arg1: i32, %arg2: memref<1x8x128xf32, #tpu.memory_space<vmem>>, %arg3: memref<128x128xbf16, #tpu.memory_space<vmem>>, %arg4: memref<1x128xf32, #tpu.memory_space<vmem>>, %arg5: memref<128x128xbf16, #tpu.memory_space<vmem>>, %arg6: memref<1x128xf32, #tpu.memory_space<vmem>>, %arg7: memref<128x128xbf16, #tpu.memory_space<vmem>>, %arg8: memref<1x128xf32, #tpu.memory_space<vmem>>, %arg9: memref<128x128xbf16, #tpu.memory_space<vmem>>, %arg10: memref<1x128xf32, #tpu.memory_space<vmem>>, %arg11: memref<128x256xbf16, #tpu.memory_space<vmem>>, %arg12: memref<1x256xf32, #tpu.memory_space<vmem>>, %arg13: memref<256x128xbf16, #tpu.memory_space<vmem>>, %arg14: memref<1x128xf32, #tpu.memory_space<vmem>>, %arg15: memref<1x128xf32, #tpu.memory_space<vmem>>, %arg16: memref<1x128xf32, #tpu.memory_space<vmem>>, %arg17: memref<1x128xf32, #tpu.memory_space<vmem>>, %arg18: memref<1x128xf32, #tpu.memory_space<vmem>>, %arg19: memref<1x8x128xf32, #tpu.memory_space<vmem>>, %arg20: memref<1x8x8xf32, #tpu.memory_space<vmem>>, %arg21: memref<128x8xbf16, #tpu.memory_space<vmem>>, %arg22: memref<8x128xbf16, #tpu.memory_space<vmem>>, %arg23: memref<8x128xf32, #tpu.memory_space<vmem>>, %arg24: memref<8x128xf32, #tpu.memory_space<vmem>>) attributes {dimension_semantics = [#tpu.dimension_semantics<parallel>, #tpu.dimension_semantics<arbitrary>], iteration_bounds = array<i64: 2, 1>, scalar_prefetch = 0 : i64, scratch_operands = 4 : i64, tpu.core_type = #tpu.core_type<tc>, window_params = [{transform_indices = @transform_0, window_bounds = array<i64: 1, 8, 128>}, {pipeline_mode = #tpu.pipeline_mode<synchronous>, transform_indices = @transform_1, window_bounds = array<i64: 128, 128>}, {pipeline_mode = #tpu.pipeline_mode<synchronous>, transform_indices = @transform_2, window_bounds = array<i64: 1, 128>}, {pipeline_mode = #tpu.pipeline_mode<synchronous>, transform_indices = @transform_3, window_bounds = array<i64: 128, 128>}, {pipeline_mode = #tpu.pipeline_mode<synchronous>, transform_indices = @transform_4, window_bounds = array<i64: 1, 128>}, {pipeline_mode = #tpu.pipeline_mode<synchronous>, transform_indices = @transform_5, window_bounds = array<i64: 128, 128>}, {pipeline_mode = #tpu.pipeline_mode<synchronous>, transform_indices = @transform_6, window_bounds = array<i64: 1, 128>}, {pipeline_mode = #tpu.pipeline_mode<synchronous>, transform_indices = @transform_7, window_bounds = array<i64: 128, 128>}, {pipeline_mode = #tpu.pipeline_mode<synchronous>, transform_indices = @transform_8, window_bounds = array<i64: 1, 128>}, {pipeline_mode = #tpu.pipeline_mode<synchronous>, transform_indices = @transform_9, window_bounds = array<i64: 128, 256>}, {pipeline_mode = #tpu.pipeline_mode<synchronous>, transform_indices = @transform_10, window_bounds = array<i64: 1, 256>}, {pipeline_mode = #tpu.pipeline_mode<synchronous>, transform_indices = @transform_11, window_bounds = array<i64: 256, 128>}, {pipeline_mode = #tpu.pipeline_mode<synchronous>, transform_indices = @transform_12, window_bounds = array<i64: 1, 128>}, {pipeline_mode = #tpu.pipeline_mode<synchronous>, transform_indices = @transform_13, window_bounds = array<i64: 1, 128>}, {pipeline_mode = #tpu.pipeline_mode<synchronous>, transform_indices = @transform_14, window_bounds = array<i64: 1, 128>}, {pipeline_mode = #tpu.pipeline_mode<synchronous>, transform_indices = @transform_15, window_bounds = array<i64: 1, 128>}, {pipeline_mode = #tpu.pipeline_mode<synchronous>, transform_indices = @transform_16, window_bounds = array<i64: 1, 128>}, {transform_indices = @transform_17, window_bounds = array<i64: 1, 8, 128>}, {transform_indices = @transform_18, window_bounds = array<i64: 1, 8, 8>}]} {
    %c0_i32 = arith.constant 0 : i32
    %0 = arith.cmpi eq, %arg1, %c0_i32 : i32
    %1 = arith.extui %0 : i1 to i32
    %c0_i32_0 = arith.constant 0 : i32
    %2 = arith.cmpi ne, %1, %c0_i32_0 : i32
    scf.if %2 {
      %c0_152 = arith.constant 0 : index
      %c0_153 = arith.constant 0 : index
      %c0_154 = arith.constant 0 : index
      %215 = vector.load %arg2[%c0_152, %c0_153, %c0_154] : memref<1x8x128xf32, #tpu.memory_space<vmem>>, vector<1x8x128xf32>
      %216 = vector.shape_cast %215 : vector<1x8x128xf32> to vector<8x128xf32>
      %217 = arith.truncf %216 : vector<8x128xf32> to vector<8x128xbf16>
      %c0_155 = arith.constant 0 : index
      %c0_156 = arith.constant 0 : index
      %218 = vector.load %arg5[%c0_155, %c0_156] : memref<128x128xbf16, #tpu.memory_space<vmem>>, vector<128x128xbf16>
      %cst_157 = arith.constant dense<0.000000e+00> : vector<8x128xf32>
      %219 = tpu.matmul %217, %218, %cst_157 {dimension_numbers = #tpu.dot_dimension_numbers<[1], [0], [0], [1], [0, 0, 1, 1], [], []>} : vector<8x128xbf16>, vector<128x128xbf16>, vector<8x128xf32> -> vector<8x128xf32>
      %c0_158 = arith.constant 0 : index
      %c0_159 = arith.constant 0 : index
      %220 = vector.load %arg6[%c0_158, %c0_159] : memref<1x128xf32, #tpu.memory_space<vmem>>, vector<1x128xf32>
      %221 = vector.broadcast %220 : vector<1x128xf32> to vector<8x128xf32>
      %222 = arith.addf %219, %221 : vector<8x128xf32>
      %223 = tpu.transpose %222, [1, 0] : vector<8x128xf32> -> vector<128x8xf32>
      %224 = arith.truncf %223 : vector<128x8xf32> to vector<128x8xbf16>
      %c0_160 = arith.constant 0 : index
      %c0_161 = arith.constant 0 : index
      %225 = vector.load %arg21[%c0_160, %c0_161] : memref<128x8xbf16, #tpu.memory_space<vmem>>, vector<128x8xbf16>
      tpu.vector_store %arg21[%c0_160, %c0_161], %224 {strides = array<i32>} : memref<128x8xbf16, #tpu.memory_space<vmem>>, vector<128x8xbf16>,
      %c0_162 = arith.constant 0 : index
      %c0_163 = arith.constant 0 : index
      %226 = vector.load %arg7[%c0_162, %c0_163] : memref<128x128xbf16, #tpu.memory_space<vmem>>, vector<128x128xbf16>
      %cst_164 = arith.constant dense<0.000000e+00> : vector<8x128xf32>
      %227 = tpu.matmul %217, %226, %cst_164 {dimension_numbers = #tpu.dot_dimension_numbers<[1], [0], [0], [1], [0, 0, 1, 1], [], []>} : vector<8x128xbf16>, vector<128x128xbf16>, vector<8x128xf32> -> vector<8x128xf32>
      %c0_165 = arith.constant 0 : index
      %c0_166 = arith.constant 0 : index
      %228 = vector.load %arg8[%c0_165, %c0_166] : memref<1x128xf32, #tpu.memory_space<vmem>>, vector<1x128xf32>
      %229 = vector.broadcast %228 : vector<1x128xf32> to vector<8x128xf32>
      %230 = arith.addf %227, %229 : vector<8x128xf32>
      %231 = arith.truncf %230 : vector<8x128xf32> to vector<8x128xbf16>
      %c0_167 = arith.constant 0 : index
      %c0_168 = arith.constant 0 : index
      %232 = vector.load %arg22[%c0_167, %c0_168] : memref<8x128xbf16, #tpu.memory_space<vmem>>, vector<8x128xbf16>
      tpu.vector_store %arg22[%c0_167, %c0_168], %231 {strides = array<i32>} : memref<8x128xbf16, #tpu.memory_space<vmem>>, vector<8x128xbf16>,
    } else {
    }
    %c8_i32 = arith.constant 8 : i32
    %3 = arith.muli %arg1, %c8_i32 : i32
    %4 = tpu.assume_multiple %3, 8 : i32
    %c0 = arith.constant 0 : index
    %5 = arith.index_cast %4 : i32 to index
    %c0_1 = arith.constant 0 : index
    %6 = vector.load %arg2[%c0, %5, %c0_1] : memref<1x8x128xf32, #tpu.memory_space<vmem>>, vector<1x8x128xf32>
    %7 = vector.shape_cast %6 : vector<1x8x128xf32> to vector<8x128xf32>
    %8 = arith.truncf %7 : vector<8x128xf32> to vector<8x128xbf16>
    %c0_2 = arith.constant 0 : index
    %c0_3 = arith.constant 0 : index
    %9 = vector.load %arg3[%c0_2, %c0_3] : memref<128x128xbf16, #tpu.memory_space<vmem>>, vector<128x128xbf16>
    %cst = arith.constant dense<0.000000e+00> : vector<8x128xf32>
    %10 = tpu.matmul %8, %9, %cst {dimension_numbers = #tpu.dot_dimension_numbers<[1], [0], [0], [1], [0, 0, 1, 1], [], []>} : vector<8x128xbf16>, vector<128x128xbf16>, vector<8x128xf32> -> vector<8x128xf32>
    %c0_4 = arith.constant 0 : index
    %c0_5 = arith.constant 0 : index
    %11 = vector.load %arg4[%c0_4, %c0_5] : memref<1x128xf32, #tpu.memory_space<vmem>>, vector<1x128xf32>
    %12 = vector.broadcast %11 : vector<1x128xf32> to vector<8x128xf32>
    %13 = arith.addf %10, %12 : vector<8x128xf32>
    %14 = arith.truncf %13 : vector<8x128xf32> to vector<8x128xbf16>
    %cst_6 = arith.constant 0.000000e+00 : f32
    %15 = vector.broadcast %cst_6 : f32 to vector<8x128xf32>
    %c0_7 = arith.constant 0 : index
    %c0_8 = arith.constant 0 : index
    %16 = vector.load %arg23[%c0_7, %c0_8] : memref<8x128xf32, #tpu.memory_space<vmem>>, vector<8x128xf32>
    tpu.vector_store %arg23[%c0_7, %c0_8], %15 {strides = array<i32>} : memref<8x128xf32, #tpu.memory_space<vmem>>, vector<8x128xf32>,
    %cst_9 = arith.constant 0.000000e+00 : f32
    %17 = vector.broadcast %cst_9 : f32 to vector<1x8x8xf32>
    %c0_10 = arith.constant 0 : index
    %c0_11 = arith.constant 0 : index
    %c0_12 = arith.constant 0 : index
    %18 = vector.load %arg20[%c0_10, %c0_11, %c0_12] : memref<1x8x8xf32, #tpu.memory_space<vmem>>, vector<1x8x8xf32>
    tpu.vector_store %arg20[%c0_10, %c0_11, %c0_12], %17 {strides = array<i32>} : memref<1x8x8xf32, #tpu.memory_space<vmem>>, vector<1x8x8xf32>,
    %19 = vector.extract_strided_slice %14 {offsets = [0, 0], sizes = [8, 32], strides = [1, 1]} : vector<8x128xbf16> to vector<8x32xbf16>
    %c0_13 = arith.constant 0 : index
    %c0_14 = arith.constant 0 : index
    %20 = vector.load %arg21[%c0_13, %c0_14] : memref<128x8xbf16, #tpu.memory_space<vmem>>, vector<32x8xbf16>
    %cst_15 = arith.constant dense<0.000000e+00> : vector<8x8xf32>
    %21 = tpu.matmul %19, %20, %cst_15 {dimension_numbers = #tpu.dot_dimension_numbers<[1], [0], [0], [1], [0, 0, 1, 1], [], []>} : vector<8x32xbf16>, vector<32x8xbf16>, vector<8x8xf32> -> vector<8x8xf32>
    %cst_16 = arith.constant dense<0xFF800000> : vector<8xf32>
    %22 = vector.multi_reduction <maximumf>, %21, %cst_16 [1] : vector<8x8xf32> to vector<8xf32>
    %23 = vector.shape_cast %22 : vector<8xf32> to vector<8x1xf32>
    %24 = vector.broadcast %23 : vector<8x1xf32> to vector<8x8xf32>
    %25 = arith.subf %21, %24 : vector<8x8xf32>
    %26 = math.exp %25 : vector<8x8xf32>
    %cst_17 = arith.constant dense<0.000000e+00> : vector<8xf32>
    %27 = vector.multi_reduction <add>, %26, %cst_17 [1] : vector<8x8xf32> to vector<8xf32>
    %28 = vector.shape_cast %27 : vector<8xf32> to vector<8x1xf32>
    %29 = tpu.reciprocal %28 {approx = true} : vector<8x1xf32> -> vector<8x1xf32>
    %30 = vector.broadcast %29 : vector<8x1xf32> to vector<8x8xf32>
    %31 = arith.mulf %26, %30 : vector<8x8xf32>
    %c0_18 = arith.constant 0 : index
    %c0_19 = arith.constant 0 : index
    %c0_20 = arith.constant 0 : index
    %32 = vector.load %arg20[%c0_18, %c0_19, %c0_20] : memref<1x8x8xf32, #tpu.memory_space<vmem>>, vector<1x8x8xf32>
    %33 = vector.shape_cast %32 : vector<1x8x8xf32> to vector<8x8xf32>
    %34 = arith.addf %33, %31 : vector<8x8xf32>
    %c0_21 = arith.constant 0 : index
    %c0_22 = arith.constant 0 : index
    %c0_23 = arith.constant 0 : index
    %35 = vector.load %arg20[%c0_21, %c0_22, %c0_23] : memref<1x8x8xf32, #tpu.memory_space<vmem>>, vector<1x8x8xf32>
    %36 = vector.shape_cast %35 : vector<1x8x8xf32> to vector<8x8xf32>
    %37 = vector.shape_cast %34 : vector<8x8xf32> to vector<1x8x8xf32>
    tpu.vector_store %arg20[%c0_21, %c0_22, %c0_23], %37 {strides = array<i32>} : memref<1x8x8xf32, #tpu.memory_space<vmem>>, vector<1x8x8xf32>,
    %c0_24 = arith.constant 0 : index
    %c0_25 = arith.constant 0 : index
    %38 = vector.load %arg22[%c0_24, %c0_25] : memref<8x128xbf16, #tpu.memory_space<vmem>>, vector<8x32xbf16>
    %39 = arith.truncf %31 : vector<8x8xf32> to vector<8x8xbf16>
    %cst_26 = arith.constant dense<0.000000e+00> : vector<8x32xf32>
    %40 = tpu.matmul %39, %38, %cst_26 {dimension_numbers = #tpu.dot_dimension_numbers<[1], [0], [0], [1], [0, 0, 1, 1], [], []>} : vector<8x8xbf16>, vector<8x32xbf16>, vector<8x32xf32> -> vector<8x32xf32>
    %c0_27 = arith.constant 0 : index
    %c0_28 = arith.constant 0 : index
    %41 = vector.load %arg23[%c0_27, %c0_28] : memref<8x128xf32, #tpu.memory_space<vmem>>, vector<8x128xf32>
    %42 = arith.truncf %40 : vector<8x32xf32> to vector<8x32xbf16>
    %c0_29 = arith.constant 0 : index
    %c0_30 = arith.constant 0 : index
    %43 = vector.load %arg9[%c0_29, %c0_30] : memref<128x128xbf16, #tpu.memory_space<vmem>>, vector<32x128xbf16>
    %cst_31 = arith.constant dense<0.000000e+00> : vector<8x128xf32>
    %44 = tpu.matmul %42, %43, %cst_31 {dimension_numbers = #tpu.dot_dimension_numbers<[1], [0], [0], [1], [0, 0, 1, 1], [], []>} : vector<8x32xbf16>, vector<32x128xbf16>, vector<8x128xf32> -> vector<8x128xf32>
    %45 = arith.addf %41, %44 : vector<8x128xf32>
    %c0_32 = arith.constant 0 : index
    %c0_33 = arith.constant 0 : index
    %46 = vector.load %arg23[%c0_32, %c0_33] : memref<8x128xf32, #tpu.memory_space<vmem>>, vector<8x128xf32>
    tpu.vector_store %arg23[%c0_32, %c0_33], %45 {strides = array<i32>} : memref<8x128xf32, #tpu.memory_space<vmem>>, vector<8x128xf32>,
    %47 = vector.extract_strided_slice %14 {offsets = [0, 32], sizes = [8, 32], strides = [1, 1]} : vector<8x128xbf16> to vector<8x32xbf16>
    %c32 = arith.constant 32 : index
    %c0_34 = arith.constant 0 : index
    %48 = vector.load %arg21[%c32, %c0_34] : memref<128x8xbf16, #tpu.memory_space<vmem>>, vector<32x8xbf16>
    %cst_35 = arith.constant dense<0.000000e+00> : vector<8x8xf32>
    %49 = tpu.matmul %47, %48, %cst_35 {dimension_numbers = #tpu.dot_dimension_numbers<[1], [0], [0], [1], [0, 0, 1, 1], [], []>} : vector<8x32xbf16>, vector<32x8xbf16>, vector<8x8xf32> -> vector<8x8xf32>
    %cst_36 = arith.constant dense<0xFF800000> : vector<8xf32>
    %50 = vector.multi_reduction <maximumf>, %49, %cst_36 [1] : vector<8x8xf32> to vector<8xf32>
    %51 = vector.shape_cast %50 : vector<8xf32> to vector<8x1xf32>
    %52 = vector.broadcast %51 : vector<8x1xf32> to vector<8x8xf32>
    %53 = arith.subf %49, %52 : vector<8x8xf32>
    %54 = math.exp %53 : vector<8x8xf32>
    %cst_37 = arith.constant dense<0.000000e+00> : vector<8xf32>
    %55 = vector.multi_reduction <add>, %54, %cst_37 [1] : vector<8x8xf32> to vector<8xf32>
    %56 = vector.shape_cast %55 : vector<8xf32> to vector<8x1xf32>
    %57 = tpu.reciprocal %56 {approx = true} : vector<8x1xf32> -> vector<8x1xf32>
    %58 = vector.broadcast %57 : vector<8x1xf32> to vector<8x8xf32>
    %59 = arith.mulf %54, %58 : vector<8x8xf32>
    %c0_38 = arith.constant 0 : index
    %c0_39 = arith.constant 0 : index
    %c0_40 = arith.constant 0 : index
    %60 = vector.load %arg20[%c0_38, %c0_39, %c0_40] : memref<1x8x8xf32, #tpu.memory_space<vmem>>, vector<1x8x8xf32>
    %61 = vector.shape_cast %60 : vector<1x8x8xf32> to vector<8x8xf32>
    %62 = arith.addf %61, %59 : vector<8x8xf32>
    %c0_41 = arith.constant 0 : index
    %c0_42 = arith.constant 0 : index
    %c0_43 = arith.constant 0 : index
    %63 = vector.load %arg20[%c0_41, %c0_42, %c0_43] : memref<1x8x8xf32, #tpu.memory_space<vmem>>, vector<1x8x8xf32>
    %64 = vector.shape_cast %63 : vector<1x8x8xf32> to vector<8x8xf32>
    %65 = vector.shape_cast %62 : vector<8x8xf32> to vector<1x8x8xf32>
    tpu.vector_store %arg20[%c0_41, %c0_42, %c0_43], %65 {strides = array<i32>} : memref<1x8x8xf32, #tpu.memory_space<vmem>>, vector<1x8x8xf32>,
    %c0_44 = arith.constant 0 : index
    %c32_45 = arith.constant 32 : index
    %66 = vector.load %arg22[%c0_44, %c32_45] : memref<8x128xbf16, #tpu.memory_space<vmem>>, vector<8x32xbf16>
    %67 = arith.truncf %59 : vector<8x8xf32> to vector<8x8xbf16>
    %cst_46 = arith.constant dense<0.000000e+00> : vector<8x32xf32>
    %68 = tpu.matmul %67, %66, %cst_46 {dimension_numbers = #tpu.dot_dimension_numbers<[1], [0], [0], [1], [0, 0, 1, 1], [], []>} : vector<8x8xbf16>, vector<8x32xbf16>, vector<8x32xf32> -> vector<8x32xf32>
    %c0_47 = arith.constant 0 : index
    %c0_48 = arith.constant 0 : index
    %69 = vector.load %arg23[%c0_47, %c0_48] : memref<8x128xf32, #tpu.memory_space<vmem>>, vector<8x128xf32>
    %70 = arith.truncf %68 : vector<8x32xf32> to vector<8x32xbf16>
    %c32_49 = arith.constant 32 : index
    %c0_50 = arith.constant 0 : index
    %71 = vector.load %arg9[%c32_49, %c0_50] : memref<128x128xbf16, #tpu.memory_space<vmem>>, vector<32x128xbf16>
    %cst_51 = arith.constant dense<0.000000e+00> : vector<8x128xf32>
    %72 = tpu.matmul %70, %71, %cst_51 {dimension_numbers = #tpu.dot_dimension_numbers<[1], [0], [0], [1], [0, 0, 1, 1], [], []>} : vector<8x32xbf16>, vector<32x128xbf16>, vector<8x128xf32> -> vector<8x128xf32>
    %73 = arith.addf %69, %72 : vector<8x128xf32>
    %c0_52 = arith.constant 0 : index
    %c0_53 = arith.constant 0 : index
    %74 = vector.load %arg23[%c0_52, %c0_53] : memref<8x128xf32, #tpu.memory_space<vmem>>, vector<8x128xf32>
    tpu.vector_store %arg23[%c0_52, %c0_53], %73 {strides = array<i32>} : memref<8x128xf32, #tpu.memory_space<vmem>>, vector<8x128xf32>,
    %75 = vector.extract_strided_slice %14 {offsets = [0, 64], sizes = [8, 32], strides = [1, 1]} : vector<8x128xbf16> to vector<8x32xbf16>
    %c64 = arith.constant 64 : index
    %c0_54 = arith.constant 0 : index
    %76 = vector.load %arg21[%c64, %c0_54] : memref<128x8xbf16, #tpu.memory_space<vmem>>, vector<32x8xbf16>
    %cst_55 = arith.constant dense<0.000000e+00> : vector<8x8xf32>
    %77 = tpu.matmul %75, %76, %cst_55 {dimension_numbers = #tpu.dot_dimension_numbers<[1], [0], [0], [1], [0, 0, 1, 1], [], []>} : vector<8x32xbf16>, vector<32x8xbf16>, vector<8x8xf32> -> vector<8x8xf32>
    %cst_56 = arith.constant dense<0xFF800000> : vector<8xf32>
    %78 = vector.multi_reduction <maximumf>, %77, %cst_56 [1] : vector<8x8xf32> to vector<8xf32>
    %79 = vector.shape_cast %78 : vector<8xf32> to vector<8x1xf32>
    %80 = vector.broadcast %79 : vector<8x1xf32> to vector<8x8xf32>
    %81 = arith.subf %77, %80 : vector<8x8xf32>
    %82 = math.exp %81 : vector<8x8xf32>
    %cst_57 = arith.constant dense<0.000000e+00> : vector<8xf32>
    %83 = vector.multi_reduction <add>, %82, %cst_57 [1] : vector<8x8xf32> to vector<8xf32>
    %84 = vector.shape_cast %83 : vector<8xf32> to vector<8x1xf32>
    %85 = tpu.reciprocal %84 {approx = true} : vector<8x1xf32> -> vector<8x1xf32>
    %86 = vector.broadcast %85 : vector<8x1xf32> to vector<8x8xf32>
    %87 = arith.mulf %82, %86 : vector<8x8xf32>
    %c0_58 = arith.constant 0 : index
    %c0_59 = arith.constant 0 : index
    %c0_60 = arith.constant 0 : index
    %88 = vector.load %arg20[%c0_58, %c0_59, %c0_60] : memref<1x8x8xf32, #tpu.memory_space<vmem>>, vector<1x8x8xf32>
    %89 = vector.shape_cast %88 : vector<1x8x8xf32> to vector<8x8xf32>
    %90 = arith.addf %89, %87 : vector<8x8xf32>
    %c0_61 = arith.constant 0 : index
    %c0_62 = arith.constant 0 : index
    %c0_63 = arith.constant 0 : index
    %91 = vector.load %arg20[%c0_61, %c0_62, %c0_63] : memref<1x8x8xf32, #tpu.memory_space<vmem>>, vector<1x8x8xf32>
    %92 = vector.shape_cast %91 : vector<1x8x8xf32> to vector<8x8xf32>
    %93 = vector.shape_cast %90 : vector<8x8xf32> to vector<1x8x8xf32>
    tpu.vector_store %arg20[%c0_61, %c0_62, %c0_63], %93 {strides = array<i32>} : memref<1x8x8xf32, #tpu.memory_space<vmem>>, vector<1x8x8xf32>,
    %c0_64 = arith.constant 0 : index
    %c64_65 = arith.constant 64 : index
    %94 = vector.load %arg22[%c0_64, %c64_65] : memref<8x128xbf16, #tpu.memory_space<vmem>>, vector<8x32xbf16>
    %95 = arith.truncf %87 : vector<8x8xf32> to vector<8x8xbf16>
    %cst_66 = arith.constant dense<0.000000e+00> : vector<8x32xf32>
    %96 = tpu.matmul %95, %94, %cst_66 {dimension_numbers = #tpu.dot_dimension_numbers<[1], [0], [0], [1], [0, 0, 1, 1], [], []>} : vector<8x8xbf16>, vector<8x32xbf16>, vector<8x32xf32> -> vector<8x32xf32>
    %c0_67 = arith.constant 0 : index
    %c0_68 = arith.constant 0 : index
    %97 = vector.load %arg23[%c0_67, %c0_68] : memref<8x128xf32, #tpu.memory_space<vmem>>, vector<8x128xf32>
    %98 = arith.truncf %96 : vector<8x32xf32> to vector<8x32xbf16>
    %c64_69 = arith.constant 64 : index
    %c0_70 = arith.constant 0 : index
    %99 = vector.load %arg9[%c64_69, %c0_70] : memref<128x128xbf16, #tpu.memory_space<vmem>>, vector<32x128xbf16>
    %cst_71 = arith.constant dense<0.000000e+00> : vector<8x128xf32>
    %100 = tpu.matmul %98, %99, %cst_71 {dimension_numbers = #tpu.dot_dimension_numbers<[1], [0], [0], [1], [0, 0, 1, 1], [], []>} : vector<8x32xbf16>, vector<32x128xbf16>, vector<8x128xf32> -> vector<8x128xf32>
    %101 = arith.addf %97, %100 : vector<8x128xf32>
    %c0_72 = arith.constant 0 : index
    %c0_73 = arith.constant 0 : index
    %102 = vector.load %arg23[%c0_72, %c0_73] : memref<8x128xf32, #tpu.memory_space<vmem>>, vector<8x128xf32>
    tpu.vector_store %arg23[%c0_72, %c0_73], %101 {strides = array<i32>} : memref<8x128xf32, #tpu.memory_space<vmem>>, vector<8x128xf32>,
    %103 = vector.extract_strided_slice %14 {offsets = [0, 96], sizes = [8, 32], strides = [1, 1]} : vector<8x128xbf16> to vector<8x32xbf16>
    %c96 = arith.constant 96 : index
    %c0_74 = arith.constant 0 : index
    %104 = vector.load %arg21[%c96, %c0_74] : memref<128x8xbf16, #tpu.memory_space<vmem>>, vector<32x8xbf16>
    %cst_75 = arith.constant dense<0.000000e+00> : vector<8x8xf32>
    %105 = tpu.matmul %103, %104, %cst_75 {dimension_numbers = #tpu.dot_dimension_numbers<[1], [0], [0], [1], [0, 0, 1, 1], [], []>} : vector<8x32xbf16>, vector<32x8xbf16>, vector<8x8xf32> -> vector<8x8xf32>
    %cst_76 = arith.constant dense<0xFF800000> : vector<8xf32>
    %106 = vector.multi_reduction <maximumf>, %105, %cst_76 [1] : vector<8x8xf32> to vector<8xf32>
    %107 = vector.shape_cast %106 : vector<8xf32> to vector<8x1xf32>
    %108 = vector.broadcast %107 : vector<8x1xf32> to vector<8x8xf32>
    %109 = arith.subf %105, %108 : vector<8x8xf32>
    %110 = math.exp %109 : vector<8x8xf32>
    %cst_77 = arith.constant dense<0.000000e+00> : vector<8xf32>
    %111 = vector.multi_reduction <add>, %110, %cst_77 [1] : vector<8x8xf32> to vector<8xf32>
    %112 = vector.shape_cast %111 : vector<8xf32> to vector<8x1xf32>
    %113 = tpu.reciprocal %112 {approx = true} : vector<8x1xf32> -> vector<8x1xf32>
    %114 = vector.broadcast %113 : vector<8x1xf32> to vector<8x8xf32>
    %115 = arith.mulf %110, %114 : vector<8x8xf32>
    %c0_78 = arith.constant 0 : index
    %c0_79 = arith.constant 0 : index
    %c0_80 = arith.constant 0 : index
    %116 = vector.load %arg20[%c0_78, %c0_79, %c0_80] : memref<1x8x8xf32, #tpu.memory_space<vmem>>, vector<1x8x8xf32>
    %117 = vector.shape_cast %116 : vector<1x8x8xf32> to vector<8x8xf32>
    %118 = arith.addf %117, %115 : vector<8x8xf32>
    %c0_81 = arith.constant 0 : index
    %c0_82 = arith.constant 0 : index
    %c0_83 = arith.constant 0 : index
    %119 = vector.load %arg20[%c0_81, %c0_82, %c0_83] : memref<1x8x8xf32, #tpu.memory_space<vmem>>, vector<1x8x8xf32>
    %120 = vector.shape_cast %119 : vector<1x8x8xf32> to vector<8x8xf32>
    %121 = vector.shape_cast %118 : vector<8x8xf32> to vector<1x8x8xf32>
    tpu.vector_store %arg20[%c0_81, %c0_82, %c0_83], %121 {strides = array<i32>} : memref<1x8x8xf32, #tpu.memory_space<vmem>>, vector<1x8x8xf32>,
    %c0_84 = arith.constant 0 : index
    %c96_85 = arith.constant 96 : index
    %122 = vector.load %arg22[%c0_84, %c96_85] : memref<8x128xbf16, #tpu.memory_space<vmem>>, vector<8x32xbf16>
    %123 = arith.truncf %115 : vector<8x8xf32> to vector<8x8xbf16>
    %cst_86 = arith.constant dense<0.000000e+00> : vector<8x32xf32>
    %124 = tpu.matmul %123, %122, %cst_86 {dimension_numbers = #tpu.dot_dimension_numbers<[1], [0], [0], [1], [0, 0, 1, 1], [], []>} : vector<8x8xbf16>, vector<8x32xbf16>, vector<8x32xf32> -> vector<8x32xf32>
    %c0_87 = arith.constant 0 : index
    %c0_88 = arith.constant 0 : index
    %125 = vector.load %arg23[%c0_87, %c0_88] : memref<8x128xf32, #tpu.memory_space<vmem>>, vector<8x128xf32>
    %126 = arith.truncf %124 : vector<8x32xf32> to vector<8x32xbf16>
    %c96_89 = arith.constant 96 : index
    %c0_90 = arith.constant 0 : index
    %127 = vector.load %arg9[%c96_89, %c0_90] : memref<128x128xbf16, #tpu.memory_space<vmem>>, vector<32x128xbf16>
    %cst_91 = arith.constant dense<0.000000e+00> : vector<8x128xf32>
    %128 = tpu.matmul %126, %127, %cst_91 {dimension_numbers = #tpu.dot_dimension_numbers<[1], [0], [0], [1], [0, 0, 1, 1], [], []>} : vector<8x32xbf16>, vector<32x128xbf16>, vector<8x128xf32> -> vector<8x128xf32>
    %129 = arith.addf %125, %128 : vector<8x128xf32>
    %c0_92 = arith.constant 0 : index
    %c0_93 = arith.constant 0 : index
    %130 = vector.load %arg23[%c0_92, %c0_93] : memref<8x128xf32, #tpu.memory_space<vmem>>, vector<8x128xf32>
    tpu.vector_store %arg23[%c0_92, %c0_93], %129 {strides = array<i32>} : memref<8x128xf32, #tpu.memory_space<vmem>>, vector<8x128xf32>,
    %c0_94 = arith.constant 0 : index
    %c0_95 = arith.constant 0 : index
    %c0_96 = arith.constant 0 : index
    %131 = vector.load %arg20[%c0_94, %c0_95, %c0_96] : memref<1x8x8xf32, #tpu.memory_space<vmem>>, vector<1x8x8xf32>
    %cst_97 = arith.constant 2.500000e-01 : f32
    %132 = vector.broadcast %cst_97 : f32 to vector<1x8x8xf32>
    %133 = arith.mulf %131, %132 : vector<1x8x8xf32>
    %c0_98 = arith.constant 0 : index
    %c0_99 = arith.constant 0 : index
    %c0_100 = arith.constant 0 : index
    %134 = vector.load %arg20[%c0_98, %c0_99, %c0_100] : memref<1x8x8xf32, #tpu.memory_space<vmem>>, vector<1x8x8xf32>
    tpu.vector_store %arg20[%c0_98, %c0_99, %c0_100], %133 {strides = array<i32>} : memref<1x8x8xf32, #tpu.memory_space<vmem>>, vector<1x8x8xf32>,
    %c0_101 = arith.constant 0 : index
    %c0_102 = arith.constant 0 : index
    %135 = vector.load %arg23[%c0_101, %c0_102] : memref<8x128xf32, #tpu.memory_space<vmem>>, vector<8x128xf32>
    %c0_103 = arith.constant 0 : index
    %c0_104 = arith.constant 0 : index
    %136 = vector.load %arg10[%c0_103, %c0_104] : memref<1x128xf32, #tpu.memory_space<vmem>>, vector<1x128xf32>
    %137 = vector.broadcast %136 : vector<1x128xf32> to vector<8x128xf32>
    %138 = arith.addf %135, %137 : vector<8x128xf32>
    %139 = arith.addf %7, %138 : vector<8x128xf32>
    %c0_105 = arith.constant 0 : index
    %c0_106 = arith.constant 0 : index
    %140 = vector.load %arg15[%c0_105, %c0_106] : memref<1x128xf32, #tpu.memory_space<vmem>>, vector<1x128xf32>
    %c0_107 = arith.constant 0 : index
    %c0_108 = arith.constant 0 : index
    %141 = vector.load %arg16[%c0_107, %c0_108] : memref<1x128xf32, #tpu.memory_space<vmem>>, vector<1x128xf32>
    %cst_109 = arith.constant dense<0.000000e+00> : vector<8xf32>
    %142 = vector.multi_reduction <add>, %139, %cst_109 [1] : vector<8x128xf32> to vector<8xf32>
    %143 = vector.shape_cast %142 : vector<8xf32> to vector<8x1xf32>
    %cst_110 = arith.constant 1.280000e+02 : f32
    %144 = vector.broadcast %cst_110 : f32 to vector<8x1xf32>
    %145 = arith.divf %143, %144 : vector<8x1xf32>
    %146 = vector.broadcast %145 : vector<8x1xf32> to vector<8x128xf32>
    %147 = arith.subf %139, %146 : vector<8x128xf32>
    %148 = arith.mulf %147, %147 : vector<8x128xf32>
    %cst_111 = arith.constant dense<0.000000e+00> : vector<8xf32>
    %149 = vector.multi_reduction <add>, %148, %cst_111 [1] : vector<8x128xf32> to vector<8xf32>
    %150 = vector.shape_cast %149 : vector<8xf32> to vector<8x1xf32>
    %cst_112 = arith.constant 1.280000e+02 : f32
    %151 = vector.broadcast %cst_112 : f32 to vector<8x1xf32>
    %152 = arith.divf %150, %151 : vector<8x1xf32>
    %153 = vector.broadcast %145 : vector<8x1xf32> to vector<8x128xf32>
    %154 = arith.subf %139, %153 : vector<8x128xf32>
    %cst_113 = arith.constant 9.99999974E-6 : f32
    %155 = vector.broadcast %cst_113 : f32 to vector<8x1xf32>
    %156 = arith.addf %152, %155 : vector<8x1xf32>
    %157 = math.rsqrt %156 : vector<8x1xf32>
    %158 = vector.broadcast %157 : vector<8x1xf32> to vector<8x128xf32>
    %159 = arith.mulf %154, %158 : vector<8x128xf32>
    %160 = vector.broadcast %140 : vector<1x128xf32> to vector<8x128xf32>
    %161 = arith.mulf %159, %160 : vector<8x128xf32>
    %162 = vector.broadcast %141 : vector<1x128xf32> to vector<8x128xf32>
    %163 = arith.addf %161, %162 : vector<8x128xf32>
    %c0_114 = arith.constant 0 : index
    %c0_115 = arith.constant 0 : index
    %164 = vector.load %arg24[%c0_114, %c0_115] : memref<8x128xf32, #tpu.memory_space<vmem>>, vector<8x128xf32>
    tpu.vector_store %arg24[%c0_114, %c0_115], %163 {strides = array<i32>} : memref<8x128xf32, #tpu.memory_space<vmem>>, vector<8x128xf32>,
    %cst_116 = arith.constant 0.000000e+00 : f32
    %165 = vector.broadcast %cst_116 : f32 to vector<8x128xf32>
    %c0_117 = arith.constant 0 : index
    %c0_118 = arith.constant 0 : index
    %166 = vector.load %arg23[%c0_117, %c0_118] : memref<8x128xf32, #tpu.memory_space<vmem>>, vector<8x128xf32>
    tpu.vector_store %arg23[%c0_117, %c0_118], %165 {strides = array<i32>} : memref<8x128xf32, #tpu.memory_space<vmem>>, vector<8x128xf32>,
    %c0_119 = arith.constant 0 : index
    %c0_120 = arith.constant 0 : index
    %167 = vector.load %arg24[%c0_119, %c0_120] : memref<8x128xf32, #tpu.memory_space<vmem>>, vector<8x128xf32>
    %168 = arith.truncf %167 : vector<8x128xf32> to vector<8x128xbf16>
    %c0_121 = arith.constant 0 : index
    %c0_122 = arith.constant 0 : index
    %169 = vector.load %arg11[%c0_121, %c0_122] : memref<128x256xbf16, #tpu.memory_space<vmem>>, vector<128x256xbf16>
    %cst_123 = arith.constant dense<0.000000e+00> : vector<8x256xf32>
    %170 = tpu.matmul %168, %169, %cst_123 {dimension_numbers = #tpu.dot_dimension_numbers<[1], [0], [0], [1], [0, 0, 1, 1], [], []>} : vector<8x128xbf16>, vector<128x256xbf16>, vector<8x256xf32> -> vector<8x256xf32>
    %c0_124 = arith.constant 0 : index
    %c0_125 = arith.constant 0 : index
    %171 = vector.load %arg12[%c0_124, %c0_125] : memref<1x256xf32, #tpu.memory_space<vmem>>, vector<1x256xf32>
    %172 = vector.broadcast %171 : vector<1x256xf32> to vector<8x256xf32>
    %173 = arith.addf %170, %172 : vector<8x256xf32>
    %cst_126 = arith.constant 0.000000e+00 : f32
    %174 = vector.broadcast %cst_126 : f32 to vector<8x256xf32>
    %175 = arith.maximumf %173, %174 : vector<8x256xf32>
    %c0_127 = arith.constant 0 : index
    %c0_128 = arith.constant 0 : index
    %176 = vector.load %arg23[%c0_127, %c0_128] : memref<8x128xf32, #tpu.memory_space<vmem>>, vector<8x128xf32>
    %177 = arith.truncf %175 : vector<8x256xf32> to vector<8x256xbf16>
    %c0_129 = arith.constant 0 : index
    %c0_130 = arith.constant 0 : index
    %178 = vector.load %arg13[%c0_129, %c0_130] : memref<256x128xbf16, #tpu.memory_space<vmem>>, vector<256x128xbf16>
    %cst_131 = arith.constant dense<0.000000e+00> : vector<8x128xf32>
    %179 = tpu.matmul %177, %178, %cst_131 {dimension_numbers = #tpu.dot_dimension_numbers<[1], [0], [0], [1], [0, 0, 1, 1], [], []>} : vector<8x256xbf16>, vector<256x128xbf16>, vector<8x128xf32> -> vector<8x128xf32>
    %180 = arith.addf %176, %179 : vector<8x128xf32>
    %c0_132 = arith.constant 0 : index
    %c0_133 = arith.constant 0 : index
    %181 = vector.load %arg23[%c0_132, %c0_133] : memref<8x128xf32, #tpu.memory_space<vmem>>, vector<8x128xf32>
    tpu.vector_store %arg23[%c0_132, %c0_133], %180 {strides = array<i32>} : memref<8x128xf32, #tpu.memory_space<vmem>>, vector<8x128xf32>,
    %c0_134 = arith.constant 0 : index
    %c0_135 = arith.constant 0 : index
    %182 = vector.load %arg23[%c0_134, %c0_135] : memref<8x128xf32, #tpu.memory_space<vmem>>, vector<8x128xf32>
    %c0_136 = arith.constant 0 : index
    %c0_137 = arith.constant 0 : index
    %183 = vector.load %arg14[%c0_136, %c0_137] : memref<1x128xf32, #tpu.memory_space<vmem>>, vector<1x128xf32>
    %184 = vector.broadcast %183 : vector<1x128xf32> to vector<8x128xf32>
    %185 = arith.addf %182, %184 : vector<8x128xf32>
    %c0_138 = arith.constant 0 : index
    %c0_139 = arith.constant 0 : index
    %186 = vector.load %arg24[%c0_138, %c0_139] : memref<8x128xf32, #tpu.memory_space<vmem>>, vector<8x128xf32>
    %187 = arith.addf %186, %185 : vector<8x128xf32>
    %c0_140 = arith.constant 0 : index
    %c0_141 = arith.constant 0 : index
    %188 = vector.load %arg17[%c0_140, %c0_141] : memref<1x128xf32, #tpu.memory_space<vmem>>, vector<1x128xf32>
    %c0_142 = arith.constant 0 : index
    %c0_143 = arith.constant 0 : index
    %189 = vector.load %arg18[%c0_142, %c0_143] : memref<1x128xf32, #tpu.memory_space<vmem>>, vector<1x128xf32>
    %cst_144 = arith.constant dense<0.000000e+00> : vector<8xf32>
    %190 = vector.multi_reduction <add>, %187, %cst_144 [1] : vector<8x128xf32> to vector<8xf32>
    %191 = vector.shape_cast %190 : vector<8xf32> to vector<8x1xf32>
    %cst_145 = arith.constant 1.280000e+02 : f32
    %192 = vector.broadcast %cst_145 : f32 to vector<8x1xf32>
    %193 = arith.divf %191, %192 : vector<8x1xf32>
    %194 = vector.broadcast %193 : vector<8x1xf32> to vector<8x128xf32>
    %195 = arith.subf %187, %194 : vector<8x128xf32>
    %196 = arith.mulf %195, %195 : vector<8x128xf32>
    %cst_146 = arith.constant dense<0.000000e+00> : vector<8xf32>
    %197 = vector.multi_reduction <add>, %196, %cst_146 [1] : vector<8x128xf32> to vector<8xf32>
    %198 = vector.shape_cast %197 : vector<8xf32> to vector<8x1xf32>
    %cst_147 = arith.constant 1.280000e+02 : f32
    %199 = vector.broadcast %cst_147 : f32 to vector<8x1xf32>
    %200 = arith.divf %198, %199 : vector<8x1xf32>
    %201 = vector.broadcast %193 : vector<8x1xf32> to vector<8x128xf32>
    %202 = arith.subf %187, %201 : vector<8x128xf32>
    %cst_148 = arith.constant 9.99999974E-6 : f32
    %203 = vector.broadcast %cst_148 : f32 to vector<8x1xf32>
    %204 = arith.addf %200, %203 : vector<8x1xf32>
    %205 = math.rsqrt %204 : vector<8x1xf32>
    %206 = vector.broadcast %205 : vector<8x1xf32> to vector<8x128xf32>
    %207 = arith.mulf %202, %206 : vector<8x128xf32>
    %208 = vector.broadcast %188 : vector<1x128xf32> to vector<8x128xf32>
    %209 = arith.mulf %207, %208 : vector<8x128xf32>
    %210 = vector.broadcast %189 : vector<1x128xf32> to vector<8x128xf32>
    %211 = arith.addf %209, %210 : vector<8x128xf32>
    %c0_149 = arith.constant 0 : index
    %c0_150 = arith.constant 0 : index
    %c0_151 = arith.constant 0 : index
    %212 = vector.load %arg19[%c0_149, %c0_150, %c0_151] : memref<1x8x128xf32, #tpu.memory_space<vmem>>, vector<1x8x128xf32>
    %213 = vector.shape_cast %212 : vector<1x8x128xf32> to vector<8x128xf32>
    %214 = vector.shape_cast %211 : vector<8x128xf32> to vector<1x8x128xf32>
    tpu.vector_store %arg19[%c0_149, %c0_150, %c0_151], %214 {strides = array<i32>} : memref<1x8x128xf32, #tpu.memory_space<vmem>>, vector<1x8x128xf32>,
    return
  }
  func.func @transform_0(%arg0: i32, %arg1: i32) -> (i32, i32, i32) {
    %c0_i32 = arith.constant 0 : i32
    %c0_i32_0 = arith.constant 0 : i32
    %c0_i32_1 = arith.constant 0 : i32
    return %arg0, %c0_i32, %c0_i32_0 : i32, i32, i32
  }
  func.func @transform_1(%arg0: i32, %arg1: i32) -> (i32, i32) {
    %c0_i32 = arith.constant 0 : i32
    %c0_i32_0 = arith.constant 0 : i32
    %c0_i32_1 = arith.constant 0 : i32
    return %c0_i32, %c0_i32_0 : i32, i32
  }
  func.func @transform_2(%arg0: i32, %arg1: i32) -> (i32, i32) {
    %c0_i32 = arith.constant 0 : i32
    %c0_i32_0 = arith.constant 0 : i32
    %c0_i32_1 = arith.constant 0 : i32
    return %c0_i32, %c0_i32_0 : i32, i32
  }
  func.func @transform_3(%arg0: i32, %arg1: i32) -> (i32, i32) {
    %c0_i32 = arith.constant 0 : i32
    %c0_i32_0 = arith.constant 0 : i32
    %c0_i32_1 = arith.constant 0 : i32
    return %c0_i32, %c0_i32_0 : i32, i32
  }
  func.func @transform_4(%arg0: i32, %arg1: i32) -> (i32, i32) {
    %c0_i32 = arith.constant 0 : i32
    %c0_i32_0 = arith.constant 0 : i32
    %c0_i32_1 = arith.constant 0 : i32
    return %c0_i32, %c0_i32_0 : i32, i32
  }
  func.func @transform_5(%arg0: i32, %arg1: i32) -> (i32, i32) {
    %c0_i32 = arith.constant 0 : i32
    %c0_i32_0 = arith.constant 0 : i32
    %c0_i32_1 = arith.constant 0 : i32
    return %c0_i32, %c0_i32_0 : i32, i32
  }
  func.func @transform_6(%arg0: i32, %arg1: i32) -> (i32, i32) {
    %c0_i32 = arith.constant 0 : i32
    %c0_i32_0 = arith.constant 0 : i32
    %c0_i32_1 = arith.constant 0 : i32
    return %c0_i32, %c0_i32_0 : i32, i32
  }
  func.func @transform_7(%arg0: i32, %arg1: i32) -> (i32, i32) {
    %c0_i32 = arith.constant 0 : i32
    %c0_i32_0 = arith.constant 0 : i32
    %c0_i32_1 = arith.constant 0 : i32
    return %c0_i32, %c0_i32_0 : i32, i32
  }
  func.func @transform_8(%arg0: i32, %arg1: i32) -> (i32, i32) {
    %c0_i32 = arith.constant 0 : i32
    %c0_i32_0 = arith.constant 0 : i32
    %c0_i32_1 = arith.constant 0 : i32
    return %c0_i32, %c0_i32_0 : i32, i32
  }
  func.func @transform_9(%arg0: i32, %arg1: i32) -> (i32, i32) {
    %c0_i32 = arith.constant 0 : i32
    %c0_i32_0 = arith.constant 0 : i32
    %c0_i32_1 = arith.constant 0 : i32
    return %c0_i32, %c0_i32_0 : i32, i32
  }
  func.func @transform_10(%arg0: i32, %arg1: i32) -> (i32, i32) {
    %c0_i32 = arith.constant 0 : i32
    %c0_i32_0 = arith.constant 0 : i32
    %c0_i32_1 = arith.constant 0 : i32
    return %c0_i32, %c0_i32_0 : i32, i32
  }
  func.func @transform_11(%arg0: i32, %arg1: i32) -> (i32, i32) {
    %c0_i32 = arith.constant 0 : i32
    %c0_i32_0 = arith.constant 0 : i32
    %c0_i32_1 = arith.constant 0 : i32
    return %c0_i32, %c0_i32_0 : i32, i32
  }
  func.func @transform_12(%arg0: i32, %arg1: i32) -> (i32, i32) {
    %c0_i32 = arith.constant 0 : i32
    %c0_i32_0 = arith.constant 0 : i32
    %c0_i32_1 = arith.constant 0 : i32
    return %c0_i32, %c0_i32_0 : i32, i32
  }
  func.func @transform_13(%arg0: i32, %arg1: i32) -> (i32, i32) {
    %c0_i32 = arith.constant 0 : i32
    %c0_i32_0 = arith.constant 0 : i32
    %c0_i32_1 = arith.constant 0 : i32
    return %c0_i32, %c0_i32_0 : i32, i32
  }
  func.func @transform_14(%arg0: i32, %arg1: i32) -> (i32, i32) {
    %c0_i32 = arith.constant 0 : i32
    %c0_i32_0 = arith.constant 0 : i32
    %c0_i32_1 = arith.constant 0 : i32
    return %c0_i32, %c0_i32_0 : i32, i32
  }
  func.func @transform_15(%arg0: i32, %arg1: i32) -> (i32, i32) {
    %c0_i32 = arith.constant 0 : i32
    %c0_i32_0 = arith.constant 0 : i32
    %c0_i32_1 = arith.constant 0 : i32
    return %c0_i32, %c0_i32_0 : i32, i32
  }
  func.func @transform_16(%arg0: i32, %arg1: i32) -> (i32, i32) {
    %c0_i32 = arith.constant 0 : i32
    %c0_i32_0 = arith.constant 0 : i32
    %c0_i32_1 = arith.constant 0 : i32
    return %c0_i32, %c0_i32_0 : i32, i32
  }
  func.func @transform_17(%arg0: i32, %arg1: i32) -> (i32, i32, i32) {
    %c0_i32 = arith.constant 0 : i32
    %c0_i32_0 = arith.constant 0 : i32
    return %arg0, %arg1, %c0_i32 : i32, i32, i32
  }
  func.func @transform_18(%arg0: i32, %arg1: i32) -> (i32, i32, i32) {
    %c0_i32 = arith.constant 0 : i32
    %c0_i32_0 = arith.constant 0 : i32
    return %arg0, %arg1, %c0_i32 : i32, i32, i32
  }
}

</mosaic_0001>

<llo_original>
// kernel: tpu_custom_call.1
$region0: #{tpu_custom_call.1}
  #allocation0 [shape = 'u32[]', space=smem, size = 0x4, offset = 0x4, fixed_abs, tag = 'smem constant byte address 0x4 - core index']
  #allocation1 [shape = 'u32[144,128]{1,0:T(1,128)}', space=vmem, size = 0x12000, scoped, tag = 'internal scratch']
  #allocation2 [shape = 'bf16[128,8]{1,0:T(16,128)(2,1)}', space=vmem, size = 0x8000, scoped, tag = 'scratch operand']
  #allocation3 [shape = 'bf16[8,128]{1,0:T(8,128)(2,1)}', space=vmem, size = 0x800, scoped, tag = 'scratch operand']
  #allocation4 [shape = 'f32[8,128]{1,0:T(8,128)}', space=vmem, size = 0x1000, scoped, tag = 'scratch operand']
  #allocation5 [shape = 'f32[8,128]{1,0:T(8,128)}', space=vmem, size = 0x1000, scoped, tag = 'scratch operand']
  %s0 = inlined_call_operand.hbm [shape: f32[2,8,128], index: 0, kind: input, shape index: {}]
  %s1 = inlined_call_operand.hbm [shape: bf16[128,128], index: 1, kind: input, shape index: {}]
  %s2 = inlined_call_operand.hbm [shape: f32[1,128], index: 2, kind: input, shape index: {}]
  %s3 = inlined_call_operand.hbm [shape: bf16[128,128], index: 3, kind: input, shape index: {}]
  %s4 = inlined_call_operand.hbm [shape: f32[1,128], index: 4, kind: input, shape index: {}]
  %s5 = inlined_call_operand.hbm [shape: bf16[128,128], index: 5, kind: input, shape index: {}]
  %s6 = inlined_call_operand.hbm [shape: f32[1,128], index: 6, kind: input, shape index: {}]
  %s7 = inlined_call_operand.hbm [shape: bf16[128,128], index: 7, kind: input, shape index: {}]
  %s8 = inlined_call_operand.hbm [shape: f32[1,128], index: 8, kind: input, shape index: {}]
  %s9 = inlined_call_operand.hbm [shape: bf16[128,256], index: 9, kind: input, shape index: {}]
  %s10 = inlined_call_operand.hbm [shape: f32[1,256], index: 10, kind: input, shape index: {}]
  %s11 = inlined_call_operand.hbm [shape: bf16[256,128], index: 11, kind: input, shape index: {}]
  %s12 = inlined_call_operand.hbm [shape: f32[1,128], index: 12, kind: input, shape index: {}]
  %s13 = inlined_call_operand.hbm [shape: f32[1,128], index: 13, kind: input, shape index: {}]
  %s14 = inlined_call_operand.hbm [shape: f32[1,128], index: 14, kind: input, shape index: {}]
  %s15 = inlined_call_operand.hbm [shape: f32[1,128], index: 15, kind: input, shape index: {}]
  %s16 = inlined_call_operand.hbm [shape: f32[1,128], index: 16, kind: input, shape index: {}]
  %s17 = inlined_call_operand.hbm [shape: f32[2,8,128], index: 17, kind: output, shape index: {0}]
  %s18 = inlined_call_operand.hbm [shape: f32[2,8,8], index: 18, kind: output, shape index: {1}]
  %19 = xla_tuple %s17, %s18
  %s20 = sld [smem:[#allocation0]]
  $region181: #{tpu_custom_call.1} parent=0
    _
  %s22 = ssub.s32 1, %s20
  %s23 = scalar_select 0, %s22, %s20
  $region1: #{tpu_custom_call.1} parent=0
    #allocation6 [shape = 'u8[8192]{0}', space=vmem, size = 0x2000, scoped, tag = 'input window, operand 0']
    #allocation7 [shape = 's32[2]{0}', space=sflag, size = 0x8, scoped, tag = 'scoped memory for tpu_custom_call.1']
    #allocation8 [shape = 's32[2]{0}', space=sflag, size = 0x8, scoped, tag = 'scoped memory for tpu_custom_call.1']
    #allocation9 [shape = 'u8[32768]{0}', space=vmem, size = 0x8000, scoped, tag = 'input window, operand 1, single buffered']
    #allocation10 [shape = 's32[1]{0}', space=sflag, size = 0x4, scoped, tag = 'scoped memory for tpu_custom_call.1']
    #allocation11 [shape = 'u8[512]{0}', space=vmem, size = 0x400, scoped, tag = 'input window, operand 2, single buffered']
    #allocation12 [shape = 'u8[32768]{0}', space=vmem, size = 0x8000, scoped, tag = 'input window, operand 3, single buffered']
    #allocation13 [shape = 's32[1]{0}', space=sflag, size = 0x4, scoped, tag = 'scoped memory for tpu_custom_call.1']
    #allocation14 [shape = 'u8[512]{0}', space=vmem, size = 0x400, scoped, tag = 'input window, operand 4, single buffered']
    #allocation15 [shape = 'u8[32768]{0}', space=vmem, size = 0x8000, scoped, tag = 'input window, operand 5, single buffered']
    #allocation16 [shape = 's32[1]{0}', space=sflag, size = 0x4, scoped, tag = 'scoped memory for tpu_custom_call.1']
    #allocation17 [shape = 'u8[512]{0}', space=vmem, size = 0x400, scoped, tag = 'input window, operand 6, single buffered']
    #allocation18 [shape = 'u8[32768]{0}', space=vmem, size = 0x8000, scoped, tag = 'input window, operand 7, single buffered']
    #allocation19 [shape = 's32[1]{0}', space=sflag, size = 0x4, scoped, tag = 'scoped memory for tpu_custom_call.1']
    #allocation20 [shape = 'u8[512]{0}', space=vmem, size = 0x400, scoped, tag = 'input window, operand 8, single buffered']
    #allocation21 [shape = 'u8[65536]{0}', space=vmem, size = 0x10000, scoped, tag = 'input window, operand 9, single buffered']
    #allocation22 [shape = 's32[1]{0}', space=sflag, size = 0x4, scoped, tag = 'scoped memory for tpu_custom_call.1']
    #allocation23 [shape = 'u8[1024]{0}', space=vmem, size = 0x400, scoped, tag = 'input window, operand 10, single buffered']
    #allocation24 [shape = 'u8[65536]{0}', space=vmem, size = 0x10000, scoped, tag = 'input window, operand 11, single buffered']
    #allocation25 [shape = 's32[1]{0}', space=sflag, size = 0x4, scoped, tag = 'scoped memory for tpu_custom_call.1']
    #allocation26 [shape = 'u8[512]{0}', space=vmem, size = 0x400, scoped, tag = 'input window, operand 12, single buffered']
    #allocation27 [shape = 'u8[512]{0}', space=vmem, size = 0x400, scoped, tag = 'input window, operand 13, single buffered']
    #allocation28 [shape = 's32[1]{0}', space=sflag, size = 0x4, scoped, tag = 'scoped memory for tpu_custom_call.1']
    #allocation29 [shape = 'u8[512]{0}', space=vmem, size = 0x400, scoped, tag = 'input window, operand 14, single buffered']
    #allocation30 [shape = 'u8[512]{0}', space=vmem, size = 0x400, scoped, tag = 'input window, operand 15, single buffered']
    #allocation31 [shape = 's32[1]{0}', space=sflag, size = 0x4, scoped, tag = 'scoped memory for tpu_custom_call.1']
    #allocation32 [shape = 'u8[512]{0}', space=vmem, size = 0x400, scoped, tag = 'input window, operand 16, single buffered']
    #allocation33 [shape = 'u8[8192]{0}', space=vmem, size = 0x2000, scoped, tag = 'output window, operand 0']
    #allocation34 [shape = 'u8[8192]{0}', space=vmem, size = 0x2000, scoped, tag = 'output window, operand 1']
    #allocation35 [shape = 's32[2]{0}', space=sflag, size = 0x8, scoped, tag = 'scoped memory for tpu_custom_call.1']
    %24 = vsyncpa [#allocation7], 0
    %s25 = scalar_lea.sflag [#allocation7], 1
    %26 = vsyncpa %s25, 0
    %27 = vsyncpa [#allocation10], 0
    %28 = vsyncpa [#allocation13], 0
    %29 = vsyncpa [#allocation16], 0
    %30 = vsyncpa [#allocation19], 0
    %31 = vsyncpa [#allocation22], 0
    %32 = vsyncpa [#allocation25], 0
    %33 = vsyncpa [#allocation28], 0
    %34 = vsyncpa [#allocation31], 0
    %35 = vsyncpa [#allocation8], 0
    %s36 = scalar_lea.sflag [#allocation8], 1
    %37 = vsyncpa %s36, 0
    %38 = vsyncpa [#allocation35], 0
    %s39 = scalar_lea.sflag [#allocation35], 1
    %40 = vsyncpa %s39, 0
    loop: start=0, step=1, limit=4
    $region2: #{tpu_custom_call.1} parent=1 // loop_pre_header
      _
    $region3: #{tpu_custom_call.1} parent=1 // loop_header
      %s42 = sphi 0, %s46
      %p43 = scmp.ge.s32.totalorder %s42, 4
      %s49 = sphi 0, %s61
      %s50 = sphi 0, %s57
      %s51 = sphi 0, %s49
      %s52 = sphi 0, %s50
      %s53 = sphi 0, %s51
      %s54 = sphi 0, %s52
      %s64 = sphi 0, %s66
      %s67 = sphi 0, %s64
      %s68 = sphi 0, %s67
      %s84 = sphi 0, %s68
      %s88 = sphi 0, %s88
      %s90 = sphi 0, %s88
      %s91 = sphi 0, %s90
      %s105 = sphi 0, %s91
      %s109 = sphi 0, %s109
      %s111 = sphi 0, %s109
      %s112 = sphi 0, %s111
      %s126 = sphi 0, %s112
      %s130 = sphi 0, %s130
      %s132 = sphi 0, %s130
      %s133 = sphi 0, %s132
      %s147 = sphi 0, %s133
      %s151 = sphi 0, %s151
      %s153 = sphi 0, %s151
      %s154 = sphi 0, %s153
      %s168 = sphi 0, %s154
      %s172 = sphi 0, %s172
      %s174 = sphi 0, %s172
      %s175 = sphi 0, %s174
      %s189 = sphi 0, %s175
      %s193 = sphi 0, %s193
      %s195 = sphi 0, %s193
      %s196 = sphi 0, %s195
      %s210 = sphi 0, %s196
      %s214 = sphi 0, %s214
      %s216 = sphi 0, %s214
      %s217 = sphi 0, %s216
      %s231 = sphi 0, %s217
      %s235 = sphi 0, %s235
      %s237 = sphi 0, %s235
      %s238 = sphi 0, %s237
      %s252 = sphi 0, %s238
      %s256 = sphi 0, %s256
      %s258 = sphi 0, %s256
      %s259 = sphi 0, %s258
      %s273 = sphi 0, %s259
      %s277 = sphi 0, %s277
      %s279 = sphi 0, %s277
      %s280 = sphi 0, %s279
      %s294 = sphi 0, %s280
      %s298 = sphi 0, %s298
      %s300 = sphi 0, %s298
      %s301 = sphi 0, %s300
      %s315 = sphi 0, %s301
      %s319 = sphi 0, %s319
      %s321 = sphi 0, %s319
      %s322 = sphi 0, %s321
      %s336 = sphi 0, %s322
      %s340 = sphi 0, %s340
      %s342 = sphi 0, %s340
      %s343 = sphi 0, %s342
      %s357 = sphi 0, %s343
      %s361 = sphi 0, %s361
      %s363 = sphi 0, %s361
      %s364 = sphi 0, %s363
      %s378 = sphi 0, %s364
      %s382 = sphi 0, %s382
      %s384 = sphi 0, %s382
      %s385 = sphi 0, %s384
      %s399 = sphi 0, %s385
      %s403 = sphi 0, %s403
      %s405 = sphi 0, %s403
      %s406 = sphi 0, %s405
      %s420 = sphi 0, %s406
      %s428 = sphi 0, %s430
      %s431 = sphi 0, %s428
      %s432 = sphi 0, %s431
      %s448 = sphi 0, %s432
      %s456 = sphi 0, %s458
      %s459 = sphi 0, %s456
      %s460 = sphi 0, %s459
      %s476 = sphi 0, %s460
    $region4: #{tpu_custom_call.1} parent=1 // loop_header_branch
      %45 = sbr.rel (%p43) target = $region8
    $region5: #{tpu_custom_call.1} parent=1 // loop_body
      %s47 = ssub.s32 %s42, 1
      %s48 = ssub.s32 %s42, 2
      %s55 = sadd.s32 1, %s50
      %p56 = scmp.ge.s32.totalorder %s55, 1
      %s57 = scalar_select %p56, 0, %s55
      %s58 = sadd.s32 1, %s49
      %s59 = scalar_select %p56, %s58, %s49
      %p60 = scmp.ge.s32.totalorder %s59, 2
      %s61 = scalar_select %p60, 0, %s59
      %s62 = ssub.s32 %s49, %s61
      %p63 = scmp.eq.s32.totalorder %s62, 0
      %s65 = sadd.s32 %s64, 1
      %s66 = scalar_select %p63, %s64, %s65
      %p69 = pneg %p63
      %p70 = scmp.eq.s32.totalorder %s42, 1
      %p71 = por %p69, %p70
      %p72 = scmp.ne.s32.totalorder %s64, %s67
      %p73 = scmp.eq.s32.totalorder %s42, 0
      %p74 = por %p72, %p73
      %p75 = scmp.ne.s32.totalorder %s64, %s67
      %p76 = scmp.eq.s32.totalorder %s47, 1
      %p77 = por %p75, %p76
      %p78 = scmp.ne.s32.totalorder %s67, %s68
      %p79 = scmp.eq.s32.totalorder %s47, 0
      %p80 = por %p78, %p79
      %p81 = scmp.ne.s32.totalorder %s67, %s68
      %p82 = scmp.eq.s32.totalorder %s48, 1
      %p83 = por %p81, %p82
      %p85 = scmp.ne.s32.totalorder %s68, %s84
      %p86 = scmp.eq.s32.totalorder %s48, 0
      %p87 = por %p85, %p86
      %s89 = sadd.s32 %s88, 1
      %p92 = scmp.eq.s32.totalorder %s42, 1
      %p93 = scmp.ne.s32.totalorder %s88, %s90
      %p94 = scmp.eq.s32.totalorder %s42, 0
      %p95 = por %p93, %p94
      %p96 = scmp.ne.s32.totalorder %s88, %s90
      %p97 = scmp.eq.s32.totalorder %s47, 1
      %p98 = por %p96, %p97
      %p99 = scmp.ne.s32.totalorder %s90, %s91
      %p100 = scmp.eq.s32.totalorder %s47, 0
      %p101 = por %p99, %p100
      %p102 = scmp.ne.s32.totalorder %s90, %s91
      %p103 = scmp.eq.s32.totalorder %s48, 1
      %p104 = por %p102, %p103
      %p106 = scmp.ne.s32.totalorder %s91, %s105
      %p107 = scmp.eq.s32.totalorder %s48, 0
      %p108 = por %p106, %p107
      %s110 = sadd.s32 %s109, 1
      %p113 = scmp.eq.s32.totalorder %s42, 1
      %p114 = scmp.ne.s32.totalorder %s109, %s111
      %p115 = scmp.eq.s32.totalorder %s42, 0
      %p116 = por %p114, %p115
      %p117 = scmp.ne.s32.totalorder %s109, %s111
      %p118 = scmp.eq.s32.totalorder %s47, 1
      %p119 = por %p117, %p118
      %p120 = scmp.ne.s32.totalorder %s111, %s112
      %p121 = scmp.eq.s32.totalorder %s47, 0
      %p122 = por %p120, %p121
      %p123 = scmp.ne.s32.totalorder %s111, %s112
      %p124 = scmp.eq.s32.totalorder %s48, 1
      %p125 = por %p123, %p124
      %p127 = scmp.ne.s32.totalorder %s112, %s126
      %p128 = scmp.eq.s32.totalorder %s48, 0
      %p129 = por %p127, %p128
      %s131 = sadd.s32 %s130, 1
      %p134 = scmp.eq.s32.totalorder %s42, 1
      %p135 = scmp.ne.s32.totalorder %s130, %s132
      %p136 = scmp.eq.s32.totalorder %s42, 0
      %p137 = por %p135, %p136
      %p138 = scmp.ne.s32.totalorder %s130, %s132
      %p139 = scmp.eq.s32.totalorder %s47, 1
      %p140 = por %p138, %p139
      %p141 = scmp.ne.s32.totalorder %s132, %s133
      %p142 = scmp.eq.s32.totalorder %s47, 0
      %p143 = por %p141, %p142
      %p144 = scmp.ne.s32.totalorder %s132, %s133
      %p145 = scmp.eq.s32.totalorder %s48, 1
      %p146 = por %p144, %p145
      %p148 = scmp.ne.s32.totalorder %s133, %s147
      %p149 = scmp.eq.s32.totalorder %s48, 0
      %p150 = por %p148, %p149
      %s152 = sadd.s32 %s151, 1
      %p155 = scmp.eq.s32.totalorder %s42, 1
      %p156 = scmp.ne.s32.totalorder %s151, %s153
      %p157 = scmp.eq.s32.totalorder %s42, 0
      %p158 = por %p156, %p157
      %p159 = scmp.ne.s32.totalorder %s151, %s153
      %p160 = scmp.eq.s32.totalorder %s47, 1
      %p161 = por %p159, %p160
      %p162 = scmp.ne.s32.totalorder %s153, %s154
      %p163 = scmp.eq.s32.totalorder %s47, 0
      %p164 = por %p162, %p163
      %p165 = scmp.ne.s32.totalorder %s153, %s154
      %p166 = scmp.eq.s32.totalorder %s48, 1
      %p167 = por %p165, %p166
      %p169 = scmp.ne.s32.totalorder %s154, %s168
      %p170 = scmp.eq.s32.totalorder %s48, 0
      %p171 = por %p169, %p170
      %s173 = sadd.s32 %s172, 1
      %p176 = scmp.eq.s32.totalorder %s42, 1
      %p177 = scmp.ne.s32.totalorder %s172, %s174
      %p178 = scmp.eq.s32.totalorder %s42, 0
      %p179 = por %p177, %p178
      %p180 = scmp.ne.s32.totalorder %s172, %s174
      %p181 = scmp.eq.s32.totalorder %s47, 1
      %p182 = por %p180, %p181
      %p183 = scmp.ne.s32.totalorder %s174, %s175
      %p184 = scmp.eq.s32.totalorder %s47, 0
      %p185 = por %p183, %p184
      %p186 = scmp.ne.s32.totalorder %s174, %s175
      %p187 = scmp.eq.s32.totalorder %s48, 1
      %p188 = por %p186, %p187
      %p190 = scmp.ne.s32.totalorder %s175, %s189
      %p191 = scmp.eq.s32.totalorder %s48, 0
      %p192 = por %p190, %p191
      %s194 = sadd.s32 %s193, 1
      %p197 = scmp.eq.s32.totalorder %s42, 1
      %p198 = scmp.ne.s32.totalorder %s193, %s195
      %p199 = scmp.eq.s32.totalorder %s42, 0
      %p200 = por %p198, %p199
      %p201 = scmp.ne.s32.totalorder %s193, %s195
      %p202 = scmp.eq.s32.totalorder %s47, 1
      %p203 = por %p201, %p202
      %p204 = scmp.ne.s32.totalorder %s195, %s196
      %p205 = scmp.eq.s32.totalorder %s47, 0
      %p206 = por %p204, %p205
      %p207 = scmp.ne.s32.totalorder %s195, %s196
      %p208 = scmp.eq.s32.totalorder %s48, 1
      %p209 = por %p207, %p208
      %p211 = scmp.ne.s32.totalorder %s196, %s210
      %p212 = scmp.eq.s32.totalorder %s48, 0
      %p213 = por %p211, %p212
      %s215 = sadd.s32 %s214, 1
      %p218 = scmp.eq.s32.totalorder %s42, 1
      %p219 = scmp.ne.s32.totalorder %s214, %s216
      %p220 = scmp.eq.s32.totalorder %s42, 0
      %p221 = por %p219, %p220
      %p222 = scmp.ne.s32.totalorder %s214, %s216
      %p223 = scmp.eq.s32.totalorder %s47, 1
      %p224 = por %p222, %p223
      %p225 = scmp.ne.s32.totalorder %s216, %s217
      %p226 = scmp.eq.s32.totalorder %s47, 0
      %p227 = por %p225, %p226
      %p228 = scmp.ne.s32.totalorder %s216, %s217
      %p229 = scmp.eq.s32.totalorder %s48, 1
      %p230 = por %p228, %p229
      %p232 = scmp.ne.s32.totalorder %s217, %s231
      %p233 = scmp.eq.s32.totalorder %s48, 0
      %p234 = por %p232, %p233
      %s236 = sadd.s32 %s235, 1
      %p239 = scmp.eq.s32.totalorder %s42, 1
      %p240 = scmp.ne.s32.totalorder %s235, %s237
      %p241 = scmp.eq.s32.totalorder %s42, 0
      %p242 = por %p240, %p241
      %p243 = scmp.ne.s32.totalorder %s235, %s237
      %p244 = scmp.eq.s32.totalorder %s47, 1
      %p245 = por %p243, %p244
      %p246 = scmp.ne.s32.totalorder %s237, %s238
      %p247 = scmp.eq.s32.totalorder %s47, 0
      %p248 = por %p246, %p247
      %p249 = scmp.ne.s32.totalorder %s237, %s238
      %p250 = scmp.eq.s32.totalorder %s48, 1
      %p251 = por %p249, %p250
      %p253 = scmp.ne.s32.totalorder %s238, %s252
      %p254 = scmp.eq.s32.totalorder %s48, 0
      %p255 = por %p253, %p254
      %s257 = sadd.s32 %s256, 1
      %p260 = scmp.eq.s32.totalorder %s42, 1
      %p261 = scmp.ne.s32.totalorder %s256, %s258
      %p262 = scmp.eq.s32.totalorder %s42, 0
      %p263 = por %p261, %p262
      %p264 = scmp.ne.s32.totalorder %s256, %s258
      %p265 = scmp.eq.s32.totalorder %s47, 1
      %p266 = por %p264, %p265
      %p267 = scmp.ne.s32.totalorder %s258, %s259
      %p268 = scmp.eq.s32.totalorder %s47, 0
      %p269 = por %p267, %p268
      %p270 = scmp.ne.s32.totalorder %s258, %s259
      %p271 = scmp.eq.s32.totalorder %s48, 1
      %p272 = por %p270, %p271
      %p274 = scmp.ne.s32.totalorder %s259, %s273
      %p275 = scmp.eq.s32.totalorder %s48, 0
      %p276 = por %p274, %p275
      %s278 = sadd.s32 %s277, 1
      %p281 = scmp.eq.s32.totalorder %s42, 1
      %p282 = scmp.ne.s32.totalorder %s277, %s279
      %p283 = scmp.eq.s32.totalorder %s42, 0
      %p284 = por %p282, %p283
      %p285 = scmp.ne.s32.totalorder %s277, %s279
      %p286 = scmp.eq.s32.totalorder %s47, 1
      %p287 = por %p285, %p286
      %p288 = scmp.ne.s32.totalorder %s279, %s280
      %p289 = scmp.eq.s32.totalorder %s47, 0
      %p290 = por %p288, %p289
      %p291 = scmp.ne.s32.totalorder %s279, %s280
      %p292 = scmp.eq.s32.totalorder %s48, 1
      %p293 = por %p291, %p292
      %p295 = scmp.ne.s32.totalorder %s280, %s294
      %p296 = scmp.eq.s32.totalorder %s48, 0
      %p297 = por %p295, %p296
      %s299 = sadd.s32 %s298, 1
      %p302 = scmp.eq.s32.totalorder %s42, 1
      %p303 = scmp.ne.s32.totalorder %s298, %s300
      %p304 = scmp.eq.s32.totalorder %s42, 0
      %p305 = por %p303, %p304
      %p306 = scmp.ne.s32.totalorder %s298, %s300
      %p307 = scmp.eq.s32.totalorder %s47, 1
      %p308 = por %p306, %p307
      %p309 = scmp.ne.s32.totalorder %s300, %s301
      %p310 = scmp.eq.s32.totalorder %s47, 0
      %p311 = por %p309, %p310
      %p312 = scmp.ne.s32.totalorder %s300, %s301
      %p313 = scmp.eq.s32.totalorder %s48, 1
      %p314 = por %p312, %p313
      %p316 = scmp.ne.s32.totalorder %s301, %s315
      %p317 = scmp.eq.s32.totalorder %s48, 0
      %p318 = por %p316, %p317
      %s320 = sadd.s32 %s319, 1
      %p323 = scmp.eq.s32.totalorder %s42, 1
      %p324 = scmp.ne.s32.totalorder %s319, %s321
      %p325 = scmp.eq.s32.totalorder %s42, 0
      %p326 = por %p324, %p325
      %p327 = scmp.ne.s32.totalorder %s319, %s321
      %p328 = scmp.eq.s32.totalorder %s47, 1
      %p329 = por %p327, %p328
      %p330 = scmp.ne.s32.totalorder %s321, %s322
      %p331 = scmp.eq.s32.totalorder %s47, 0
      %p332 = por %p330, %p331
      %p333 = scmp.ne.s32.totalorder %s321, %s322
      %p334 = scmp.eq.s32.totalorder %s48, 1
      %p335 = por %p333, %p334
      %p337 = scmp.ne.s32.totalorder %s322, %s336
      %p338 = scmp.eq.s32.totalorder %s48, 0
      %p339 = por %p337, %p338
      %s341 = sadd.s32 %s340, 1
      %p344 = scmp.eq.s32.totalorder %s42, 1
      %p345 = scmp.ne.s32.totalorder %s340, %s342
      %p346 = scmp.eq.s32.totalorder %s42, 0
      %p347 = por %p345, %p346
      %p348 = scmp.ne.s32.totalorder %s340, %s342
      %p349 = scmp.eq.s32.totalorder %s47, 1
      %p350 = por %p348, %p349
      %p351 = scmp.ne.s32.totalorder %s342, %s343
      %p352 = scmp.eq.s32.totalorder %s47, 0
      %p353 = por %p351, %p352
      %p354 = scmp.ne.s32.totalorder %s342, %s343
      %p355 = scmp.eq.s32.totalorder %s48, 1
      %p356 = por %p354, %p355
      %p358 = scmp.ne.s32.totalorder %s343, %s357
      %p359 = scmp.eq.s32.totalorder %s48, 0
      %p360 = por %p358, %p359
      %s362 = sadd.s32 %s361, 1
      %p365 = scmp.eq.s32.totalorder %s42, 1
      %p366 = scmp.ne.s32.totalorder %s361, %s363
      %p367 = scmp.eq.s32.totalorder %s42, 0
      %p368 = por %p366, %p367
      %p369 = scmp.ne.s32.totalorder %s361, %s363
      %p370 = scmp.eq.s32.totalorder %s47, 1
      %p371 = por %p369, %p370
      %p372 = scmp.ne.s32.totalorder %s363, %s364
      %p373 = scmp.eq.s32.totalorder %s47, 0
      %p374 = por %p372, %p373
      %p375 = scmp.ne.s32.totalorder %s363, %s364
      %p376 = scmp.eq.s32.totalorder %s48, 1
      %p377 = por %p375, %p376
      %p379 = scmp.ne.s32.totalorder %s364, %s378
      %p380 = scmp.eq.s32.totalorder %s48, 0
      %p381 = por %p379, %p380
      %s383 = sadd.s32 %s382, 1
      %p386 = scmp.eq.s32.totalorder %s42, 1
      %p387 = scmp.ne.s32.totalorder %s382, %s384
      %p388 = scmp.eq.s32.totalorder %s42, 0
      %p389 = por %p387, %p388
      %p390 = scmp.ne.s32.totalorder %s382, %s384
      %p391 = scmp.eq.s32.totalorder %s47, 1
      %p392 = por %p390, %p391
      %p393 = scmp.ne.s32.totalorder %s384, %s385
      %p394 = scmp.eq.s32.totalorder %s47, 0
      %p395 = por %p393, %p394
      %p396 = scmp.ne.s32.totalorder %s384, %s385
      %p397 = scmp.eq.s32.totalorder %s48, 1
      %p398 = por %p396, %p397
      %p400 = scmp.ne.s32.totalorder %s385, %s399
      %p401 = scmp.eq.s32.totalorder %s48, 0
      %p402 = por %p400, %p401
      %s404 = sadd.s32 %s403, 1
      %p407 = scmp.eq.s32.totalorder %s42, 1
      %p408 = scmp.ne.s32.totalorder %s403, %s405
      %p409 = scmp.eq.s32.totalorder %s42, 0
      %p410 = por %p408, %p409
      %p411 = scmp.ne.s32.totalorder %s403, %s405
      %p412 = scmp.eq.s32.totalorder %s47, 1
      %p413 = por %p411, %p412
      %p414 = scmp.ne.s32.totalorder %s405, %s406
      %p415 = scmp.eq.s32.totalorder %s47, 0
      %p416 = por %p414, %p415
      %p417 = scmp.ne.s32.totalorder %s405, %s406
      %p418 = scmp.eq.s32.totalorder %s48, 1
      %p419 = por %p417, %p418
      %p421 = scmp.ne.s32.totalorder %s406, %s420
      %p422 = scmp.eq.s32.totalorder %s48, 0
      %p423 = por %p421, %p422
      %s424 = ssub.s32 %s49, %s61
      %s425 = ssub.s32 %s50, %s57
      %s426 = sor.u32 %s424, %s425
      %p427 = scmp.eq.s32.totalorder %s426, 0
      %s429 = sadd.s32 %s428, 1
      %s430 = scalar_select %p427, %s428, %s429
      %p433 = pneg %p427
      %p434 = scmp.eq.s32.totalorder %s42, 1
      %p435 = por %p433, %p434
      %p436 = scmp.ne.s32.totalorder %s428, %s431
      %p437 = scmp.eq.s32.totalorder %s42, 0
      %p438 = por %p436, %p437
      %p439 = scmp.ne.s32.totalorder %s428, %s431
      %p440 = scmp.eq.s32.totalorder %s47, 1
      %p441 = por %p439, %p440
      %p442 = scmp.ne.s32.totalorder %s431, %s432
      %p443 = scmp.eq.s32.totalorder %s47, 0
      %p444 = por %p442, %p443
      %p445 = scmp.ne.s32.totalorder %s431, %s432
      %p446 = scmp.eq.s32.totalorder %s48, 1
      %p447 = por %p445, %p446
      %p449 = scmp.ne.s32.totalorder %s432, %s448
      %p450 = scmp.eq.s32.totalorder %s48, 0
      %p451 = por %p449, %p450
      %s452 = ssub.s32 %s49, %s61
      %s453 = ssub.s32 %s50, %s57
      %s454 = sor.u32 %s452, %s453
      %p455 = scmp.eq.s32.totalorder %s454, 0
      %s457 = sadd.s32 %s456, 1
      %s458 = scalar_select %p455, %s456, %s457
      %p461 = pneg %p455
      %p462 = scmp.eq.s32.totalorder %s42, 1
      %p463 = por %p461, %p462
      %p464 = scmp.ne.s32.totalorder %s456, %s459
      %p465 = scmp.eq.s32.totalorder %s42, 0
      %p466 = por %p464, %p465
      %p467 = scmp.ne.s32.totalorder %s456, %s459
      %p468 = scmp.eq.s32.totalorder %s47, 1
      %p469 = por %p467, %p468
      %p470 = scmp.ne.s32.totalorder %s459, %s460
      %p471 = scmp.eq.s32.totalorder %s47, 0
      %p472 = por %p470, %p471
      %p473 = scmp.ne.s32.totalorder %s459, %s460
      %p474 = scmp.eq.s32.totalorder %s48, 1
      %p475 = por %p473, %p474
      %p477 = scmp.ne.s32.totalorder %s460, %s476
      %p478 = scmp.eq.s32.totalorder %s48, 0
      %p479 = por %p477, %p478
      %p480 = scmp.le.s32.totalorder 1, %s42
      %p481 = scmp.lt.s32.totalorder %s42, 3
      %p482 = pnand %p480, %p481
      %p483 = pneg %p482
      // Predicated region
      $region9: #{tpu_custom_call.1} parent=5 // pred_check
        _
      $region10: #{tpu_custom_call.1} parent=5 // pred_check_branch
        %485 = sbr.rel (%p482) target = $region12
      $region11: #{tpu_custom_call.1} parent=5 // pred_region
        %s486 = ssub.s32 %s42, 1
        // Predicated region
        $region13: #{tpu_custom_call.1} parent=11 // pred_check
          %p487 = pneg %p101
        $region14: #{tpu_custom_call.1} parent=11 // pred_check_branch
          %489 = sbr.rel (%p487) target = $region16
        $region15: #{tpu_custom_call.1} parent=11 // pred_region
          %s491 = ssub.s32 1024, 1024
          %492 = vsyncadd [#allocation10], %s491
          %s493 = sshll.u32 [#allocation9], 4
          %s494 = int_to_ptr.vmem [resolvable:$true] %s493
          %499 = dma.hbm_to_vmem [thread:$0]  %s1, 1024, %s494, [#allocation10], 64, 64, 4
        $region16: #{tpu_custom_call.1} parent=11 // pred_fallthru
          _
        // Predicated region
        $region17: #{tpu_custom_call.1} parent=11 // pred_check
          %p500 = pneg %p122
        $region18: #{tpu_custom_call.1} parent=11 // pred_check_branch
          %502 = sbr.rel (%p500) target = $region20
        $region19: #{tpu_custom_call.1} parent=11 // pred_region
          %s504 = ssub.s32 16, 16
          %505 = vsyncadd [#allocation10], %s504
          %s507 = sshll.u32 [#allocation11], 4
          %s508 = int_to_ptr.vmem [resolvable:$true] %s507
          %510 = dma.hbm_to_vmem [thread:$0]  %s2, 16, %s508, [#allocation10]
        $region20: #{tpu_custom_call.1} parent=11 // pred_fallthru
          _
        // Predicated region
        $region21: #{tpu_custom_call.1} parent=11 // pred_check
          %p511 = pneg %p143
        $region22: #{tpu_custom_call.1} parent=11 // pred_check_branch
          %513 = sbr.rel (%p511) target = $region24
        $region23: #{tpu_custom_call.1} parent=11 // pred_region
          %s515 = ssub.s32 1024, 1024
          %516 = vsyncadd [#allocation13], %s515
          %s517 = sshll.u32 [#allocation12], 4
          %s518 = int_to_ptr.vmem [resolvable:$true] %s517
          %523 = dma.hbm_to_vmem [thread:$0]  %s3, 1024, %s518, [#allocation13], 64, 64, 4
        $region24: #{tpu_custom_call.1} parent=11 // pred_fallthru
          _
        // Predicated region
        $region25: #{tpu_custom_call.1} parent=11 // pred_check
          %p524 = pneg %p164
        $region26: #{tpu_custom_call.1} parent=11 // pred_check_branch
          %526 = sbr.rel (%p524) target = $region28
        $region27: #{tpu_custom_call.1} parent=11 // pred_region
          %s528 = ssub.s32 16, 16
          %529 = vsyncadd [#allocation13], %s528
          %s531 = sshll.u32 [#allocation14], 4
          %s532 = int_to_ptr.vmem [resolvable:$true] %s531
          %534 = dma.hbm_to_vmem [thread:$0]  %s4, 16, %s532, [#allocation13]
        $region28: #{tpu_custom_call.1} parent=11 // pred_fallthru
          _
        // Predicated region
        $region29: #{tpu_custom_call.1} parent=11 // pred_check
          %p535 = pneg %p185
        $region30: #{tpu_custom_call.1} parent=11 // pred_check_branch
          %537 = sbr.rel (%p535) target = $region32
        $region31: #{tpu_custom_call.1} parent=11 // pred_region
          %s539 = ssub.s32 1024, 1024
          %540 = vsyncadd [#allocation16], %s539
          %s541 = sshll.u32 [#allocation15], 4
          %s542 = int_to_ptr.vmem [resolvable:$true] %s541
          %547 = dma.hbm_to_vmem [thread:$0]  %s5, 1024, %s542, [#allocation16], 64, 64, 4
        $region32: #{tpu_custom_call.1} parent=11 // pred_fallthru
          _
        // Predicated region
        $region33: #{tpu_custom_call.1} parent=11 // pred_check
          %p548 = pneg %p206
        $region34: #{tpu_custom_call.1} parent=11 // pred_check_branch
          %550 = sbr.rel (%p548) target = $region36
        $region35: #{tpu_custom_call.1} parent=11 // pred_region
          %s552 = ssub.s32 16, 16
          %553 = vsyncadd [#allocation16], %s552
          %s555 = sshll.u32 [#allocation17], 4
          %s556 = int_to_ptr.vmem [resolvable:$true] %s555
          %558 = dma.hbm_to_vmem [thread:$0]  %s6, 16, %s556, [#allocation16]
        $region36: #{tpu_custom_call.1} parent=11 // pred_fallthru
          _
        // Predicated region
        $region37: #{tpu_custom_call.1} parent=11 // pred_check
          %p559 = pneg %p227
        $region38: #{tpu_custom_call.1} parent=11 // pred_check_branch
          %561 = sbr.rel (%p559) target = $region40
        $region39: #{tpu_custom_call.1} parent=11 // pred_region
          %s563 = ssub.s32 1024, 1024
          %564 = vsyncadd [#allocation19], %s563
          %s565 = sshll.u32 [#allocation18], 4
          %s566 = int_to_ptr.vmem [resolvable:$true] %s565
          %571 = dma.hbm_to_vmem [thread:$0]  %s7, 1024, %s566, [#allocation19], 64, 64, 4
        $region40: #{tpu_custom_call.1} parent=11 // pred_fallthru
          _
        // Predicated region
        $region41: #{tpu_custom_call.1} parent=11 // pred_check
          %p572 = pneg %p248
        $region42: #{tpu_custom_call.1} parent=11 // pred_check_branch
          %574 = sbr.rel (%p572) target = $region44
        $region43: #{tpu_custom_call.1} parent=11 // pred_region
          %s576 = ssub.s32 16, 16
          %577 = vsyncadd [#allocation19], %s576
          %s579 = sshll.u32 [#allocation20], 4
          %s580 = int_to_ptr.vmem [resolvable:$true] %s579
          %582 = dma.hbm_to_vmem [thread:$0]  %s8, 16, %s580, [#allocation19]
        $region44: #{tpu_custom_call.1} parent=11 // pred_fallthru
          _
        // Predicated region
        $region45: #{tpu_custom_call.1} parent=11 // pred_check
          %p583 = pneg %p269
        $region46: #{tpu_custom_call.1} parent=11 // pred_check_branch
          %585 = sbr.rel (%p583) target = $region48
        $region47: #{tpu_custom_call.1} parent=11 // pred_region
          %s587 = ssub.s32 2048, 2048
          %588 = vsyncadd [#allocation22], %s587
          %s589 = sshll.u32 [#allocation21], 4
          %s590 = int_to_ptr.vmem [resolvable:$true] %s589
          %595 = dma.hbm_to_vmem [thread:$0]  %s9, 2048, %s590, [#allocation22], 128, 128, 8
        $region48: #{tpu_custom_call.1} parent=11 // pred_fallthru
          _
        // Predicated region
        $region49: #{tpu_custom_call.1} parent=11 // pred_check
          %p596 = pneg %p290
        $region50: #{tpu_custom_call.1} parent=11 // pred_check_branch
          %598 = sbr.rel (%p596) target = $region52
        $region51: #{tpu_custom_call.1} parent=11 // pred_region
          %s600 = ssub.s32 32, 32
          %601 = vsyncadd [#allocation22], %s600
          %s603 = sshll.u32 [#allocation23], 4
          %s604 = int_to_ptr.vmem [resolvable:$true] %s603
          %606 = dma.hbm_to_vmem [thread:$0]  %s10, 32, %s604, [#allocation22]
        $region52: #{tpu_custom_call.1} parent=11 // pred_fallthru
          _
        // Predicated region
        $region53: #{tpu_custom_call.1} parent=11 // pred_check
          %p607 = pneg %p311
        $region54: #{tpu_custom_call.1} parent=11 // pred_check_branch
          %609 = sbr.rel (%p607) target = $region56
        $region55: #{tpu_custom_call.1} parent=11 // pred_region
          %s611 = ssub.s32 2048, 2048
          %612 = vsyncadd [#allocation25], %s611
          %s613 = sshll.u32 [#allocation24], 4
          %s614 = int_to_ptr.vmem [resolvable:$true] %s613
          %619 = dma.hbm_to_vmem [thread:$0]  %s11, 2048, %s614, [#allocation25], 64, 64, 4
        $region56: #{tpu_custom_call.1} parent=11 // pred_fallthru
          _
        // Predicated region
        $region57: #{tpu_custom_call.1} parent=11 // pred_check
          %p620 = pneg %p332
        $region58: #{tpu_custom_call.1} parent=11 // pred_check_branch
          %622 = sbr.rel (%p620) target = $region60
        $region59: #{tpu_custom_call.1} parent=11 // pred_region
          %s624 = ssub.s32 16, 16
          %625 = vsyncadd [#allocation25], %s624
          %s627 = sshll.u32 [#allocation26], 4
          %s628 = int_to_ptr.vmem [resolvable:$true] %s627
          %630 = dma.hbm_to_vmem [thread:$0]  %s12, 16, %s628, [#allocation25]
        $region60: #{tpu_custom_call.1} parent=11 // pred_fallthru
          _
        // Predicated region
        $region61: #{tpu_custom_call.1} parent=11 // pred_check
          %p631 = pneg %p353
        $region62: #{tpu_custom_call.1} parent=11 // pred_check_branch
          %633 = sbr.rel (%p631) target = $region64
        $region63: #{tpu_custom_call.1} parent=11 // pred_region
          %s635 = ssub.s32 16, 16
          %636 = vsyncadd [#allocation28], %s635
          %s638 = sshll.u32 [#allocation27], 4
          %s639 = int_to_ptr.vmem [resolvable:$true] %s638
          %641 = dma.hbm_to_vmem [thread:$0]  %s13, 16, %s639, [#allocation28]
        $region64: #{tpu_custom_call.1} parent=11 // pred_fallthru
          _
        // Predicated region
        $region65: #{tpu_custom_call.1} parent=11 // pred_check
          %p642 = pneg %p374
        $region66: #{tpu_custom_call.1} parent=11 // pred_check_branch
          %644 = sbr.rel (%p642) target = $region68
        $region67: #{tpu_custom_call.1} parent=11 // pred_region
          %s646 = ssub.s32 16, 16
          %647 = vsyncadd [#allocation28], %s646
          %s649 = sshll.u32 [#allocation29], 4
          %s650 = int_to_ptr.vmem [resolvable:$true] %s649
          %652 = dma.hbm_to_vmem [thread:$0]  %s14, 16, %s650, [#allocation28]
        $region68: #{tpu_custom_call.1} parent=11 // pred_fallthru
          _
        // Predicated region
        $region69: #{tpu_custom_call.1} parent=11 // pred_check
          %p653 = pneg %p395
        $region70: #{tpu_custom_call.1} parent=11 // pred_check_branch
          %655 = sbr.rel (%p653) target = $region72
        $region71: #{tpu_custom_call.1} parent=11 // pred_region
          %s657 = ssub.s32 16, 16
          %658 = vsyncadd [#allocation31], %s657
          %s660 = sshll.u32 [#allocation30], 4
          %s661 = int_to_ptr.vmem [resolvable:$true] %s660
          %663 = dma.hbm_to_vmem [thread:$0]  %s15, 16, %s661, [#allocation31]
        $region72: #{tpu_custom_call.1} parent=11 // pred_fallthru
          _
        // Predicated region
        $region73: #{tpu_custom_call.1} parent=11 // pred_check
          %p664 = pneg %p416
        $region74: #{tpu_custom_call.1} parent=11 // pred_check_branch
          %666 = sbr.rel (%p664) target = $region76
        $region75: #{tpu_custom_call.1} parent=11 // pred_region
          %s668 = ssub.s32 16, 16
          %669 = vsyncadd [#allocation31], %s668
          %s671 = sshll.u32 [#allocation32], 4
          %s672 = int_to_ptr.vmem [resolvable:$true] %s671
          %674 = dma.hbm_to_vmem [thread:$0]  %s16, 16, %s672, [#allocation31]
        $region76: #{tpu_custom_call.1} parent=11 // pred_fallthru
          _
      $region12: #{tpu_custom_call.1} parent=5 // pred_fallthru
        _
      %p675 = scmp.lt.s32.totalorder %s42, 2
      // Predicated region
      $region77: #{tpu_custom_call.1} parent=5 // pred_check
        %p676 = pneg %p675
      $region78: #{tpu_custom_call.1} parent=5 // pred_check_branch
        %678 = sbr.rel (%p676) target = $region80
      $region79: #{tpu_custom_call.1} parent=5 // pred_region
        // Predicated region
        $region81: #{tpu_custom_call.1} parent=79 // pred_check
          %p679 = pneg %p74
        $region82: #{tpu_custom_call.1} parent=79 // pred_check_branch
          %681 = sbr.rel (%p679) target = $region84
        $region83: #{tpu_custom_call.1} parent=79 // pred_region
          %s682 = sand.u32 %s64, 1
          %s683 = scalar_lea.sflag [#allocation7], %s682
          %s684 = sand.u32 %s64, 1
          %s685 = smul.addr %s684, 8
          %s686 = scalar_lea.vmem [#allocation6], %s685
          %s688 = ssub.s32 128, 128
          %689 = vsyncadd %s683, %s688
          %s690 = smul.addr %s49, 128
          %s691 = scalar_lea.hbm %s0, %s690
          %s693 = sshll.u32 %s686, 4
          %s694 = int_to_ptr.vmem [resolvable:$true] %s693
          %696 = dma.hbm_to_vmem [thread:$0]  %s691, 128, %s694, %s683
        $region84: #{tpu_custom_call.1} parent=79 // pred_fallthru
          _
      $region80: #{tpu_custom_call.1} parent=5 // pred_fallthru
        _
      %p697 = scmp.le.s32.totalorder 1, %s42
      %p698 = scmp.lt.s32.totalorder %s42, 3
      %p699 = pnand %p697, %p698
      %p700 = pneg %p699
      // Predicated region
      $region85: #{tpu_custom_call.1} parent=5 // pred_check
        _
      $region86: #{tpu_custom_call.1} parent=5 // pred_check_branch
        %702 = sbr.rel (%p699) target = $region88
      $region87: #{tpu_custom_call.1} parent=5 // pred_region
        %s703 = ssub.s32 %s42, 1
        %s704 = sand.u32 %s67, 1
        %s705 = scalar_lea.sflag [#allocation7], %s704
        %s706 = sand.u32 %s67, 1
        %s707 = smul.addr %s706, 8
        %s708 = scalar_lea.vmem [#allocation6], %s707
        // Predicated region
        $region89: #{tpu_custom_call.1} parent=87 // pred_check
          %p709 = pneg %p80
        $region90: #{tpu_custom_call.1} parent=87 // pred_check_branch
          %711 = sbr.rel (%p709) target = $region92
        $region91: #{tpu_custom_call.1} parent=87 // pred_region
          %712 = dma.done %s705, 128
        $region92: #{tpu_custom_call.1} parent=87 // pred_fallthru
          _
        // Predicated region
        $region93: #{tpu_custom_call.1} parent=87 // pred_check
          %p713 = pneg %p101
        $region94: #{tpu_custom_call.1} parent=87 // pred_check_branch
          %715 = sbr.rel (%p713) target = $region96
        $region95: #{tpu_custom_call.1} parent=87 // pred_region
          %716 = dma.done [#allocation10], 1024
        $region96: #{tpu_custom_call.1} parent=87 // pred_fallthru
          _
        // Predicated region
        $region97: #{tpu_custom_call.1} parent=87 // pred_check
          %p717 = pneg %p122
        $region98: #{tpu_custom_call.1} parent=87 // pred_check_branch
          %719 = sbr.rel (%p717) target = $region100
        $region99: #{tpu_custom_call.1} parent=87 // pred_region
          %720 = dma.done [#allocation10], 16
        $region100: #{tpu_custom_call.1} parent=87 // pred_fallthru
          _
        // Predicated region
        $region101: #{tpu_custom_call.1} parent=87 // pred_check
          %p721 = pneg %p143
        $region102: #{tpu_custom_call.1} parent=87 // pred_check_branch
          %723 = sbr.rel (%p721) target = $region104
        $region103: #{tpu_custom_call.1} parent=87 // pred_region
          %724 = dma.done [#allocation13], 1024
        $region104: #{tpu_custom_call.1} parent=87 // pred_fallthru
          _
        // Predicated region
        $region105: #{tpu_custom_call.1} parent=87 // pred_check
          %p725 = pneg %p164
        $region106: #{tpu_custom_call.1} parent=87 // pred_check_branch
          %727 = sbr.rel (%p725) target = $region108
        $region107: #{tpu_custom_call.1} parent=87 // pred_region
          %728 = dma.done [#allocation13], 16
        $region108: #{tpu_custom_call.1} parent=87 // pred_fallthru
          _
        // Predicated region
        $region109: #{tpu_custom_call.1} parent=87 // pred_check
          %p729 = pneg %p185
        $region110: #{tpu_custom_call.1} parent=87 // pred_check_branch
          %731 = sbr.rel (%p729) target = $region112
        $region111: #{tpu_custom_call.1} parent=87 // pred_region
          %732 = dma.done [#allocation16], 1024
        $region112: #{tpu_custom_call.1} parent=87 // pred_fallthru
          _
        // Predicated region
        $region113: #{tpu_custom_call.1} parent=87 // pred_check
          %p733 = pneg %p206
        $region114: #{tpu_custom_call.1} parent=87 // pred_check_branch
          %735 = sbr.rel (%p733) target = $region116
        $region115: #{tpu_custom_call.1} parent=87 // pred_region
          %736 = dma.done [#allocation16], 16
        $region116: #{tpu_custom_call.1} parent=87 // pred_fallthru
          _
        // Predicated region
        $region117: #{tpu_custom_call.1} parent=87 // pred_check
          %p737 = pneg %p227
        $region118: #{tpu_custom_call.1} parent=87 // pred_check_branch
          %739 = sbr.rel (%p737) target = $region120
        $region119: #{tpu_custom_call.1} parent=87 // pred_region
          %740 = dma.done [#allocation19], 1024
        $region120: #{tpu_custom_call.1} parent=87 // pred_fallthru
          _
        // Predicated region
        $region121: #{tpu_custom_call.1} parent=87 // pred_check
          %p741 = pneg %p248
        $region122: #{tpu_custom_call.1} parent=87 // pred_check_branch
          %743 = sbr.rel (%p741) target = $region124
        $region123: #{tpu_custom_call.1} parent=87 // pred_region
          %744 = dma.done [#allocation19], 16
        $region124: #{tpu_custom_call.1} parent=87 // pred_fallthru
          _
        // Predicated region
        $region125: #{tpu_custom_call.1} parent=87 // pred_check
          %p745 = pneg %p269
        $region126: #{tpu_custom_call.1} parent=87 // pred_check_branch
          %747 = sbr.rel (%p745) target = $region128
        $region127: #{tpu_custom_call.1} parent=87 // pred_region
          %748 = dma.done [#allocation22], 2048
        $region128: #{tpu_custom_call.1} parent=87 // pred_fallthru
          _
        // Predicated region
        $region129: #{tpu_custom_call.1} parent=87 // pred_check
          %p749 = pneg %p290
        $region130: #{tpu_custom_call.1} parent=87 // pred_check_branch
          %751 = sbr.rel (%p749) target = $region132
        $region131: #{tpu_custom_call.1} parent=87 // pred_region
          %752 = dma.done [#allocation22], 32
        $region132: #{tpu_custom_call.1} parent=87 // pred_fallthru
          _
        // Predicated region
        $region133: #{tpu_custom_call.1} parent=87 // pred_check
          %p753 = pneg %p311
        $region134: #{tpu_custom_call.1} parent=87 // pred_check_branch
          %755 = sbr.rel (%p753) target = $region136
        $region135: #{tpu_custom_call.1} parent=87 // pred_region
          %756 = dma.done [#allocation25], 2048
        $region136: #{tpu_custom_call.1} parent=87 // pred_fallthru
          _
        // Predicated region
        $region137: #{tpu_custom_call.1} parent=87 // pred_check
          %p757 = pneg %p332
        $region138: #{tpu_custom_call.1} parent=87 // pred_check_branch
          %759 = sbr.rel (%p757) target = $region140
        $region139: #{tpu_custom_call.1} parent=87 // pred_region
          %760 = dma.done [#allocation25], 16
        $region140: #{tpu_custom_call.1} parent=87 // pred_fallthru
          _
        // Predicated region
        $region141: #{tpu_custom_call.1} parent=87 // pred_check
          %p761 = pneg %p353
        $region142: #{tpu_custom_call.1} parent=87 // pred_check_branch
          %763 = sbr.rel (%p761) target = $region144
        $region143: #{tpu_custom_call.1} parent=87 // pred_region
          %764 = dma.done [#allocation28], 16
        $region144: #{tpu_custom_call.1} parent=87 // pred_fallthru
          _
        // Predicated region
        $region145: #{tpu_custom_call.1} parent=87 // pred_check
          %p765 = pneg %p374
        $region146: #{tpu_custom_call.1} parent=87 // pred_check_branch
          %767 = sbr.rel (%p765) target = $region148
        $region147: #{tpu_custom_call.1} parent=87 // pred_region
          %768 = dma.done [#allocation28], 16
        $region148: #{tpu_custom_call.1} parent=87 // pred_fallthru
          _
        // Predicated region
        $region149: #{tpu_custom_call.1} parent=87 // pred_check
          %p769 = pneg %p395
        $region150: #{tpu_custom_call.1} parent=87 // pred_check_branch
          %771 = sbr.rel (%p769) target = $region152
        $region151: #{tpu_custom_call.1} parent=87 // pred_region
          %772 = dma.done [#allocation31], 16
        $region152: #{tpu_custom_call.1} parent=87 // pred_fallthru
          _
        // Predicated region
        $region153: #{tpu_custom_call.1} parent=87 // pred_check
          %p773 = pneg %p416
        $region154: #{tpu_custom_call.1} parent=87 // pred_check_branch
          %775 = sbr.rel (%p773) target = $region156
        $region155: #{tpu_custom_call.1} parent=87 // pred_region
          %776 = dma.done [#allocation31], 16
        $region156: #{tpu_custom_call.1} parent=87 // pred_fallthru
          _
        %s777 = sand.u32 %s67, 1
        %s778 = scalar_lea.sflag [#allocation7], %s777
        %s779 = sand.u32 %s67, 1
        %s780 = smul.addr %s779, 8
        %s781 = scalar_lea.vmem [#allocation6], %s780
        %p782 = pneg %p80
        %p783 = pneg %p77
        %p784 = pneg %p101
        %p785 = pneg %p98
        %p786 = pneg %p122
        %p787 = pneg %p119
        %p788 = pneg %p143
        %p789 = pneg %p140
        %p790 = pneg %p164
        %p791 = pneg %p161
        %p792 = pneg %p185
        %p793 = pneg %p182
        %p794 = pneg %p206
        %p795 = pneg %p203
        %p796 = pneg %p227
        %p797 = pneg %p224
        %p798 = pneg %p248
        %p799 = pneg %p245
        %p800 = pneg %p269
        %p801 = pneg %p266
        %p802 = pneg %p290
        %p803 = pneg %p287
        %p804 = pneg %p311
        %p805 = pneg %p308
        %p806 = pneg %p332
        %p807 = pneg %p329
        %p808 = pneg %p353
        %p809 = pneg %p350
        %p810 = pneg %p374
        %p811 = pneg %p371
        %p812 = pneg %p395
        %p813 = pneg %p392
        %p814 = pneg %p416
        %p815 = pneg %p413
        %p816 = pneg %p444
        %p817 = pneg %p441
        %s818 = sand.u32 %s431, 1
        %s819 = scalar_lea.sflag [#allocation8], %s818
        %s820 = sand.u32 %s431, 1
        %s821 = smul.addr %s820, 8
        %s822 = scalar_lea.vmem [#allocation33], %s821
        %p823 = pneg %p472
        %p824 = pneg %p469
        %s825 = sand.u32 %s459, 1
        %s826 = scalar_lea.sflag [#allocation35], %s825
        %s827 = sand.u32 %s459, 1
        %s828 = smul.addr %s827, 8
        %s829 = scalar_lea.vmem [#allocation34], %s828
        %p831 = scmp.eq.s32.totalorder %s52, 0
        // Predicated region
        $region157: #{tpu_custom_call.1} parent=87 // pred_check
          %p832 = pneg %p831
        $region158: #{tpu_custom_call.1} parent=87 // pred_check_branch
          %834 = sbr.rel (%p832) target = $region160
        $region159: #{tpu_custom_call.1} parent=87 // pred_region
          %v835 = vld [vmem:[%s708] sm:$0xff]
          %v836 = vpack.c.bf16 %v835, %v835
          %v837 = vld [vmem:[#allocation12] sm:$0xf]
          %v838 = vld [vmem:[#allocation12 + $0x4] sm:$0xf]
          %v839 = vld [vmem:[#allocation12 + $0x8] sm:$0xf]
          %v840 = vld [vmem:[#allocation12 + $0xc] sm:$0xf]
          %v841 = vld [vmem:[#allocation12 + $0x10] sm:$0xf]
          %v842 = vld [vmem:[#allocation12 + $0x14] sm:$0xf]
          %v843 = vld [vmem:[#allocation12 + $0x18] sm:$0xf]
          %v844 = vld [vmem:[#allocation12 + $0x1c] sm:$0xf]
          %v845 = vld [vmem:[#allocation12 + $0x20] sm:$0xf]
          %v846 = vld [vmem:[#allocation12 + $0x24] sm:$0xf]
          %v847 = vld [vmem:[#allocation12 + $0x28] sm:$0xf]
          %v848 = vld [vmem:[#allocation12 + $0x2c] sm:$0xf]
          %v849 = vld [vmem:[#allocation12 + $0x30] sm:$0xf]
          %v850 = vld [vmem:[#allocation12 + $0x34] sm:$0xf]
          %v851 = vld [vmem:[#allocation12 + $0x38] sm:$0xf]
          %v852 = vld [vmem:[#allocation12 + $0x3c] sm:$0xf]
          %v853 = vld [vmem:[#allocation14] sm:$0x1]
          %v855 = vlaneseq
          %v856 = vshrl.u32 %v855, 7
          %v857 = vsub.s32 0, %v856
          %v858 = vrot.slane %v853, %v857
          %v876 = vunpack.c.l.b16 %v837
          %v877 = vunpack.c.l.b16 %v838
          %v878 = vunpack.c.l.b16 %v839
          %v879 = vunpack.c.l.b16 %v840
          %v880 = vunpack.c.l.b16 %v841
          %v881 = vunpack.c.l.b16 %v842
          %v882 = vunpack.c.l.b16 %v843
          %v883 = vunpack.c.l.b16 %v844
          %v884 = vunpack.c.l.b16 %v845
          %v885 = vunpack.c.l.b16 %v846
          %v886 = vunpack.c.l.b16 %v847
          %v887 = vunpack.c.l.b16 %v848
          %v888 = vunpack.c.l.b16 %v849
          %v889 = vunpack.c.l.b16 %v850
          %v890 = vunpack.c.l.b16 %v851
          %v891 = vunpack.c.l.b16 %v852
          %v892 = vpack.c.b16 %v877, %v876
          %v893 = vpack.c.b16 %v879, %v878
          %v894 = vpack.c.b16 %v881, %v880
          %v895 = vpack.c.b16 %v883, %v882
          %v896 = vpack.c.b16 %v885, %v884
          %v897 = vpack.c.b16 %v887, %v886
          %v898 = vpack.c.b16 %v889, %v888
          %v899 = vpack.c.b16 %v891, %v890
          %908 = vmatprep.subr.bf16.mxu0 0
          %909 = vmatpush1.bf16.msra.mxu0 %v892
          %910 = vmatprep.subr.bf16.mxu0 0
          %911 = vmatpush1.bf16.msra.mxu0 %v893
          %912 = vmatprep.subr.bf16.mxu0 0
          %913 = vmatpush1.bf16.msra.mxu0 %v894
          %914 = vmatprep.subr.bf16.mxu0 0
          %915 = vmatpush1.bf16.msra.mxu0 %v895
          %916 = vmatprep.subr.bf16.mxu0 0
          %917 = vmatpush1.bf16.msra.mxu0 %v896
          %918 = vmatprep.subr.bf16.mxu0 0
          %919 = vmatpush1.bf16.msra.mxu0 %v897
          %920 = vmatprep.subr.bf16.mxu0 0
          %921 = vmatpush1.bf16.msra.mxu0 %v898
          %922 = vmatprep.subr.bf16.mxu0 0
          %923 = vmatpush1.bf16.msra.mxu0 %v899
          %924 = vmatprep.subr.bf16.mxu0 0
          %925 = vmatpush1.bf16.msra.mxu0 0
          %926 = vmatprep.subr.bf16.mxu0 0
          %927 = vmatpush1.bf16.msra.mxu0 0
          %928 = vmatprep.subr.bf16.mxu0 0
          %929 = vmatpush1.bf16.msra.mxu0 0
          %930 = vmatprep.subr.bf16.mxu0 0
          %931 = vmatpush1.bf16.msra.mxu0 0
          %932 = vmatprep.subr.bf16.mxu0 0
          %933 = vmatpush1.bf16.msra.mxu0 0
          %934 = vmatprep.subr.bf16.mxu0 0
          %935 = vmatpush1.bf16.msra.mxu0 0
          %936 = vmatprep.subr.bf16.mxu0 0
          %937 = vmatpush1.bf16.msra.mxu0 0
          %938 = vmatprep.subr.bf16.mxu0 0
          %939 = vmatpush1.bf16.msra.mxu0 0
          %940 = vmatprep.mubr.bf16.mxu0 0
          %941 = vmatmul.mubr.bf16.gmra.mrb[0].mxu0 %v836
          %v942 = vpop.f32.mrb[0].mxu0
          %v943 = vadd.f32 %v858, %v942
          %v944 = vpop.f32.mrb[0].mxu0
          %v945 = vpop.f32.mrb[0].mxu0
          %v946 = vpop.f32.mrb[0].mxu0
          %947 = vdwg.mxu0
          %948 = vxpose.xlu0.b32.start [1/16] %v943, 128
          %949 = vxpose.xlu0.b32.cont [2/16] 0.0, 128
          %950 = vxpose.xlu0.b32.cont [3/16] 0.0, 128
          %951 = vxpose.xlu0.b32.cont [4/16] 0.0, 128
          %952 = vxpose.xlu0.b32.cont [5/16] 0.0, 128
          %953 = vxpose.xlu0.b32.cont [6/16] 0.0, 128
          %954 = vxpose.xlu0.b32.cont [7/16] 0.0, 128
          %955 = vxpose.xlu0.b32.cont [8/16] 0.0, 128
          %956 = vxpose.xlu0.b32.cont [9/16] 0.0, 128
          %957 = vxpose.xlu0.b32.cont [10/16] 0.0, 128
          %958 = vxpose.xlu0.b32.cont [11/16] 0.0, 128
          %959 = vxpose.xlu0.b32.cont [12/16] 0.0, 128
          %960 = vxpose.xlu0.b32.cont [13/16] 0.0, 128
          %961 = vxpose.xlu0.b32.cont [14/16] 0.0, 128
          %962 = vxpose.xlu0.b32.cont [15/16] 0.0, 128
          %963 = vxpose.xlu0.b32.end [16/16] 0.0, 128
          %v964 = vpop.trf.xlu0
          %v965 = vpop.trf.xlu0
          %v966 = vpop.trf.xlu0
          %v967 = vpop.trf.xlu0
          %v968 = vpop.trf.xlu0
          %v969 = vpop.trf.xlu0
          %v970 = vpop.trf.xlu0
          %v971 = vpop.trf.xlu0
          %v972 = vpop.trf.xlu0
          %v973 = vpop.trf.xlu0
          %v974 = vpop.trf.xlu0
          %v975 = vpop.trf.xlu0
          %v976 = vpop.trf.xlu0
          %v977 = vpop.trf.xlu0
          %v978 = vpop.trf.xlu0
          %v979 = vpop.trf.xlu0
          %v980 = vpack.c.bf16 %v965, %v964
          %v981 = vpack.c.bf16 %v967, %v966
          %v982 = vpack.c.bf16 %v969, %v968
          %v983 = vpack.c.bf16 %v971, %v970
          %v984 = vpack.c.bf16 %v973, %v972
          %v985 = vpack.c.bf16 %v975, %v974
          %v986 = vpack.c.bf16 %v977, %v976
          %v987 = vpack.c.bf16 %v979, %v978
          %vm988 = vcmask 64512
          %989 = vst.msk [vmem:[#allocation2] sm:$0xff] %vm988, %v980
          %990 = vst.msk [vmem:[#allocation2 + $0x8] sm:$0xff] %vm988, %v981
          %991 = vst.msk [vmem:[#allocation2 + $0x10] sm:$0xff] %vm988, %v982
          %992 = vst.msk [vmem:[#allocation2 + $0x18] sm:$0xff] %vm988, %v983
          %993 = vst.msk [vmem:[#allocation2 + $0x20] sm:$0xff] %vm988, %v984
          %994 = vst.msk [vmem:[#allocation2 + $0x28] sm:$0xff] %vm988, %v985
          %995 = vst.msk [vmem:[#allocation2 + $0x30] sm:$0xff] %vm988, %v986
          %996 = vst.msk [vmem:[#allocation2 + $0x38] sm:$0xff] %vm988, %v987
          %v997 = vld [vmem:[#allocation15] sm:$0xf]
          %v998 = vld [vmem:[#allocation15 + $0x4] sm:$0xf]
          %v999 = vld [vmem:[#allocation15 + $0x8] sm:$0xf]
          %v1000 = vld [vmem:[#allocation15 + $0xc] sm:$0xf]
          %v1001 = vld [vmem:[#allocation15 + $0x10] sm:$0xf]
          %v1002 = vld [vmem:[#allocation15 + $0x14] sm:$0xf]
          %v1003 = vld [vmem:[#allocation15 + $0x18] sm:$0xf]
          %v1004 = vld [vmem:[#allocation15 + $0x1c] sm:$0xf]
          %v1005 = vld [vmem:[#allocation15 + $0x20] sm:$0xf]
          %v1006 = vld [vmem:[#allocation15 + $0x24] sm:$0xf]
          %v1007 = vld [vmem:[#allocation15 + $0x28] sm:$0xf]
          %v1008 = vld [vmem:[#allocation15 + $0x2c] sm:$0xf]
          %v1009 = vld [vmem:[#allocation15 + $0x30] sm:$0xf]
          %v1010 = vld [vmem:[#allocation15 + $0x34] sm:$0xf]
          %v1011 = vld [vmem:[#allocation15 + $0x38] sm:$0xf]
          %v1012 = vld [vmem:[#allocation15 + $0x3c] sm:$0xf]
          %v1013 = vld [vmem:[#allocation17] sm:$0x1]
          %v1015 = vlaneseq
          %v1016 = vshrl.u32 %v1015, 7
          %v1017 = vsub.s32 0, %v1016
          %v1018 = vrot.slane %v1013, %v1017
          %v1036 = vunpack.c.l.b16 %v997
          %v1037 = vunpack.c.l.b16 %v998
          %v1038 = vunpack.c.l.b16 %v999
          %v1039 = vunpack.c.l.b16 %v1000
          %v1040 = vunpack.c.l.b16 %v1001
          %v1041 = vunpack.c.l.b16 %v1002
          %v1042 = vunpack.c.l.b16 %v1003
          %v1043 = vunpack.c.l.b16 %v1004
          %v1044 = vunpack.c.l.b16 %v1005
          %v1045 = vunpack.c.l.b16 %v1006
          %v1046 = vunpack.c.l.b16 %v1007
          %v1047 = vunpack.c.l.b16 %v1008
          %v1048 = vunpack.c.l.b16 %v1009
          %v1049 = vunpack.c.l.b16 %v1010
          %v1050 = vunpack.c.l.b16 %v1011
          %v1051 = vunpack.c.l.b16 %v1012
          %v1052 = vpack.c.b16 %v1037, %v1036
          %v1053 = vpack.c.b16 %v1039, %v1038
          %v1054 = vpack.c.b16 %v1041, %v1040
          %v1055 = vpack.c.b16 %v1043, %v1042
          %v1056 = vpack.c.b16 %v1045, %v1044
          %v1057 = vpack.c.b16 %v1047, %v1046
          %v1058 = vpack.c.b16 %v1049, %v1048
          %v1059 = vpack.c.b16 %v1051, %v1050
          %1068 = vmatprep.subr.bf16.mxu0 0
          %1069 = vmatpush1.bf16.msra.mxu0 %v1052
          %1070 = vmatprep.subr.bf16.mxu0 0
          %1071 = vmatpush1.bf16.msra.mxu0 %v1053
          %1072 = vmatprep.subr.bf16.mxu0 0
          %1073 = vmatpush1.bf16.msra.mxu0 %v1054
          %1074 = vmatprep.subr.bf16.mxu0 0
          %1075 = vmatpush1.bf16.msra.mxu0 %v1055
          %1076 = vmatprep.subr.bf16.mxu0 0
          %1077 = vmatpush1.bf16.msra.mxu0 %v1056
          %1078 = vmatprep.subr.bf16.mxu0 0
          %1079 = vmatpush1.bf16.msra.mxu0 %v1057
          %1080 = vmatprep.subr.bf16.mxu0 0
          %1081 = vmatpush1.bf16.msra.mxu0 %v1058
          %1082 = vmatprep.subr.bf16.mxu0 0
          %1083 = vmatpush1.bf16.msra.mxu0 %v1059
          %1084 = vmatprep.subr.bf16.mxu0 0
          %1085 = vmatpush1.bf16.msra.mxu0 0
          %1086 = vmatprep.subr.bf16.mxu0 0
          %1087 = vmatpush1.bf16.msra.mxu0 0
          %1088 = vmatprep.subr.bf16.mxu0 0
          %1089 = vmatpush1.bf16.msra.mxu0 0
          %1090 = vmatprep.subr.bf16.mxu0 0
          %1091 = vmatpush1.bf16.msra.mxu0 0
          %1092 = vmatprep.subr.bf16.mxu0 0
          %1093 = vmatpush1.bf16.msra.mxu0 0
          %1094 = vmatprep.subr.bf16.mxu0 0
          %1095 = vmatpush1.bf16.msra.mxu0 0
          %1096 = vmatprep.subr.bf16.mxu0 0
          %1097 = vmatpush1.bf16.msra.mxu0 0
          %1098 = vmatprep.subr.bf16.mxu0 0
          %1099 = vmatpush1.bf16.msra.mxu0 0
          %1100 = vmatprep.mubr.bf16.mxu0 0
          %1101 = vmatmul.mubr.bf16.gmra.mrb[0].mxu0 %v836
          %v1102 = vpop.f32.mrb[0].mxu0
          %v1103 = vadd.f32 %v1018, %v1102
          %v1104 = vpop.f32.mrb[0].mxu0
          %v1105 = vpop.f32.mrb[0].mxu0
          %v1106 = vpop.f32.mrb[0].mxu0
          %1107 = vdwg.mxu0
          %v1108 = vpack.c.bf16 %v1103, %v1103
          %1109 = vst [vmem:[#allocation3] sm:$0xf] %v1108
        $region160: #{tpu_custom_call.1} parent=87 // pred_fallthru
          _
        %s1110 = smul.u32 %s52, 8
        %s1111 = scalar_lea.vmem %s708, %s1110 [#allocation6]
        %v1112 = vld [vmem:[%s1111] sm:$0xff]
        %v1113 = vpack.c.bf16 %v1112, %v1112
        %v1114 = vld [vmem:[#allocation9] sm:$0xf]
        %v1115 = vld [vmem:[#allocation9 + $0x4] sm:$0xf]
        %v1116 = vld [vmem:[#allocation9 + $0x8] sm:$0xf]
        %v1117 = vld [vmem:[#allocation9 + $0xc] sm:$0xf]
        %v1118 = vld [vmem:[#allocation9 + $0x10] sm:$0xf]
        %v1119 = vld [vmem:[#allocation9 + $0x14] sm:$0xf]
        %v1120 = vld [vmem:[#allocation9 + $0x18] sm:$0xf]
        %v1121 = vld [vmem:[#allocation9 + $0x1c] sm:$0xf]
        %v1122 = vld [vmem:[#allocation9 + $0x20] sm:$0xf]
        %v1123 = vld [vmem:[#allocation9 + $0x24] sm:$0xf]
        %v1124 = vld [vmem:[#allocation9 + $0x28] sm:$0xf]
        %v1125 = vld [vmem:[#allocation9 + $0x2c] sm:$0xf]
        %v1126 = vld [vmem:[#allocation9 + $0x30] sm:$0xf]
        %v1127 = vld [vmem:[#allocation9 + $0x34] sm:$0xf]
        %v1128 = vld [vmem:[#allocation9 + $0x38] sm:$0xf]
        %v1129 = vld [vmem:[#allocation9 + $0x3c] sm:$0xf]
        %v1130 = vld [vmem:[#allocation11] sm:$0x1]
        %v1132 = vlaneseq
        %v1133 = vshrl.u32 %v1132, 7
        %v1134 = vsub.s32 0, %v1133
        %v1135 = vrot.slane %v1130, %v1134
        %v1153 = vunpack.c.l.b16 %v1114
        %v1154 = vunpack.c.l.b16 %v1115
        %v1155 = vunpack.c.l.b16 %v1116
        %v1156 = vunpack.c.l.b16 %v1117
        %v1157 = vunpack.c.l.b16 %v1118
        %v1158 = vunpack.c.l.b16 %v1119
        %v1159 = vunpack.c.l.b16 %v1120
        %v1160 = vunpack.c.l.b16 %v1121
        %v1161 = vunpack.c.l.b16 %v1122
        %v1162 = vunpack.c.l.b16 %v1123
        %v1163 = vunpack.c.l.b16 %v1124
        %v1164 = vunpack.c.l.b16 %v1125
        %v1165 = vunpack.c.l.b16 %v1126
        %v1166 = vunpack.c.l.b16 %v1127
        %v1167 = vunpack.c.l.b16 %v1128
        %v1168 = vunpack.c.l.b16 %v1129
        %v1169 = vpack.c.b16 %v1154, %v1153
        %v1170 = vpack.c.b16 %v1156, %v1155
        %v1171 = vpack.c.b16 %v1158, %v1157
        %v1172 = vpack.c.b16 %v1160, %v1159
        %v1173 = vpack.c.b16 %v1162, %v1161
        %v1174 = vpack.c.b16 %v1164, %v1163
        %v1175 = vpack.c.b16 %v1166, %v1165
        %v1176 = vpack.c.b16 %v1168, %v1167
        %1185 = vmatprep.subr.bf16.mxu0 0
        %1186 = vmatpush1.bf16.msra.mxu0 %v1169
        %1187 = vmatprep.subr.bf16.mxu0 0
        %1188 = vmatpush1.bf16.msra.mxu0 %v1170
        %1189 = vmatprep.subr.bf16.mxu0 0
        %1190 = vmatpush1.bf16.msra.mxu0 %v1171
        %1191 = vmatprep.subr.bf16.mxu0 0
        %1192 = vmatpush1.bf16.msra.mxu0 %v1172
        %1193 = vmatprep.subr.bf16.mxu0 0
        %1194 = vmatpush1.bf16.msra.mxu0 %v1173
        %1195 = vmatprep.subr.bf16.mxu0 0
        %1196 = vmatpush1.bf16.msra.mxu0 %v1174
        %1197 = vmatprep.subr.bf16.mxu0 0
        %1198 = vmatpush1.bf16.msra.mxu0 %v1175
        %1199 = vmatprep.subr.bf16.mxu0 0
        %1200 = vmatpush1.bf16.msra.mxu0 %v1176
        %1201 = vmatprep.subr.bf16.mxu0 0
        %1202 = vmatpush1.bf16.msra.mxu0 0
        %1203 = vmatprep.subr.bf16.mxu0 0
        %1204 = vmatpush1.bf16.msra.mxu0 0
        %1205 = vmatprep.subr.bf16.mxu0 0
        %1206 = vmatpush1.bf16.msra.mxu0 0
        %1207 = vmatprep.subr.bf16.mxu0 0
        %1208 = vmatpush1.bf16.msra.mxu0 0
        %1209 = vmatprep.subr.bf16.mxu0 0
        %1210 = vmatpush1.bf16.msra.mxu0 0
        %1211 = vmatprep.subr.bf16.mxu0 0
        %1212 = vmatpush1.bf16.msra.mxu0 0
        %1213 = vmatprep.subr.bf16.mxu0 0
        %1214 = vmatpush1.bf16.msra.mxu0 0
        %1215 = vmatprep.subr.bf16.mxu0 0
        %1216 = vmatpush1.bf16.msra.mxu0 0
        %1217 = vmatprep.mubr.bf16.mxu0 0
        %1218 = vmatmul.mubr.bf16.gmra.mrb[0].mxu0 %v1113
        %v1219 = vpop.f32.mrb[0].mxu0
        %v1220 = vadd.f32 %v1135, %v1219
        %v1221 = vpop.f32.mrb[0].mxu0
        %v1222 = vpop.f32.mrb[0].mxu0
        %v1223 = vpop.f32.mrb[0].mxu0
        %1224 = vdwg.mxu0
        %v1225 = vpack.c.bf16 %v1220, %v1220
        %1226 = vst [vmem:[#allocation4] sm:$0xff] 0.0
        %vm1227 = vcmask 64512
        %1228 = vst.msk [vmem:[%s829] sm:$0xff] %vm1227, 0.0
        %v1229 = vld [vmem:[#allocation2] sm:$0xff]
        %v1230 = vld [vmem:[#allocation2 + $0x8] sm:$0xff]
        %vm1231 = vcmask 261120
        %v1233 = vsel %vm1231, %v1225, 0
        %1235 = vmatprep.subr.bf16.mxu0 0
        %1236 = vmatpush1.bf16.msra.mxu0 %v1229
        %1237 = vmatprep.subr.bf16.mxu0 0
        %1238 = vmatpush1.bf16.msra.mxu0 %v1230
        %1239 = vmatprep.subr.bf16.mxu0 0
        %1240 = vmatpush1.bf16.msra.mxu0 0
        %1241 = vmatprep.subr.bf16.mxu0 0
        %1242 = vmatpush1.bf16.msra.mxu0 0
        %1243 = vmatprep.subr.bf16.mxu0 0
        %1244 = vmatpush1.bf16.msra.mxu0 0
        %1245 = vmatprep.subr.bf16.mxu0 0
        %1246 = vmatpush1.bf16.msra.mxu0 0
        %1247 = vmatprep.subr.bf16.mxu0 0
        %1248 = vmatpush1.bf16.msra.mxu0 0
        %1249 = vmatprep.subr.bf16.mxu0 0
        %1250 = vmatpush1.bf16.msra.mxu0 0
        %1251 = vmatprep.subr.bf16.mxu0 0
        %1252 = vmatpush1.bf16.msra.mxu0 0
        %1253 = vmatprep.subr.bf16.mxu0 0
        %1254 = vmatpush1.bf16.msra.mxu0 0
        %1255 = vmatprep.subr.bf16.mxu0 0
        %1256 = vmatpush1.bf16.msra.mxu0 0
        %1257 = vmatprep.subr.bf16.mxu0 0
        %1258 = vmatpush1.bf16.msra.mxu0 0
        %1259 = vmatprep.subr.bf16.mxu0 0
        %1260 = vmatpush1.bf16.msra.mxu0 0
        %1261 = vmatprep.subr.bf16.mxu0 0
        %1262 = vmatpush1.bf16.msra.mxu0 0
        %1263 = vmatprep.subr.bf16.mxu0 0
        %1264 = vmatpush1.bf16.msra.mxu0 0
        %1265 = vmatprep.subr.bf16.mxu0 0
        %1266 = vmatpush1.bf16.msra.mxu0 0
        %1267 = vmatprep.mubr.bf16.mxu0 0
        %1268 = vmatmul.mubr.bf16.gmra.mrb[0].mxu0 %v1233
        %v1269 = vpop.f32.mrb[0].mxu0
        %v1270 = vadd.f32 0.0, %v1269
        %v1271 = vpop.f32.mrb[0].mxu0
        %v1272 = vpop.f32.mrb[0].mxu0
        %v1273 = vpop.f32.mrb[0].mxu0
        %1274 = vdwg.mxu0
        %v1275 = vsel %vm1227, %v1270, -inf
        %1276 = vmax.xlane.f32.xlu0 %v1275
        %v1277 = vpop.xlane.xlu0 %1276
        %v1278 = vsub.f32 %v1270, %v1277
        %v1279 = vmul.f32 %v1278, 1.442695
        %v1280 = vpow.pop %v1279
        %v1281 = vsel %vm1227, %v1280, 0.0
        %1282 = vadd.xlane.f32.xlu0 %v1281
        %v1283 = vpop.xlane.xlu0 %1282
        %v1284 = vrcp.pop %v1283
        %v1285 = vmul.f32 %v1280, %v1284
        %v1286 = vld [vmem:[%s829] sm:$0xff]
        %v1287 = vadd.f32 %v1286, %v1285
        %1288 = vst.msk [vmem:[%s829] sm:$0xff] %vm1227, %v1287
        %v1289 = vld [vmem:[#allocation3] sm:$0xf]
        %v1290 = vpack.c.bf16 %v1285, %v1285
        %v1292 = vsel %vm1227, %v1290, 0
        %vm1294 = vcmask 1043456
        %v1296 = vsel %vm1294, %v1289, 0
        %1298 = vmatprep.subr.bf16.mxu0 0
        %1299 = vmatpush1.bf16.msra.mxu0 %v1296
        %1300 = vmatprep.subr.bf16.mxu0 0
        %1301 = vmatpush1.bf16.msra.mxu0 0
        %1302 = vmatprep.subr.bf16.mxu0 0
        %1303 = vmatpush1.bf16.msra.mxu0 0
        %1304 = vmatprep.subr.bf16.mxu0 0
        %1305 = vmatpush1.bf16.msra.mxu0 0
        %1306 = vmatprep.subr.bf16.mxu0 0
        %1307 = vmatpush1.bf16.msra.mxu0 0
        %1308 = vmatprep.subr.bf16.mxu0 0
        %1309 = vmatpush1.bf16.msra.mxu0 0
        %1310 = vmatprep.subr.bf16.mxu0 0
        %1311 = vmatpush1.bf16.msra.mxu0 0
        %1312 = vmatprep.subr.bf16.mxu0 0
        %1313 = vmatpush1.bf16.msra.mxu0 0
        %1314 = vmatprep.subr.bf16.mxu0 0
        %1315 = vmatpush1.bf16.msra.mxu0 0
        %1316 = vmatprep.subr.bf16.mxu0 0
        %1317 = vmatpush1.bf16.msra.mxu0 0
        %1318 = vmatprep.subr.bf16.mxu0 0
        %1319 = vmatpush1.bf16.msra.mxu0 0
        %1320 = vmatprep.subr.bf16.mxu0 0
        %1321 = vmatpush1.bf16.msra.mxu0 0
        %1322 = vmatprep.subr.bf16.mxu0 0
        %1323 = vmatpush1.bf16.msra.mxu0 0
        %1324 = vmatprep.subr.bf16.mxu0 0
        %1325 = vmatpush1.bf16.msra.mxu0 0
        %1326 = vmatprep.subr.bf16.mxu0 0
        %1327 = vmatpush1.bf16.msra.mxu0 0
        %1328 = vmatprep.subr.bf16.mxu0 0
        %1329 = vmatpush1.bf16.msra.mxu0 0
        %1330 = vmatprep.mubr.bf16.mxu0 0
        %1331 = vmatmul.mubr.bf16.gmra.mrb[0].mxu0 %v1292
        %v1332 = vpop.f32.mrb[0].mxu0
        %v1333 = vadd.f32 0.0, %v1332
        %v1334 = vpop.f32.mrb[0].mxu0
        %v1335 = vpop.f32.mrb[0].mxu0
        %v1336 = vpop.f32.mrb[0].mxu0
        %1337 = vdwg.mxu0
        %v1338 = vld [vmem:[#allocation4] sm:$0xff]
        %v1339 = vpack.c.bf16 %v1333, %v1333
        %v1340 = vld [vmem:[#allocation18] sm:$0xf]
        %v1341 = vld [vmem:[#allocation18 + $0x4] sm:$0xf]
        %v1342 = vld [vmem:[#allocation18 + $0x8] sm:$0xf]
        %v1343 = vld [vmem:[#allocation18 + $0xc] sm:$0xf]
        %v1348 = vunpack.c.l.b16 %v1340
        %v1349 = vunpack.c.l.b16 %v1341
        %v1350 = vunpack.c.l.b16 %v1342
        %v1351 = vunpack.c.l.b16 %v1343
        %v1352 = vpack.c.b16 %v1349, %v1348
        %v1353 = vpack.c.b16 %v1351, %v1350
        %v1357 = vsel %vm1231, %v1339, 0
        %1359 = vmatprep.subr.bf16.mxu0 0
        %1360 = vmatpush1.bf16.msra.mxu0 %v1352
        %1361 = vmatprep.subr.bf16.mxu0 0
        %1362 = vmatpush1.bf16.msra.mxu0 %v1353
        %1363 = vmatprep.subr.bf16.mxu0 0
        %1364 = vmatpush1.bf16.msra.mxu0 0
        %1365 = vmatprep.subr.bf16.mxu0 0
        %1366 = vmatpush1.bf16.msra.mxu0 0
        %1367 = vmatprep.subr.bf16.mxu0 0
        %1368 = vmatpush1.bf16.msra.mxu0 0
        %1369 = vmatprep.subr.bf16.mxu0 0
        %1370 = vmatpush1.bf16.msra.mxu0 0
        %1371 = vmatprep.subr.bf16.mxu0 0
        %1372 = vmatpush1.bf16.msra.mxu0 0
        %1373 = vmatprep.subr.bf16.mxu0 0
        %1374 = vmatpush1.bf16.msra.mxu0 0
        %1375 = vmatprep.subr.bf16.mxu0 0
        %1376 = vmatpush1.bf16.msra.mxu0 0
        %1377 = vmatprep.subr.bf16.mxu0 0
        %1378 = vmatpush1.bf16.msra.mxu0 0
        %1379 = vmatprep.subr.bf16.mxu0 0
        %1380 = vmatpush1.bf16.msra.mxu0 0
        %1381 = vmatprep.subr.bf16.mxu0 0
        %1382 = vmatpush1.bf16.msra.mxu0 0
        %1383 = vmatprep.subr.bf16.mxu0 0
        %1384 = vmatpush1.bf16.msra.mxu0 0
        %1385 = vmatprep.subr.bf16.mxu0 0
        %1386 = vmatpush1.bf16.msra.mxu0 0
        %1387 = vmatprep.subr.bf16.mxu0 0
        %1388 = vmatpush1.bf16.msra.mxu0 0
        %1389 = vmatprep.subr.bf16.mxu0 0
        %1390 = vmatpush1.bf16.msra.mxu0 0
        %1391 = vmatprep.mubr.bf16.mxu0 0
        %1392 = vmatmul.mubr.bf16.gmra.mrb[0].mxu0 %v1357
        %v1393 = vpop.f32.mrb[0].mxu0
        %v1394 = vadd.f32 0.0, %v1393
        %v1395 = vpop.f32.mrb[0].mxu0
        %v1396 = vpop.f32.mrb[0].mxu0
        %v1397 = vpop.f32.mrb[0].mxu0
        %1398 = vdwg.mxu0
        %v1399 = vadd.f32 %v1338, %v1394
        %1400 = vst [vmem:[#allocation4] sm:$0xff] %v1399
        %v1401 = vld [vmem:[#allocation2 + $0x10] sm:$0xff]
        %v1402 = vld [vmem:[#allocation2 + $0x18] sm:$0xff]
        %1404 = vrot.lane.b32.xlu0 %v1225, 96
        %v1405 = vpop.permute.xlu0 %1404
        %v1407 = vsel %vm1231, %v1405, 0
        %1409 = vmatprep.subr.bf16.mxu0 0
        %1410 = vmatpush1.bf16.msra.mxu0 %v1401
        %1411 = vmatprep.subr.bf16.mxu0 0
        %1412 = vmatpush1.bf16.msra.mxu0 %v1402
        %1413 = vmatprep.subr.bf16.mxu0 0
        %1414 = vmatpush1.bf16.msra.mxu0 0
        %1415 = vmatprep.subr.bf16.mxu0 0
        %1416 = vmatpush1.bf16.msra.mxu0 0
        %1417 = vmatprep.subr.bf16.mxu0 0
        %1418 = vmatpush1.bf16.msra.mxu0 0
        %1419 = vmatprep.subr.bf16.mxu0 0
        %1420 = vmatpush1.bf16.msra.mxu0 0
        %1421 = vmatprep.subr.bf16.mxu0 0
        %1422 = vmatpush1.bf16.msra.mxu0 0
        %1423 = vmatprep.subr.bf16.mxu0 0
        %1424 = vmatpush1.bf16.msra.mxu0 0
        %1425 = vmatprep.subr.bf16.mxu0 0
        %1426 = vmatpush1.bf16.msra.mxu0 0
        %1427 = vmatprep.subr.bf16.mxu0 0
        %1428 = vmatpush1.bf16.msra.mxu0 0
        %1429 = vmatprep.subr.bf16.mxu0 0
        %1430 = vmatpush1.bf16.msra.mxu0 0
        %1431 = vmatprep.subr.bf16.mxu0 0
        %1432 = vmatpush1.bf16.msra.mxu0 0
        %1433 = vmatprep.subr.bf16.mxu0 0
        %1434 = vmatpush1.bf16.msra.mxu0 0
        %1435 = vmatprep.subr.bf16.mxu0 0
        %1436 = vmatpush1.bf16.msra.mxu0 0
        %1437 = vmatprep.subr.bf16.mxu0 0
        %1438 = vmatpush1.bf16.msra.mxu0 0
        %1439 = vmatprep.subr.bf16.mxu0 0
        %1440 = vmatpush1.bf16.msra.mxu0 0
        %1441 = vmatprep.mubr.bf16.mxu0 0
        %1442 = vmatmul.mubr.bf16.gmra.mrb[0].mxu0 %v1407
        %v1443 = vpop.f32.mrb[0].mxu0
        %v1444 = vadd.f32 0.0, %v1443
        %v1445 = vpop.f32.mrb[0].mxu0
        %v1446 = vpop.f32.mrb[0].mxu0
        %v1447 = vpop.f32.mrb[0].mxu0
        %1448 = vdwg.mxu0
        %v1449 = vsel %vm1227, %v1444, -inf
        %1450 = vmax.xlane.f32.xlu0 %v1449
        %v1451 = vpop.xlane.xlu0 %1450
        %v1452 = vsub.f32 %v1444, %v1451
        %v1453 = vmul.f32 %v1452, 1.442695
        %v1454 = vpow.pop %v1453
        %v1455 = vsel %vm1227, %v1454, 0.0
        %1456 = vadd.xlane.f32.xlu0 %v1455
        %v1457 = vpop.xlane.xlu0 %1456
        %v1458 = vrcp.pop %v1457
        %v1459 = vmul.f32 %v1454, %v1458
        %v1460 = vld [vmem:[%s829] sm:$0xff]
        %v1461 = vadd.f32 %v1460, %v1459
        %1462 = vst.msk [vmem:[%s829] sm:$0xff] %vm1227, %v1461
        %v1463 = vld [vmem:[#allocation3] sm:$0xf]
        %v1464 = vpack.c.bf16 %v1459, %v1459
        %v1466 = vunpack.c.l.b16 %v1463
        %v1467 = vpack.c.b16 %v1466, %v1466
        %1468 = vrot.lane.b32.xlu0 %v1467, 96
        %v1469 = vpop.permute.xlu0 %1468
        %v1471 = vsel %vm1227, %v1464, 0
        %v1474 = vsel %vm1294, %v1469, 0
        %1476 = vmatprep.subr.bf16.mxu0 0
        %1477 = vmatpush1.bf16.msra.mxu0 %v1474
        %1478 = vmatprep.subr.bf16.mxu0 0
        %1479 = vmatpush1.bf16.msra.mxu0 0
        %1480 = vmatprep.subr.bf16.mxu0 0
        %1481 = vmatpush1.bf16.msra.mxu0 0
        %1482 = vmatprep.subr.bf16.mxu0 0
        %1483 = vmatpush1.bf16.msra.mxu0 0
        %1484 = vmatprep.subr.bf16.mxu0 0
        %1485 = vmatpush1.bf16.msra.mxu0 0
        %1486 = vmatprep.subr.bf16.mxu0 0
        %1487 = vmatpush1.bf16.msra.mxu0 0
        %1488 = vmatprep.subr.bf16.mxu0 0
        %1489 = vmatpush1.bf16.msra.mxu0 0
        %1490 = vmatprep.subr.bf16.mxu0 0
        %1491 = vmatpush1.bf16.msra.mxu0 0
        %1492 = vmatprep.subr.bf16.mxu0 0
        %1493 = vmatpush1.bf16.msra.mxu0 0
        %1494 = vmatprep.subr.bf16.mxu0 0
        %1495 = vmatpush1.bf16.msra.mxu0 0
        %1496 = vmatprep.subr.bf16.mxu0 0
        %1497 = vmatpush1.bf16.msra.mxu0 0
        %1498 = vmatprep.subr.bf16.mxu0 0
        %1499 = vmatpush1.bf16.msra.mxu0 0
        %1500 = vmatprep.subr.bf16.mxu0 0
        %1501 = vmatpush1.bf16.msra.mxu0 0
        %1502 = vmatprep.subr.bf16.mxu0 0
        %1503 = vmatpush1.bf16.msra.mxu0 0
        %1504 = vmatprep.subr.bf16.mxu0 0
        %1505 = vmatpush1.bf16.msra.mxu0 0
        %1506 = vmatprep.subr.bf16.mxu0 0
        %1507 = vmatpush1.bf16.msra.mxu0 0
        %1508 = vmatprep.mubr.bf16.mxu0 0
        %1509 = vmatmul.mubr.bf16.gmra.mrb[0].mxu0 %v1471
        %v1510 = vpop.f32.mrb[0].mxu0
        %v1511 = vadd.f32 0.0, %v1510
        %v1512 = vpop.f32.mrb[0].mxu0
        %v1513 = vpop.f32.mrb[0].mxu0
        %v1514 = vpop.f32.mrb[0].mxu0
        %1515 = vdwg.mxu0
        %v1516 = vld [vmem:[#allocation4] sm:$0xff]
        %v1517 = vpack.c.bf16 %v1511, %v1511
        %v1518 = vld [vmem:[#allocation18 + $0x10] sm:$0xf]
        %v1519 = vld [vmem:[#allocation18 + $0x14] sm:$0xf]
        %v1520 = vld [vmem:[#allocation18 + $0x18] sm:$0xf]
        %v1521 = vld [vmem:[#allocation18 + $0x1c] sm:$0xf]
        %v1526 = vunpack.c.l.b16 %v1518
        %v1527 = vunpack.c.l.b16 %v1519
        %v1528 = vunpack.c.l.b16 %v1520
        %v1529 = vunpack.c.l.b16 %v1521
        %v1530 = vpack.c.b16 %v1527, %v1526
        %v1531 = vpack.c.b16 %v1529, %v1528
        %v1535 = vsel %vm1231, %v1517, 0
        %1537 = vmatprep.subr.bf16.mxu0 0
        %1538 = vmatpush1.bf16.msra.mxu0 %v1530
        %1539 = vmatprep.subr.bf16.mxu0 0
        %1540 = vmatpush1.bf16.msra.mxu0 %v1531
        %1541 = vmatprep.subr.bf16.mxu0 0
        %1542 = vmatpush1.bf16.msra.mxu0 0
        %1543 = vmatprep.subr.bf16.mxu0 0
        %1544 = vmatpush1.bf16.msra.mxu0 0
        %1545 = vmatprep.subr.bf16.mxu0 0
        %1546 = vmatpush1.bf16.msra.mxu0 0
        %1547 = vmatprep.subr.bf16.mxu0 0
        %1548 = vmatpush1.bf16.msra.mxu0 0
        %1549 = vmatprep.subr.bf16.mxu0 0
        %1550 = vmatpush1.bf16.msra.mxu0 0
        %1551 = vmatprep.subr.bf16.mxu0 0
        %1552 = vmatpush1.bf16.msra.mxu0 0
        %1553 = vmatprep.subr.bf16.mxu0 0
        %1554 = vmatpush1.bf16.msra.mxu0 0
        %1555 = vmatprep.subr.bf16.mxu0 0
        %1556 = vmatpush1.bf16.msra.mxu0 0
        %1557 = vmatprep.subr.bf16.mxu0 0
        %1558 = vmatpush1.bf16.msra.mxu0 0
        %1559 = vmatprep.subr.bf16.mxu0 0
        %1560 = vmatpush1.bf16.msra.mxu0 0
        %1561 = vmatprep.subr.bf16.mxu0 0
        %1562 = vmatpush1.bf16.msra.mxu0 0
        %1563 = vmatprep.subr.bf16.mxu0 0
        %1564 = vmatpush1.bf16.msra.mxu0 0
        %1565 = vmatprep.subr.bf16.mxu0 0
        %1566 = vmatpush1.bf16.msra.mxu0 0
        %1567 = vmatprep.subr.bf16.mxu0 0
        %1568 = vmatpush1.bf16.msra.mxu0 0
        %1569 = vmatprep.mubr.bf16.mxu0 0
        %1570 = vmatmul.mubr.bf16.gmra.mrb[0].mxu0 %v1535
        %v1571 = vpop.f32.mrb[0].mxu0
        %v1572 = vadd.f32 0.0, %v1571
        %v1573 = vpop.f32.mrb[0].mxu0
        %v1574 = vpop.f32.mrb[0].mxu0
        %v1575 = vpop.f32.mrb[0].mxu0
        %1576 = vdwg.mxu0
        %v1577 = vadd.f32 %v1516, %v1572
        %1578 = vst [vmem:[#allocation4] sm:$0xff] %v1577
        %v1579 = vld [vmem:[#allocation2 + $0x20] sm:$0xff]
        %v1580 = vld [vmem:[#allocation2 + $0x28] sm:$0xff]
        %1581 = vrot.lane.b32.xlu0 %v1225, 64
        %v1582 = vpop.permute.xlu0 %1581
        %v1584 = vsel %vm1231, %v1582, 0
        %1586 = vmatprep.subr.bf16.mxu0 0
        %1587 = vmatpush1.bf16.msra.mxu0 %v1579
        %1588 = vmatprep.subr.bf16.mxu0 0
        %1589 = vmatpush1.bf16.msra.mxu0 %v1580
        %1590 = vmatprep.subr.bf16.mxu0 0
        %1591 = vmatpush1.bf16.msra.mxu0 0
        %1592 = vmatprep.subr.bf16.mxu0 0
        %1593 = vmatpush1.bf16.msra.mxu0 0
        %1594 = vmatprep.subr.bf16.mxu0 0
        %1595 = vmatpush1.bf16.msra.mxu0 0
        %1596 = vmatprep.subr.bf16.mxu0 0
        %1597 = vmatpush1.bf16.msra.mxu0 0
        %1598 = vmatprep.subr.bf16.mxu0 0
        %1599 = vmatpush1.bf16.msra.mxu0 0
        %1600 = vmatprep.subr.bf16.mxu0 0
        %1601 = vmatpush1.bf16.msra.mxu0 0
        %1602 = vmatprep.subr.bf16.mxu0 0
        %1603 = vmatpush1.bf16.msra.mxu0 0
        %1604 = vmatprep.subr.bf16.mxu0 0
        %1605 = vmatpush1.bf16.msra.mxu0 0
        %1606 = vmatprep.subr.bf16.mxu0 0
        %1607 = vmatpush1.bf16.msra.mxu0 0
        %1608 = vmatprep.subr.bf16.mxu0 0
        %1609 = vmatpush1.bf16.msra.mxu0 0
        %1610 = vmatprep.subr.bf16.mxu0 0
        %1611 = vmatpush1.bf16.msra.mxu0 0
        %1612 = vmatprep.subr.bf16.mxu0 0
        %1613 = vmatpush1.bf16.msra.mxu0 0
        %1614 = vmatprep.subr.bf16.mxu0 0
        %1615 = vmatpush1.bf16.msra.mxu0 0
        %1616 = vmatprep.subr.bf16.mxu0 0
        %1617 = vmatpush1.bf16.msra.mxu0 0
        %1618 = vmatprep.mubr.bf16.mxu0 0
        %1619 = vmatmul.mubr.bf16.gmra.mrb[0].mxu0 %v1584
        %v1620 = vpop.f32.mrb[0].mxu0
        %v1621 = vadd.f32 0.0, %v1620
        %v1622 = vpop.f32.mrb[0].mxu0
        %v1623 = vpop.f32.mrb[0].mxu0
        %v1624 = vpop.f32.mrb[0].mxu0
        %1625 = vdwg.mxu0
        %v1626 = vsel %vm1227, %v1621, -inf
        %1627 = vmax.xlane.f32.xlu0 %v1626
        %v1628 = vpop.xlane.xlu0 %1627
        %v1629 = vsub.f32 %v1621, %v1628
        %v1630 = vmul.f32 %v1629, 1.442695
        %v1631 = vpow.pop %v1630
        %v1632 = vsel %vm1227, %v1631, 0.0
        %1633 = vadd.xlane.f32.xlu0 %v1632
        %v1634 = vpop.xlane.xlu0 %1633
        %v1635 = vrcp.pop %v1634
        %v1636 = vmul.f32 %v1631, %v1635
        %v1637 = vld [vmem:[%s829] sm:$0xff]
        %v1638 = vadd.f32 %v1637, %v1636
        %1639 = vst.msk [vmem:[%s829] sm:$0xff] %vm1227, %v1638
        %v1640 = vld [vmem:[#allocation3] sm:$0xf]
        %v1641 = vpack.c.bf16 %v1636, %v1636
        %v1643 = vunpack.c.l.b16 %v1640
        %v1644 = vpack.c.b16 %v1643, %v1643
        %1645 = vrot.lane.b32.xlu0 %v1644, 64
        %v1646 = vpop.permute.xlu0 %1645
        %v1648 = vsel %vm1227, %v1641, 0
        %v1651 = vsel %vm1294, %v1646, 0
        %1653 = vmatprep.subr.bf16.mxu0 0
        %1654 = vmatpush1.bf16.msra.mxu0 %v1651
        %1655 = vmatprep.subr.bf16.mxu0 0
        %1656 = vmatpush1.bf16.msra.mxu0 0
        %1657 = vmatprep.subr.bf16.mxu0 0
        %1658 = vmatpush1.bf16.msra.mxu0 0
        %1659 = vmatprep.subr.bf16.mxu0 0
        %1660 = vmatpush1.bf16.msra.mxu0 0
        %1661 = vmatprep.subr.bf16.mxu0 0
        %1662 = vmatpush1.bf16.msra.mxu0 0
        %1663 = vmatprep.subr.bf16.mxu0 0
        %1664 = vmatpush1.bf16.msra.mxu0 0
        %1665 = vmatprep.subr.bf16.mxu0 0
        %1666 = vmatpush1.bf16.msra.mxu0 0
        %1667 = vmatprep.subr.bf16.mxu0 0
        %1668 = vmatpush1.bf16.msra.mxu0 0
        %1669 = vmatprep.subr.bf16.mxu0 0
        %1670 = vmatpush1.bf16.msra.mxu0 0
        %1671 = vmatprep.subr.bf16.mxu0 0
        %1672 = vmatpush1.bf16.msra.mxu0 0
        %1673 = vmatprep.subr.bf16.mxu0 0
        %1674 = vmatpush1.bf16.msra.mxu0 0
        %1675 = vmatprep.subr.bf16.mxu0 0
        %1676 = vmatpush1.bf16.msra.mxu0 0
        %1677 = vmatprep.subr.bf16.mxu0 0
        %1678 = vmatpush1.bf16.msra.mxu0 0
        %1679 = vmatprep.subr.bf16.mxu0 0
        %1680 = vmatpush1.bf16.msra.mxu0 0
        %1681 = vmatprep.subr.bf16.mxu0 0
        %1682 = vmatpush1.bf16.msra.mxu0 0
        %1683 = vmatprep.subr.bf16.mxu0 0
        %1684 = vmatpush1.bf16.msra.mxu0 0
        %1685 = vmatprep.mubr.bf16.mxu0 0
        %1686 = vmatmul.mubr.bf16.gmra.mrb[0].mxu0 %v1648
        %v1687 = vpop.f32.mrb[0].mxu0
        %v1688 = vadd.f32 0.0, %v1687
        %v1689 = vpop.f32.mrb[0].mxu0
        %v1690 = vpop.f32.mrb[0].mxu0
        %v1691 = vpop.f32.mrb[0].mxu0
        %1692 = vdwg.mxu0
        %v1693 = vld [vmem:[#allocation4] sm:$0xff]
        %v1694 = vpack.c.bf16 %v1688, %v1688
        %v1695 = vld [vmem:[#allocation18 + $0x20] sm:$0xf]
        %v1696 = vld [vmem:[#allocation18 + $0x24] sm:$0xf]
        %v1697 = vld [vmem:[#allocation18 + $0x28] sm:$0xf]
        %v1698 = vld [vmem:[#allocation18 + $0x2c] sm:$0xf]
        %v1703 = vunpack.c.l.b16 %v1695
        %v1704 = vunpack.c.l.b16 %v1696
        %v1705 = vunpack.c.l.b16 %v1697
        %v1706 = vunpack.c.l.b16 %v1698
        %v1707 = vpack.c.b16 %v1704, %v1703
        %v1708 = vpack.c.b16 %v1706, %v1705
        %v1712 = vsel %vm1231, %v1694, 0
        %1714 = vmatprep.subr.bf16.mxu0 0
        %1715 = vmatpush1.bf16.msra.mxu0 %v1707
        %1716 = vmatprep.subr.bf16.mxu0 0
        %1717 = vmatpush1.bf16.msra.mxu0 %v1708
        %1718 = vmatprep.subr.bf16.mxu0 0
        %1719 = vmatpush1.bf16.msra.mxu0 0
        %1720 = vmatprep.subr.bf16.mxu0 0
        %1721 = vmatpush1.bf16.msra.mxu0 0
        %1722 = vmatprep.subr.bf16.mxu0 0
        %1723 = vmatpush1.bf16.msra.mxu0 0
        %1724 = vmatprep.subr.bf16.mxu0 0
        %1725 = vmatpush1.bf16.msra.mxu0 0
        %1726 = vmatprep.subr.bf16.mxu0 0
        %1727 = vmatpush1.bf16.msra.mxu0 0
        %1728 = vmatprep.subr.bf16.mxu0 0
        %1729 = vmatpush1.bf16.msra.mxu0 0
        %1730 = vmatprep.subr.bf16.mxu0 0
        %1731 = vmatpush1.bf16.msra.mxu0 0
        %1732 = vmatprep.subr.bf16.mxu0 0
        %1733 = vmatpush1.bf16.msra.mxu0 0
        %1734 = vmatprep.subr.bf16.mxu0 0
        %1735 = vmatpush1.bf16.msra.mxu0 0
        %1736 = vmatprep.subr.bf16.mxu0 0
        %1737 = vmatpush1.bf16.msra.mxu0 0
        %1738 = vmatprep.subr.bf16.mxu0 0
        %1739 = vmatpush1.bf16.msra.mxu0 0
        %1740 = vmatprep.subr.bf16.mxu0 0
        %1741 = vmatpush1.bf16.msra.mxu0 0
        %1742 = vmatprep.subr.bf16.mxu0 0
        %1743 = vmatpush1.bf16.msra.mxu0 0
        %1744 = vmatprep.subr.bf16.mxu0 0
        %1745 = vmatpush1.bf16.msra.mxu0 0
        %1746 = vmatprep.mubr.bf16.mxu0 0
        %1747 = vmatmul.mubr.bf16.gmra.mrb[0].mxu0 %v1712
        %v1748 = vpop.f32.mrb[0].mxu0
        %v1749 = vadd.f32 0.0, %v1748
        %v1750 = vpop.f32.mrb[0].mxu0
        %v1751 = vpop.f32.mrb[0].mxu0
        %v1752 = vpop.f32.mrb[0].mxu0
        %1753 = vdwg.mxu0
        %v1754 = vadd.f32 %v1693, %v1749
        %1755 = vst [vmem:[#allocation4] sm:$0xff] %v1754
        %v1756 = vld [vmem:[#allocation2 + $0x30] sm:$0xff]
        %v1757 = vld [vmem:[#allocation2 + $0x38] sm:$0xff]
        %1758 = vrot.lane.b32.xlu0 %v1225, 32
        %v1759 = vpop.permute.xlu0 %1758
        %v1761 = vsel %vm1231, %v1759, 0
        %1763 = vmatprep.subr.bf16.mxu0 0
        %1764 = vmatpush1.bf16.msra.mxu0 %v1756
        %1765 = vmatprep.subr.bf16.mxu0 0
        %1766 = vmatpush1.bf16.msra.mxu0 %v1757
        %1767 = vmatprep.subr.bf16.mxu0 0
        %1768 = vmatpush1.bf16.msra.mxu0 0
        %1769 = vmatprep.subr.bf16.mxu0 0
        %1770 = vmatpush1.bf16.msra.mxu0 0
        %1771 = vmatprep.subr.bf16.mxu0 0
        %1772 = vmatpush1.bf16.msra.mxu0 0
        %1773 = vmatprep.subr.bf16.mxu0 0
        %1774 = vmatpush1.bf16.msra.mxu0 0
        %1775 = vmatprep.subr.bf16.mxu0 0
        %1776 = vmatpush1.bf16.msra.mxu0 0
        %1777 = vmatprep.subr.bf16.mxu0 0
        %1778 = vmatpush1.bf16.msra.mxu0 0
        %1779 = vmatprep.subr.bf16.mxu0 0
        %1780 = vmatpush1.bf16.msra.mxu0 0
        %1781 = vmatprep.subr.bf16.mxu0 0
        %1782 = vmatpush1.bf16.msra.mxu0 0
        %1783 = vmatprep.subr.bf16.mxu0 0
        %1784 = vmatpush1.bf16.msra.mxu0 0
        %1785 = vmatprep.subr.bf16.mxu0 0
        %1786 = vmatpush1.bf16.msra.mxu0 0
        %1787 = vmatprep.subr.bf16.mxu0 0
        %1788 = vmatpush1.bf16.msra.mxu0 0
        %1789 = vmatprep.subr.bf16.mxu0 0
        %1790 = vmatpush1.bf16.msra.mxu0 0
        %1791 = vmatprep.subr.bf16.mxu0 0
        %1792 = vmatpush1.bf16.msra.mxu0 0
        %1793 = vmatprep.subr.bf16.mxu0 0
        %1794 = vmatpush1.bf16.msra.mxu0 0
        %1795 = vmatprep.mubr.bf16.mxu0 0
        %1796 = vmatmul.mubr.bf16.gmra.mrb[0].mxu0 %v1761
        %v1797 = vpop.f32.mrb[0].mxu0
        %v1798 = vadd.f32 0.0, %v1797
        %v1799 = vpop.f32.mrb[0].mxu0
        %v1800 = vpop.f32.mrb[0].mxu0
        %v1801 = vpop.f32.mrb[0].mxu0
        %1802 = vdwg.mxu0
        %v1803 = vsel %vm1227, %v1798, -inf
        %1804 = vmax.xlane.f32.xlu0 %v1803
        %v1805 = vpop.xlane.xlu0 %1804
        %v1806 = vsub.f32 %v1798, %v1805
        %v1807 = vmul.f32 %v1806, 1.442695
        %v1808 = vpow.pop %v1807
        %v1809 = vsel %vm1227, %v1808, 0.0
        %1810 = vadd.xlane.f32.xlu0 %v1809
        %v1811 = vpop.xlane.xlu0 %1810
        %v1812 = vrcp.pop %v1811
        %v1813 = vmul.f32 %v1808, %v1812
        %v1814 = vld [vmem:[%s829] sm:$0xff]
        %v1815 = vadd.f32 %v1814, %v1813
        %1816 = vst.msk [vmem:[%s829] sm:$0xff] %vm1227, %v1815
        %v1817 = vld [vmem:[#allocation3] sm:$0xf]
        %v1818 = vpack.c.bf16 %v1813, %v1813
        %v1820 = vunpack.c.l.b16 %v1817
        %v1821 = vpack.c.b16 %v1820, %v1820
        %1822 = vrot.lane.b32.xlu0 %v1821, 32
        %v1823 = vpop.permute.xlu0 %1822
        %v1825 = vsel %vm1227, %v1818, 0
        %v1828 = vsel %vm1294, %v1823, 0
        %1830 = vmatprep.subr.bf16.mxu0 0
        %1831 = vmatpush1.bf16.msra.mxu0 %v1828
        %1832 = vmatprep.subr.bf16.mxu0 0
        %1833 = vmatpush1.bf16.msra.mxu0 0
        %1834 = vmatprep.subr.bf16.mxu0 0
        %1835 = vmatpush1.bf16.msra.mxu0 0
        %1836 = vmatprep.subr.bf16.mxu0 0
        %1837 = vmatpush1.bf16.msra.mxu0 0
        %1838 = vmatprep.subr.bf16.mxu0 0
        %1839 = vmatpush1.bf16.msra.mxu0 0
        %1840 = vmatprep.subr.bf16.mxu0 0
        %1841 = vmatpush1.bf16.msra.mxu0 0
        %1842 = vmatprep.subr.bf16.mxu0 0
        %1843 = vmatpush1.bf16.msra.mxu0 0
        %1844 = vmatprep.subr.bf16.mxu0 0
        %1845 = vmatpush1.bf16.msra.mxu0 0
        %1846 = vmatprep.subr.bf16.mxu0 0
        %1847 = vmatpush1.bf16.msra.mxu0 0
        %1848 = vmatprep.subr.bf16.mxu0 0
        %1849 = vmatpush1.bf16.msra.mxu0 0
        %1850 = vmatprep.subr.bf16.mxu0 0
        %1851 = vmatpush1.bf16.msra.mxu0 0
        %1852 = vmatprep.subr.bf16.mxu0 0
        %1853 = vmatpush1.bf16.msra.mxu0 0
        %1854 = vmatprep.subr.bf16.mxu0 0
        %1855 = vmatpush1.bf16.msra.mxu0 0
        %1856 = vmatprep.subr.bf16.mxu0 0
        %1857 = vmatpush1.bf16.msra.mxu0 0
        %1858 = vmatprep.subr.bf16.mxu0 0
        %1859 = vmatpush1.bf16.msra.mxu0 0
        %1860 = vmatprep.subr.bf16.mxu0 0
        %1861 = vmatpush1.bf16.msra.mxu0 0
        %1862 = vmatprep.mubr.bf16.mxu0 0
        %1863 = vmatmul.mubr.bf16.gmra.mrb[0].mxu0 %v1825
        %v1864 = vpop.f32.mrb[0].mxu0
        %v1865 = vadd.f32 0.0, %v1864
        %v1866 = vpop.f32.mrb[0].mxu0
        %v1867 = vpop.f32.mrb[0].mxu0
        %v1868 = vpop.f32.mrb[0].mxu0
        %1869 = vdwg.mxu0
        %v1870 = vld [vmem:[#allocation4] sm:$0xff]
        %v1871 = vpack.c.bf16 %v1865, %v1865
        %v1872 = vld [vmem:[#allocation18 + $0x30] sm:$0xf]
        %v1873 = vld [vmem:[#allocation18 + $0x34] sm:$0xf]
        %v1874 = vld [vmem:[#allocation18 + $0x38] sm:$0xf]
        %v1875 = vld [vmem:[#allocation18 + $0x3c] sm:$0xf]
        %v1880 = vunpack.c.l.b16 %v1872
        %v1881 = vunpack.c.l.b16 %v1873
        %v1882 = vunpack.c.l.b16 %v1874
        %v1883 = vunpack.c.l.b16 %v1875
        %v1884 = vpack.c.b16 %v1881, %v1880
        %v1885 = vpack.c.b16 %v1883, %v1882
        %v1889 = vsel %vm1231, %v1871, 0
        %1891 = vmatprep.subr.bf16.mxu0 0
        %1892 = vmatpush1.bf16.msra.mxu0 %v1884
        %1893 = vmatprep.subr.bf16.mxu0 0
        %1894 = vmatpush1.bf16.msra.mxu0 %v1885
        %1895 = vmatprep.subr.bf16.mxu0 0
        %1896 = vmatpush1.bf16.msra.mxu0 0
        %1897 = vmatprep.subr.bf16.mxu0 0
        %1898 = vmatpush1.bf16.msra.mxu0 0
        %1899 = vmatprep.subr.bf16.mxu0 0
        %1900 = vmatpush1.bf16.msra.mxu0 0
        %1901 = vmatprep.subr.bf16.mxu0 0
        %1902 = vmatpush1.bf16.msra.mxu0 0
        %1903 = vmatprep.subr.bf16.mxu0 0
        %1904 = vmatpush1.bf16.msra.mxu0 0
        %1905 = vmatprep.subr.bf16.mxu0 0
        %1906 = vmatpush1.bf16.msra.mxu0 0
        %1907 = vmatprep.subr.bf16.mxu0 0
        %1908 = vmatpush1.bf16.msra.mxu0 0
        %1909 = vmatprep.subr.bf16.mxu0 0
        %1910 = vmatpush1.bf16.msra.mxu0 0
        %1911 = vmatprep.subr.bf16.mxu0 0
        %1912 = vmatpush1.bf16.msra.mxu0 0
        %1913 = vmatprep.subr.bf16.mxu0 0
        %1914 = vmatpush1.bf16.msra.mxu0 0
        %1915 = vmatprep.subr.bf16.mxu0 0
        %1916 = vmatpush1.bf16.msra.mxu0 0
        %1917 = vmatprep.subr.bf16.mxu0 0
        %1918 = vmatpush1.bf16.msra.mxu0 0
        %1919 = vmatprep.subr.bf16.mxu0 0
        %1920 = vmatpush1.bf16.msra.mxu0 0
        %1921 = vmatprep.subr.bf16.mxu0 0
        %1922 = vmatpush1.bf16.msra.mxu0 0
        %1923 = vmatprep.mubr.bf16.mxu0 0
        %1924 = vmatmul.mubr.bf16.gmra.mrb[0].mxu0 %v1889
        %v1925 = vpop.f32.mrb[0].mxu0
        %v1926 = vadd.f32 0.0, %v1925
        %v1927 = vpop.f32.mrb[0].mxu0
        %v1928 = vpop.f32.mrb[0].mxu0
        %v1929 = vpop.f32.mrb[0].mxu0
        %1930 = vdwg.mxu0
        %v1931 = vadd.f32 %v1870, %v1926
        %1932 = vst [vmem:[#allocation4] sm:$0xff] %v1931
        %v1933 = vld [vmem:[%s829] sm:$0xff]
        %v1934 = vmul.f32 %v1933, 0.25
        %1935 = vst.msk [vmem:[%s829] sm:$0xff] %vm1227, %v1934
        %v1936 = vld [vmem:[#allocation4] sm:$0xff]
        %v1937 = vld [vmem:[#allocation20] sm:$0x1]
        %v1939 = vlaneseq
        %v1940 = vshrl.u32 %v1939, 7
        %v1941 = vsub.s32 0, %v1940
        %v1942 = vrot.slane %v1937, %v1941
        %v1944 = vadd.f32 %v1936, %v1942
        %v1945 = vadd.f32 %v1112, %v1944
        %v1946 = vld [vmem:[#allocation27] sm:$0x1]
        %v1947 = vld [vmem:[#allocation29] sm:$0x1]
        %1948 = vadd.xlane.f32.xlu0 %v1945
        %v1949 = vpop.xlane.xlu0 %1948
        %v1950 = vrcp.pop 128.0
        %v1951 = vmul.f32 %v1949, %v1950
        %v1952 = vsub.f32 %v1945, %v1951
        %v1953 = vmul.f32 %v1952, %v1952
        %1954 = vadd.xlane.f32.xlu0 %v1953
        %v1955 = vpop.xlane.xlu0 %1954
        %v1956 = vmul.f32 %v1955, %v1950
        %v1957 = vadd.f32 %v1956, 1e-05
        %v1958 = vrsqrt.pop %v1957
        %v1959 = vmul.f32 %v1952, %v1958
        %v1961 = vlaneseq
        %v1962 = vshrl.u32 %v1961, 7
        %v1963 = vsub.s32 0, %v1962
        %v1964 = vrot.slane %v1946, %v1963
        %v1966 = vmul.f32 %v1959, %v1964
        %v1968 = vlaneseq
        %v1969 = vshrl.u32 %v1968, 7
        %v1970 = vsub.s32 0, %v1969
        %v1971 = vrot.slane %v1947, %v1970
        %v1973 = vadd.f32 %v1966, %v1971
        %1974 = vst [vmem:[#allocation5] sm:$0xff] %v1973
        %1975 = vst [vmem:[#allocation4] sm:$0xff] 0.0
        %v1976 = vld [vmem:[#allocation5] sm:$0xff]
        %v1977 = vpack.c.bf16 %v1976, %v1976
        %v1978 = vld [vmem:[#allocation21] sm:$0xff]
        %v1979 = vld [vmem:[#allocation21 + $0x8] sm:$0xff]
        %v1980 = vld [vmem:[#allocation21 + $0x10] sm:$0xff]
        %v1981 = vld [vmem:[#allocation21 + $0x18] sm:$0xff]
        %v1982 = vld [vmem:[#allocation21 + $0x20] sm:$0xff]
        %v1983 = vld [vmem:[#allocation21 + $0x28] sm:$0xff]
        %v1984 = vld [vmem:[#allocation21 + $0x30] sm:$0xff]
        %v1985 = vld [vmem:[#allocation21 + $0x38] sm:$0xff]
        %v1986 = vld [vmem:[#allocation21 + $0x40] sm:$0xff]
        %v1987 = vld [vmem:[#allocation21 + $0x48] sm:$0xff]
        %v1988 = vld [vmem:[#allocation21 + $0x50] sm:$0xff]
        %v1989 = vld [vmem:[#allocation21 + $0x58] sm:$0xff]
        %v1990 = vld [vmem:[#allocation21 + $0x60] sm:$0xff]
        %v1991 = vld [vmem:[#allocation21 + $0x68] sm:$0xff]
        %v1992 = vld [vmem:[#allocation21 + $0x70] sm:$0xff]
        %v1993 = vld [vmem:[#allocation21 + $0x78] sm:$0xff]
        %v1994 = vld [vmem:[#allocation23] sm:$0x3]
        %v1996 = vlaneseq
        %v1997 = vshrl.u32 %v1996, 7
        %v1998 = vsub.s32 0, %v1997
        %v1999 = vrot.slane %v1994, %v1998
        %v2000 = vlaneseq
        %v2001 = vshrl.u32 %v2000, 7
        %v2002 = vsub.s32 1, %v2001
        %v2003 = vrot.slane %v1994, %v2002
        %v2022 = vunpack.c.l.b16 %v1978
        %v2023 = vunpack.c.h.b16 %v1978
        %v2024 = vunpack.c.l.b16 %v1979
        %v2025 = vunpack.c.h.b16 %v1979
        %v2026 = vunpack.c.l.b16 %v1980
        %v2027 = vunpack.c.h.b16 %v1980
        %v2028 = vunpack.c.l.b16 %v1981
        %v2029 = vunpack.c.h.b16 %v1981
        %v2030 = vunpack.c.l.b16 %v1982
        %v2031 = vunpack.c.h.b16 %v1982
        %v2032 = vunpack.c.l.b16 %v1983
        %v2033 = vunpack.c.h.b16 %v1983
        %v2034 = vunpack.c.l.b16 %v1984
        %v2035 = vunpack.c.h.b16 %v1984
        %v2036 = vunpack.c.l.b16 %v1985
        %v2037 = vunpack.c.h.b16 %v1985
        %v2038 = vunpack.c.l.b16 %v1986
        %v2039 = vunpack.c.h.b16 %v1986
        %v2040 = vunpack.c.l.b16 %v1987
        %v2041 = vunpack.c.h.b16 %v1987
        %v2042 = vunpack.c.l.b16 %v1988
        %v2043 = vunpack.c.h.b16 %v1988
        %v2044 = vunpack.c.l.b16 %v1989
        %v2045 = vunpack.c.h.b16 %v1989
        %v2046 = vunpack.c.l.b16 %v1990
        %v2047 = vunpack.c.h.b16 %v1990
        %v2048 = vunpack.c.l.b16 %v1991
        %v2049 = vunpack.c.h.b16 %v1991
        %v2050 = vunpack.c.l.b16 %v1992
        %v2051 = vunpack.c.h.b16 %v1992
        %v2052 = vunpack.c.l.b16 %v1993
        %v2053 = vunpack.c.h.b16 %v1993
        %v2054 = vpack.c.b16 %v2024, %v2022
        %v2055 = vpack.c.b16 %v2025, %v2023
        %v2056 = vpack.c.b16 %v2028, %v2026
        %v2057 = vpack.c.b16 %v2029, %v2027
        %v2058 = vpack.c.b16 %v2032, %v2030
        %v2059 = vpack.c.b16 %v2033, %v2031
        %v2060 = vpack.c.b16 %v2036, %v2034
        %v2061 = vpack.c.b16 %v2037, %v2035
        %v2062 = vpack.c.b16 %v2040, %v2038
        %v2063 = vpack.c.b16 %v2041, %v2039
        %v2064 = vpack.c.b16 %v2044, %v2042
        %v2065 = vpack.c.b16 %v2045, %v2043
        %v2066 = vpack.c.b16 %v2048, %v2046
        %v2067 = vpack.c.b16 %v2049, %v2047
        %v2068 = vpack.c.b16 %v2052, %v2050
        %v2069 = vpack.c.b16 %v2053, %v2051
        %2086 = vmatprep.subr.bf16.mxu0 %v2055
        %2087 = vmatpush1.bf16.msra.mxu0 %v2054
        %2088 = vmatprep.subr.bf16.mxu0 %v2057
        %2089 = vmatpush1.bf16.msra.mxu0 %v2056
        %2090 = vmatprep.subr.bf16.mxu0 %v2059
        %2091 = vmatpush1.bf16.msra.mxu0 %v2058
        %2092 = vmatprep.subr.bf16.mxu0 %v2061
        %2093 = vmatpush1.bf16.msra.mxu0 %v2060
        %2094 = vmatprep.subr.bf16.mxu0 %v2063
        %2095 = vmatpush1.bf16.msra.mxu0 %v2062
        %2096 = vmatprep.subr.bf16.mxu0 %v2065
        %2097 = vmatpush1.bf16.msra.mxu0 %v2064
        %2098 = vmatprep.subr.bf16.mxu0 %v2067
        %2099 = vmatpush1.bf16.msra.mxu0 %v2066
        %2100 = vmatprep.subr.bf16.mxu0 %v2069
        %2101 = vmatpush1.bf16.msra.mxu0 %v2068
        %2102 = vmatprep.subr.bf16.mxu0 0
        %2103 = vmatpush1.bf16.msra.mxu0 0
        %2104 = vmatprep.subr.bf16.mxu0 0
        %2105 = vmatpush1.bf16.msra.mxu0 0
        %2106 = vmatprep.subr.bf16.mxu0 0
        %2107 = vmatpush1.bf16.msra.mxu0 0
        %2108 = vmatprep.subr.bf16.mxu0 0
        %2109 = vmatpush1.bf16.msra.mxu0 0
        %2110 = vmatprep.subr.bf16.mxu0 0
        %2111 = vmatpush1.bf16.msra.mxu0 0
        %2112 = vmatprep.subr.bf16.mxu0 0
        %2113 = vmatpush1.bf16.msra.mxu0 0
        %2114 = vmatprep.subr.bf16.mxu0 0
        %2115 = vmatpush1.bf16.msra.mxu0 0
        %2116 = vmatprep.subr.bf16.mxu0 0
        %2117 = vmatpush1.bf16.msra.mxu0 0
        %2118 = vmatprep.mubr.bf16.mxu0 0
        %2119 = vmatmul.mubr.bf16.gmra.mrb[0].mxu0 %v1977
        %v2120 = vpop.f32.mrb[0].mxu0
        %v2121 = vadd.f32 %v1999, %v2120
        %v2122 = vpop.f32.mrb[0].mxu0
        %v2123 = vadd.f32 %v2003, %v2122
        %v2124 = vpop.f32.mrb[0].mxu0
        %v2125 = vpop.f32.mrb[0].mxu0
        %2126 = vdwg.mxu0
        %v2127 = vmax.f32 %v2121, 0.0
        %v2128 = vmax.f32 %v2123, 0.0
        %v2129 = vld [vmem:[#allocation4] sm:$0xff]
        %v2130 = vpack.c.bf16 %v2127, %v2127
        %v2131 = vpack.c.bf16 %v2128, %v2128
        %v2132 = vld [vmem:[#allocation24] sm:$0xf]
        %v2133 = vld [vmem:[#allocation24 + $0x4] sm:$0xf]
        %v2134 = vld [vmem:[#allocation24 + $0x8] sm:$0xf]
        %v2135 = vld [vmem:[#allocation24 + $0xc] sm:$0xf]
        %v2136 = vld [vmem:[#allocation24 + $0x10] sm:$0xf]
        %v2137 = vld [vmem:[#allocation24 + $0x14] sm:$0xf]
        %v2138 = vld [vmem:[#allocation24 + $0x18] sm:$0xf]
        %v2139 = vld [vmem:[#allocation24 + $0x1c] sm:$0xf]
        %v2140 = vld [vmem:[#allocation24 + $0x20] sm:$0xf]
        %v2141 = vld [vmem:[#allocation24 + $0x24] sm:$0xf]
        %v2142 = vld [vmem:[#allocation24 + $0x28] sm:$0xf]
        %v2143 = vld [vmem:[#allocation24 + $0x2c] sm:$0xf]
        %v2144 = vld [vmem:[#allocation24 + $0x30] sm:$0xf]
        %v2145 = vld [vmem:[#allocation24 + $0x34] sm:$0xf]
        %v2146 = vld [vmem:[#allocation24 + $0x38] sm:$0xf]
        %v2147 = vld [vmem:[#allocation24 + $0x3c] sm:$0xf]
        %v2148 = vld [vmem:[#allocation24 + $0x40] sm:$0xf]
        %v2149 = vld [vmem:[#allocation24 + $0x44] sm:$0xf]
        %v2150 = vld [vmem:[#allocation24 + $0x48] sm:$0xf]
        %v2151 = vld [vmem:[#allocation24 + $0x4c] sm:$0xf]
        %v2152 = vld [vmem:[#allocation24 + $0x50] sm:$0xf]
        %v2153 = vld [vmem:[#allocation24 + $0x54] sm:$0xf]
        %v2154 = vld [vmem:[#allocation24 + $0x58] sm:$0xf]
        %v2155 = vld [vmem:[#allocation24 + $0x5c] sm:$0xf]
        %v2156 = vld [vmem:[#allocation24 + $0x60] sm:$0xf]
        %v2157 = vld [vmem:[#allocation24 + $0x64] sm:$0xf]
        %v2158 = vld [vmem:[#allocation24 + $0x68] sm:$0xf]
        %v2159 = vld [vmem:[#allocation24 + $0x6c] sm:$0xf]
        %v2160 = vld [vmem:[#allocation24 + $0x70] sm:$0xf]
        %v2161 = vld [vmem:[#allocation24 + $0x74] sm:$0xf]
        %v2162 = vld [vmem:[#allocation24 + $0x78] sm:$0xf]
        %v2163 = vld [vmem:[#allocation24 + $0x7c] sm:$0xf]
        %v2196 = vunpack.c.l.b16 %v2132
        %v2197 = vunpack.c.l.b16 %v2133
        %v2198 = vunpack.c.l.b16 %v2134
        %v2199 = vunpack.c.l.b16 %v2135
        %v2200 = vunpack.c.l.b16 %v2136
        %v2201 = vunpack.c.l.b16 %v2137
        %v2202 = vunpack.c.l.b16 %v2138
        %v2203 = vunpack.c.l.b16 %v2139
        %v2204 = vunpack.c.l.b16 %v2140
        %v2205 = vunpack.c.l.b16 %v2141
        %v2206 = vunpack.c.l.b16 %v2142
        %v2207 = vunpack.c.l.b16 %v2143
        %v2208 = vunpack.c.l.b16 %v2144
        %v2209 = vunpack.c.l.b16 %v2145
        %v2210 = vunpack.c.l.b16 %v2146
        %v2211 = vunpack.c.l.b16 %v2147
        %v2212 = vunpack.c.l.b16 %v2148
        %v2213 = vunpack.c.l.b16 %v2149
        %v2214 = vunpack.c.l.b16 %v2150
        %v2215 = vunpack.c.l.b16 %v2151
        %v2216 = vunpack.c.l.b16 %v2152
        %v2217 = vunpack.c.l.b16 %v2153
        %v2218 = vunpack.c.l.b16 %v2154
        %v2219 = vunpack.c.l.b16 %v2155
        %v2220 = vunpack.c.l.b16 %v2156
        %v2221 = vunpack.c.l.b16 %v2157
        %v2222 = vunpack.c.l.b16 %v2158
        %v2223 = vunpack.c.l.b16 %v2159
        %v2224 = vunpack.c.l.b16 %v2160
        %v2225 = vunpack.c.l.b16 %v2161
        %v2226 = vunpack.c.l.b16 %v2162
        %v2227 = vunpack.c.l.b16 %v2163
        %v2228 = vpack.c.b16 %v2197, %v2196
        %v2229 = vpack.c.b16 %v2199, %v2198
        %v2230 = vpack.c.b16 %v2201, %v2200
        %v2231 = vpack.c.b16 %v2203, %v2202
        %v2232 = vpack.c.b16 %v2205, %v2204
        %v2233 = vpack.c.b16 %v2207, %v2206
        %v2234 = vpack.c.b16 %v2209, %v2208
        %v2235 = vpack.c.b16 %v2211, %v2210
        %v2236 = vpack.c.b16 %v2213, %v2212
        %v2237 = vpack.c.b16 %v2215, %v2214
        %v2238 = vpack.c.b16 %v2217, %v2216
        %v2239 = vpack.c.b16 %v2219, %v2218
        %v2240 = vpack.c.b16 %v2221, %v2220
        %v2241 = vpack.c.b16 %v2223, %v2222
        %v2242 = vpack.c.b16 %v2225, %v2224
        %v2243 = vpack.c.b16 %v2227, %v2226
        %2260 = vmatprep.subr.bf16.mxu0 0
        %2261 = vmatpush1.bf16.msra.mxu0 %v2228
        %2262 = vmatprep.subr.bf16.mxu0 0
        %2263 = vmatpush1.bf16.msra.mxu0 %v2229
        %2264 = vmatprep.subr.bf16.mxu0 0
        %2265 = vmatpush1.bf16.msra.mxu0 %v2230
        %2266 = vmatprep.subr.bf16.mxu0 0
        %2267 = vmatpush1.bf16.msra.mxu0 %v2231
        %2268 = vmatprep.subr.bf16.mxu0 0
        %2269 = vmatpush1.bf16.msra.mxu0 %v2232
        %2270 = vmatprep.subr.bf16.mxu0 0
        %2271 = vmatpush1.bf16.msra.mxu0 %v2233
        %2272 = vmatprep.subr.bf16.mxu0 0
        %2273 = vmatpush1.bf16.msra.mxu0 %v2234
        %2274 = vmatprep.subr.bf16.mxu0 0
        %2275 = vmatpush1.bf16.msra.mxu0 %v2235
        %2276 = vmatprep.subr.bf16.mxu0 0
        %2277 = vmatpush1.bf16.msra.mxu0 %v2236
        %2278 = vmatprep.subr.bf16.mxu0 0
        %2279 = vmatpush1.bf16.msra.mxu0 %v2237
        %2280 = vmatprep.subr.bf16.mxu0 0
        %2281 = vmatpush1.bf16.msra.mxu0 %v2238
        %2282 = vmatprep.subr.bf16.mxu0 0
        %2283 = vmatpush1.bf16.msra.mxu0 %v2239
        %2284 = vmatprep.subr.bf16.mxu0 0
        %2285 = vmatpush1.bf16.msra.mxu0 %v2240
        %2286 = vmatprep.subr.bf16.mxu0 0
        %2287 = vmatpush1.bf16.msra.mxu0 %v2241
        %2288 = vmatprep.subr.bf16.mxu0 0
        %2289 = vmatpush1.bf16.msra.mxu0 %v2242
        %2290 = vmatprep.subr.bf16.mxu0 0
        %2291 = vmatpush1.bf16.msra.mxu0 %v2243
        %2292 = vmatprep.mubr.bf16.mxu0 %v2131
        %2293 = vmatmul.mubr.bf16.gmra.mrb[0].mxu0 %v2130
        %v2294 = vpop.f32.mrb[0].mxu0
        %v2295 = vadd.f32 0.0, %v2294
        %v2296 = vpop.f32.mrb[0].mxu0
        %v2297 = vpop.f32.mrb[0].mxu0
        %v2298 = vpop.f32.mrb[0].mxu0
        %2299 = vdwg.mxu0
        %v2300 = vadd.f32 %v2129, %v2295
        %2301 = vst [vmem:[#allocation4] sm:$0xff] %v2300
        %v2302 = vld [vmem:[#allocation4] sm:$0xff]
        %v2303 = vld [vmem:[#allocation26] sm:$0x1]
        %v2305 = vlaneseq
        %v2306 = vshrl.u32 %v2305, 7
        %v2307 = vsub.s32 0, %v2306
        %v2308 = vrot.slane %v2303, %v2307
        %v2310 = vadd.f32 %v2302, %v2308
        %v2311 = vld [vmem:[#allocation5] sm:$0xff]
        %v2312 = vadd.f32 %v2311, %v2310
        %v2313 = vld [vmem:[#allocation30] sm:$0x1]
        %v2314 = vld [vmem:[#allocation32] sm:$0x1]
        %2315 = vadd.xlane.f32.xlu0 %v2312
        %v2316 = vpop.xlane.xlu0 %2315
        %v2317 = vmul.f32 %v2316, %v1950
        %v2318 = vsub.f32 %v2312, %v2317
        %v2319 = vmul.f32 %v2318, %v2318
        %2320 = vadd.xlane.f32.xlu0 %v2319
        %v2321 = vpop.xlane.xlu0 %2320
        %v2322 = vmul.f32 %v2321, %v1950
        %v2323 = vadd.f32 %v2322, 1e-05
        %v2324 = vrsqrt.pop %v2323
        %v2325 = vmul.f32 %v2318, %v2324
        %v2327 = vlaneseq
        %v2328 = vshrl.u32 %v2327, 7
        %v2329 = vsub.s32 0, %v2328
        %v2330 = vrot.slane %v2313, %v2329
        %v2332 = vmul.f32 %v2325, %v2330
        %v2334 = vlaneseq
        %v2335 = vshrl.u32 %v2334, 7
        %v2336 = vsub.s32 0, %v2335
        %v2337 = vrot.slane %v2314, %v2336
        %v2339 = vadd.f32 %v2332, %v2337
        %2340 = vst [vmem:[%s822] sm:$0xff] %v2339
        %s2341 = sand.u32 %s431, 1
        %s2342 = scalar_lea.sflag [#allocation8], %s2341
        %s2343 = sand.u32 %s431, 1
        %s2344 = smul.addr %s2343, 8
        %s2345 = scalar_lea.vmem [#allocation33], %s2344
        %s2346 = sand.u32 %s459, 1
        %s2347 = scalar_lea.sflag [#allocation35], %s2346
        %s2348 = sand.u32 %s459, 1
        %s2349 = smul.addr %s2348, 8
        %s2350 = scalar_lea.vmem [#allocation34], %s2349
        // Predicated region
        $region161: #{tpu_custom_call.1} parent=87 // pred_check
          %p2351 = pneg %p441
        $region162: #{tpu_custom_call.1} parent=87 // pred_check_branch
          %2353 = sbr.rel (%p2351) target = $region164
        $region163: #{tpu_custom_call.1} parent=87 // pred_region
          %s2355 = ssub.s32 128, 128
          %2356 = vsyncadd %s2342, %s2355
          %s2357 = sadd.s32 %s52, %s51
          %s2358 = smul.addr %s2357, 128
          %s2359 = scalar_lea.hbm %s17, %s2358
          %s2361 = sshll.u32 %s2345, 4
          %s2362 = int_to_ptr.vmem [resolvable:$true] %s2361
          %2364 = dma.vmem_to_hbm [thread:$0]  %s2362, 128, %s2359, %s2342
        $region164: #{tpu_custom_call.1} parent=87 // pred_fallthru
          _
        // Predicated region
        $region165: #{tpu_custom_call.1} parent=87 // pred_check
          %p2365 = pneg %p469
        $region166: #{tpu_custom_call.1} parent=87 // pred_check_branch
          %2367 = sbr.rel (%p2365) target = $region168
        $region167: #{tpu_custom_call.1} parent=87 // pred_region
          %s2369 = ssub.s32 128, 128
          %2370 = vsyncadd %s2347, %s2369
          %s2371 = sadd.s32 %s52, %s51
          %s2372 = smul.addr %s2371, 128
          %s2373 = scalar_lea.hbm %s18, %s2372
          %s2375 = sshll.u32 %s2350, 4
          %s2376 = int_to_ptr.vmem [resolvable:$true] %s2375
          %2378 = dma.vmem_to_hbm [thread:$0]  %s2376, 128, %s2373, %s2347
        $region168: #{tpu_custom_call.1} parent=87 // pred_fallthru
          _
      $region88: #{tpu_custom_call.1} parent=5 // pred_fallthru
        _
      %p2379 = scmp.le.s32.totalorder 2, %s42
      // Predicated region
      $region169: #{tpu_custom_call.1} parent=5 // pred_check
        %p2380 = pneg %p2379
      $region170: #{tpu_custom_call.1} parent=5 // pred_check_branch
        %2382 = sbr.rel (%p2380) target = $region172
      $region171: #{tpu_custom_call.1} parent=5 // pred_region
        %s2383 = ssub.s32 %s42, 2
        // Predicated region
        $region173: #{tpu_custom_call.1} parent=171 // pred_check
          %p2384 = pneg %p447
        $region174: #{tpu_custom_call.1} parent=171 // pred_check_branch
          %2386 = sbr.rel (%p2384) target = $region176
        $region175: #{tpu_custom_call.1} parent=171 // pred_region
          %s2387 = sand.u32 %s432, 1
          %s2388 = scalar_lea.sflag [#allocation8], %s2387
          %s2389 = sand.u32 %s432, 1
          %s2390 = smul.addr %s2389, 8
          %s2391 = scalar_lea.vmem [#allocation33], %s2390
          %2392 = dma.done %s2388, 128
        $region176: #{tpu_custom_call.1} parent=171 // pred_fallthru
          _
        // Predicated region
        $region177: #{tpu_custom_call.1} parent=171 // pred_check
          %p2393 = pneg %p475
        $region178: #{tpu_custom_call.1} parent=171 // pred_check_branch
          %2395 = sbr.rel (%p2393) target = $region180
        $region179: #{tpu_custom_call.1} parent=171 // pred_region
          %s2396 = sand.u32 %s460, 1
          %s2397 = scalar_lea.sflag [#allocation35], %s2396
          %s2398 = sand.u32 %s460, 1
          %s2399 = smul.addr %s2398, 8
          %s2400 = scalar_lea.vmem [#allocation34], %s2399
          %2401 = dma.done %s2397, 128
        $region180: #{tpu_custom_call.1} parent=171 // pred_fallthru
          _
      $region172: #{tpu_custom_call.1} parent=5 // pred_fallthru
        _
    $region6: #{tpu_custom_call.1} parent=1 // loop_footer
      %s46 = sadd.s32 1, %s42
    $region7: #{tpu_custom_call.1} parent=1 // loop_footer_branch
      %41 = sbr.rel target = $region3
    $region8: #{tpu_custom_call.1} parent=1 // loop_exit
      _
    %2402 = vsyncpa [#allocation7], 1
    %s2403 = scalar_lea.sflag [#allocation7], 1
    %2404 = vsyncpa %s2403, 1
    %2405 = vsyncpa [#allocation10], 1
    %2406 = vsyncpa [#allocation13], 1
    %2407 = vsyncpa [#allocation16], 1
    %2408 = vsyncpa [#allocation19], 1
    %2409 = vsyncpa [#allocation22], 1
    %2410 = vsyncpa [#allocation25], 1
    %2411 = vsyncpa [#allocation28], 1
    %2412 = vsyncpa [#allocation31], 1
    %2413 = vsyncpa [#allocation8], 1
    %s2414 = scalar_lea.sflag [#allocation8], 1
    %2415 = vsyncpa %s2414, 1
    %2416 = vsyncpa [#allocation35], 1
    %s2417 = scalar_lea.sflag [#allocation35], 1
    %2418 = vsyncpa %s2417, 1

</llo_original>
